<compile_context>
chip_gen: v7x
topology: tpu7x:2x2x1
jax: 0.10.0
libtpu: 0.0.40
codegen_flags: <defaults>
</compile_context>

<pallas_src>
import functools

import jax
import jax.numpy as jnp
import numpy as np
from jax.experimental import pallas as pl
from jax.experimental.pallas import tpu as pltpu


def find_multiple(n: int, k: int) -> int:
    return n if n % k == 0 else n + (k - n % k)


def _round_up(n: int, k: int) -> int:
    return ((n + k - 1) // k) * k


def _pick_tk(K: int, groupsize: int) -> int:
    """K-tile size. tk = 8*groupsize makes each nibble sub-block exactly one
    quantization group (depth-`groupsize` MXU matmuls, single-row scale broadcast).
    Fallback: no K tiling (tk = K) when K is not a multiple of 8*groupsize so the
    scale/zero blocks keep legal (full-dim) sublane extents."""
    blk = 8 * groupsize
    return blk if K % blk == 0 else K


def pack_int4_tileblocked(q, tk):
    """K-tile-blocked nibble packing: for K-tile kt, nibble i of packed row
    (kt*tk//8 + j) holds q[kt*tk + i*(tk//8) + j, n]."""
    K, N = q.shape
    assert K % tk == 0 and tk % 8 == 0
    tkp = tk // 8
    qt = q.reshape(K // tk, 8, tkp, N).astype(jnp.int32)
    packed = jnp.zeros((K // tk, tkp, N), jnp.int32)
    for i in range(8):
        packed = jnp.bitwise_or(packed, jnp.left_shift(qt[:, i, :, :], 4 * i))
    return packed.reshape(K // 8, N)


def _int4_linear_kernel(x_ref, qw_ref, scale_ref, zero_ref, o_ref, acc_ref, *,
                        groupsize, tk):
    # x_ref:     (tm, tk)              bf16
    # qw_ref:    (tk//8, tn)           int32 (K-tile-blocked nibble packing)
    # scale_ref: (tk//groupsize, tn)   f32
    # zero_ref:  (tk//groupsize, tn)   f32   (zero - 8*scale folded in)
    # o_ref:     (tm, tn)              bf16
    # acc_ref:   (tm, tn)              f32 VMEM scratch (resident across k)
    k = pl.program_id(2)
    nk = pl.num_programs(2)

    @pl.when(k == 0)
    def _init():
        acc_ref[...] = jnp.zeros_like(acc_ref)

    tkp = tk // 8
    for i in range(8):                         # static unroll over nibbles
        nib = jnp.bitwise_and(jnp.right_shift(qw_ref[...], 4 * i), 0xF)
        j = 0
        while j < tkp:                         # static group-aligned runs
            g = (i * tkp + j) // groupsize     # group index within this K tile
            run = min(tkp - j, (g + 1) * groupsize - (i * tkp + j))
            w = (nib[j:j + run, :].astype(jnp.float32) * scale_ref[g:g + 1, :]
                 + zero_ref[g:g + 1, :]).astype(jnp.bfloat16)
            acc_ref[...] += jnp.dot(
                x_ref[:, i * tkp + j:i * tkp + j + run], w,
                preferred_element_type=jnp.float32)
            j += run

    @pl.when(k == nk - 1)
    def _finalize():
        o_ref[...] = acc_ref[...].astype(o_ref.dtype)


def int4_linear(x2d, qpacked, scales_f32, zeros_adj_f32, groupsize, tk, *,
                tm_max=256):
    M, K = x2d.shape
    Kp, N = qpacked.shape
    assert Kp * 8 == K
    assert K % tk == 0 and tk % groupsize == 0 and tk % 8 == 0
    gpt = tk // groupsize
    G = K // groupsize
    assert scales_f32.shape == (G, N) and zeros_adj_f32.shape == (G, N)

    # Lane-dense N tile: biggest of 512/256/128 that divides N, else full N.
    for cand in (512, 256, 128):
        if N % cand == 0:
            tn = cand
            break
    else:
        tn = N

    # M tile: cover all of M when it is small (decode / short prefill) so each
    # weight block is fetched + dequantized exactly once; pad ragged M.
    tm = min(_round_up(max(M, 1), 16), tm_max)
    M_pad = _round_up(M, tm)
    if M_pad != M:
        x2d = jnp.pad(x2d, ((0, M_pad - M), (0, 0)))

    kernel = functools.partial(_int4_linear_kernel, groupsize=groupsize, tk=tk)
    out = pl.pallas_call(
        kernel,
        out_shape=jax.ShapeDtypeStruct((M_pad, N), jnp.bfloat16),
        grid_spec=pltpu.PrefetchScalarGridSpec(
            num_scalar_prefetch=0,
            grid=(M_pad // tm, N // tn, K // tk),
            in_specs=[
                pl.BlockSpec((tm, tk), lambda i, j, k: (i, k)),
                pl.BlockSpec((tk // 8, tn), lambda i, j, k: (k, j)),
                pl.BlockSpec((gpt, tn), lambda i, j, k: (k, j)),
                pl.BlockSpec((gpt, tn), lambda i, j, k: (k, j)),
            ],
            out_specs=pl.BlockSpec((tm, tn), lambda i, j, k: (i, j)),
            scratch_shapes=[pltpu.VMEM((tm, tn), jnp.float32)],
        ),
        compiler_params=pltpu.CompilerParams(
            dimension_semantics=("parallel", "parallel", "arbitrary"),
            vmem_limit_bytes=32 * 1024 * 1024,
        ),
    )(x2d, qpacked, scales_f32, zeros_adj_f32)
    return out[:M]


class WeightOnlyInt4Linear:
    """JAX port of the torch module. Parameters are synthetic & deterministic."""

    def __init__(self, in_features, out_features, bias=False, groupsize=128,
                 inner_k_tiles=8, *, key):
        assert not bias, "require bias=False"
        self.padding = not (in_features % (inner_k_tiles * 16) == 0
                            and in_features % groupsize == 0)
        if self.padding:
            self.origin_in_features = in_features
            in_features = find_multiple(in_features, 1024)
        self.in_features = in_features
        self.out_features = out_features
        self.groupsize = groupsize
        assert out_features % 8 == 0
        assert in_features % (inner_k_tiles * 16) == 0
        assert in_features % groupsize == 0

        k_q, k_s, k_z = jax.random.split(key, 3)
        # Unpacked 4-bit codes in [0, 15], logical layout (K, N).
        q = jax.random.randint(k_q, (in_features, out_features), 0, 16,
                               dtype=jnp.int32)
        G = in_features // groupsize
        scales = (jax.random.uniform(k_s, (G, out_features), jnp.float32) * 0.02
                  + 0.005).astype(jnp.bfloat16)
        zeros = (jax.random.uniform(k_z, (G, out_features), jnp.float32) * 0.2
                 - 0.1).astype(jnp.bfloat16)
        # torch buffer shape (in//groupsize, out, 2): kept only for the reference.
        self.scales_and_zeros = jnp.stack([scales, zeros], axis=-1)

        # Kernel-side parameters, precomputed ONCE at init: pre-split scale/zero,
        # fold the -8 into the zero point (f32 so dequant matches the reference).
        self.scales_f32 = scales.astype(jnp.float32)                       # (G, N)
        self.zeros_adj_f32 = zeros.astype(jnp.float32) - 8.0 * self.scales_f32

        # TODO(synk): torch's aten._weight_int4pack_mm uses a CUDA tensor-core
        # specific packed layout (out//8, in//(inner_k_tiles*16), 32, inner_k_tiles//2);
        # here we use a semantically equivalent K-tile-blocked nibble packing
        # matched to the Pallas kernel's K tile.
        self.tk = _pick_tk(in_features, groupsize)
        self.weight = pack_int4_tileblocked(q, self.tk)
        self._q_unpacked = q  # kept only for the pure-JAX reference check

    def __call__(self, x):
        x = x.astype(jnp.bfloat16)
        if self.padding:
            pad = self.in_features - self.origin_in_features
            x = jnp.pad(x, [(0, 0)] * (x.ndim - 1) + [(0, pad)])
        orig_shape = x.shape
        x2 = x.reshape(-1, orig_shape[-1])
        y = int4_linear(x2, self.weight, self.scales_f32, self.zeros_adj_f32,
                        self.groupsize, self.tk)
        return y.reshape(orig_shape[:-1] + (self.out_features,))


def _reference(layer, x):
    x = x.astype(jnp.bfloat16)
    if layer.padding:
        pad = layer.in_features - layer.origin_in_features
        x = jnp.pad(x, [(0, 0)] * (x.ndim - 1) + [(0, pad)])
    q = layer._q_unpacked.astype(jnp.float32)                    # (K, N)
    scales = layer.scales_and_zeros[..., 0].astype(jnp.float32)  # (G, N)
    zeros = layer.scales_and_zeros[..., 1].astype(jnp.float32)   # (G, N)
    K, N = q.shape
    scale_full = jnp.repeat(scales, layer.groupsize, axis=0)
    zero_full = jnp.repeat(zeros, layer.groupsize, axis=0)
    w = ((q - 8.0) * scale_full + zero_full).astype(jnp.bfloat16)
    x2 = x.reshape(-1, K)
    y = jnp.dot(x2, w, preferred_element_type=jnp.float32).astype(jnp.bfloat16)
    return y.reshape(x.shape[:-1] + (N,))


if __name__ == "__main__":
    key = jax.random.PRNGKey(0)
    k_layer, k_x = jax.random.split(key)

    B, S = 2, 7                  # M = 14 -> exercises ragged-M padding (pads to 16)
    in_features = 2048           # 2 K-tiles of tk = 8 * groupsize = 1024
    out_features = 768           # 3 N-tiles of tn = 256

    layer = WeightOnlyInt4Linear(in_features, out_features, bias=False,
                                 groupsize=128, inner_k_tiles=8, key=k_layer)
    x = jax.random.normal(k_x, (B, S, in_features), jnp.float32)

    y = layer(x)
    y = jax.block_until_ready(y)

    assert y.shape == (B, S, out_features)
    assert y.dtype == jnp.bfloat16

    y_ref = _reference(layer, x)
    np.testing.assert_allclose(
        np.asarray(y, dtype=np.float32),
        np.asarray(y_ref, dtype=np.float32),
        rtol=5e-2, atol=5e-2,
    )
    print("KERNEL_OK")
</pallas_src>

<mosaic_0001>
module attributes {stable_mosaic.version = 11 : i64} {
  func.func @_int4_linear_kernel(%arg0: i32, %arg1: i32, %arg2: i32, %arg3: memref<16x1024xbf16, #tpu.memory_space<vmem>>, %arg4: memref<128x256xi32, #tpu.memory_space<vmem>>, %arg5: memref<8x256xf32, #tpu.memory_space<vmem>>, %arg6: memref<8x256xf32, #tpu.memory_space<vmem>>, %arg7: memref<16x256xbf16, #tpu.memory_space<vmem>>, %arg8: memref<16x256xf32, #tpu.memory_space<vmem>>) attributes {dimension_semantics = [#tpu.dimension_semantics<parallel>, #tpu.dimension_semantics<parallel>, #tpu.dimension_semantics<arbitrary>], iteration_bounds = array<i64: 1, 3, 2>, scalar_prefetch = 0 : i64, scratch_operands = 1 : i64, tpu.core_type = #tpu.core_type<tc>, window_params = [{transform_indices = @transform_0, window_bounds = array<i64: 16, 1024>}, {transform_indices = @transform_1, window_bounds = array<i64: 128, 256>}, {transform_indices = @transform_2, window_bounds = array<i64: 8, 256>}, {transform_indices = @transform_3, window_bounds = array<i64: 8, 256>}, {transform_indices = @transform_4, window_bounds = array<i64: 16, 256>}]} {
    %c0_i32 = arith.constant 0 : i32
    %0 = arith.cmpi eq, %arg2, %c0_i32 : i32
    %1 = arith.extui %0 : i1 to i32
    %c0_i32_0 = arith.constant 0 : i32
    %2 = arith.cmpi ne, %1, %c0_i32_0 : i32
    scf.if %2 {
      %cst_98 = arith.constant 0.000000e+00 : f32
      %150 = vector.broadcast %cst_98 : f32 to vector<16x256xf32>
      %c0_99 = arith.constant 0 : index
      %c0_100 = arith.constant 0 : index
      %151 = vector.load %arg8[%c0_99, %c0_100] : memref<16x256xf32, #tpu.memory_space<vmem>>, vector<16x256xf32>
      tpu.vector_store %arg8[%c0_99, %c0_100], %150 {strides = array<i32>} : memref<16x256xf32, #tpu.memory_space<vmem>>, vector<16x256xf32>,
    } else {
    }
    %c0 = arith.constant 0 : index
    %c0_1 = arith.constant 0 : index
    %3 = vector.load %arg4[%c0, %c0_1] : memref<128x256xi32, #tpu.memory_space<vmem>>, vector<128x256xi32>
    %c0_i32_2 = arith.constant 0 : i32
    %4 = vector.broadcast %c0_i32_2 : i32 to vector<128x256xi32>
    %5 = arith.shrsi %3, %4 : vector<128x256xi32>
    %c15_i32 = arith.constant 15 : i32
    %6 = vector.broadcast %c15_i32 : i32 to vector<128x256xi32>
    %7 = arith.andi %5, %6 : vector<128x256xi32>
    %8 = arith.sitofp %7 : vector<128x256xi32> to vector<128x256xf32>
    %c0_3 = arith.constant 0 : index
    %c0_4 = arith.constant 0 : index
    %9 = vector.load %arg5[%c0_3, %c0_4] : memref<8x256xf32, #tpu.memory_space<vmem>>, vector<1x256xf32>
    %10 = vector.broadcast %9 : vector<1x256xf32> to vector<128x256xf32>
    %11 = arith.mulf %8, %10 : vector<128x256xf32>
    %c0_5 = arith.constant 0 : index
    %c0_6 = arith.constant 0 : index
    %12 = vector.load %arg6[%c0_5, %c0_6] : memref<8x256xf32, #tpu.memory_space<vmem>>, vector<1x256xf32>
    %13 = vector.broadcast %12 : vector<1x256xf32> to vector<128x256xf32>
    %14 = arith.addf %11, %13 : vector<128x256xf32>
    %15 = arith.truncf %14 : vector<128x256xf32> to vector<128x256xbf16>
    %c0_7 = arith.constant 0 : index
    %c0_8 = arith.constant 0 : index
    %16 = vector.load %arg8[%c0_7, %c0_8] : memref<16x256xf32, #tpu.memory_space<vmem>>, vector<16x256xf32>
    %c0_9 = arith.constant 0 : index
    %c0_10 = arith.constant 0 : index
    %17 = vector.load %arg3[%c0_9, %c0_10] : memref<16x1024xbf16, #tpu.memory_space<vmem>>, vector<16x128xbf16>
    %cst = arith.constant dense<0.000000e+00> : vector<16x256xf32>
    %18 = tpu.matmul %17, %15, %cst {dimension_numbers = #tpu.dot_dimension_numbers<[1], [0], [0], [1], [0, 0, 1, 1], [], []>} : vector<16x128xbf16>, vector<128x256xbf16>, vector<16x256xf32> -> vector<16x256xf32>
    %19 = arith.addf %16, %18 : vector<16x256xf32>
    %c0_11 = arith.constant 0 : index
    %c0_12 = arith.constant 0 : index
    %20 = vector.load %arg8[%c0_11, %c0_12] : memref<16x256xf32, #tpu.memory_space<vmem>>, vector<16x256xf32>
    tpu.vector_store %arg8[%c0_11, %c0_12], %19 {strides = array<i32>} : memref<16x256xf32, #tpu.memory_space<vmem>>, vector<16x256xf32>,
    %c0_13 = arith.constant 0 : index
    %c0_14 = arith.constant 0 : index
    %21 = vector.load %arg4[%c0_13, %c0_14] : memref<128x256xi32, #tpu.memory_space<vmem>>, vector<128x256xi32>
    %c4_i32 = arith.constant 4 : i32
    %22 = vector.broadcast %c4_i32 : i32 to vector<128x256xi32>
    %23 = arith.shrsi %21, %22 : vector<128x256xi32>
    %c15_i32_15 = arith.constant 15 : i32
    %24 = vector.broadcast %c15_i32_15 : i32 to vector<128x256xi32>
    %25 = arith.andi %23, %24 : vector<128x256xi32>
    %26 = arith.sitofp %25 : vector<128x256xi32> to vector<128x256xf32>
    %c1 = arith.constant 1 : index
    %c0_16 = arith.constant 0 : index
    %27 = vector.load %arg5[%c1, %c0_16] : memref<8x256xf32, #tpu.memory_space<vmem>>, vector<1x256xf32>
    %28 = vector.broadcast %27 : vector<1x256xf32> to vector<128x256xf32>
    %29 = arith.mulf %26, %28 : vector<128x256xf32>
    %c1_17 = arith.constant 1 : index
    %c0_18 = arith.constant 0 : index
    %30 = vector.load %arg6[%c1_17, %c0_18] : memref<8x256xf32, #tpu.memory_space<vmem>>, vector<1x256xf32>
    %31 = vector.broadcast %30 : vector<1x256xf32> to vector<128x256xf32>
    %32 = arith.addf %29, %31 : vector<128x256xf32>
    %33 = arith.truncf %32 : vector<128x256xf32> to vector<128x256xbf16>
    %c0_19 = arith.constant 0 : index
    %c0_20 = arith.constant 0 : index
    %34 = vector.load %arg8[%c0_19, %c0_20] : memref<16x256xf32, #tpu.memory_space<vmem>>, vector<16x256xf32>
    %c0_21 = arith.constant 0 : index
    %c128 = arith.constant 128 : index
    %35 = vector.load %arg3[%c0_21, %c128] : memref<16x1024xbf16, #tpu.memory_space<vmem>>, vector<16x128xbf16>
    %cst_22 = arith.constant dense<0.000000e+00> : vector<16x256xf32>
    %36 = tpu.matmul %35, %33, %cst_22 {dimension_numbers = #tpu.dot_dimension_numbers<[1], [0], [0], [1], [0, 0, 1, 1], [], []>} : vector<16x128xbf16>, vector<128x256xbf16>, vector<16x256xf32> -> vector<16x256xf32>
    %37 = arith.addf %34, %36 : vector<16x256xf32>
    %c0_23 = arith.constant 0 : index
    %c0_24 = arith.constant 0 : index
    %38 = vector.load %arg8[%c0_23, %c0_24] : memref<16x256xf32, #tpu.memory_space<vmem>>, vector<16x256xf32>
    tpu.vector_store %arg8[%c0_23, %c0_24], %37 {strides = array<i32>} : memref<16x256xf32, #tpu.memory_space<vmem>>, vector<16x256xf32>,
    %c0_25 = arith.constant 0 : index
    %c0_26 = arith.constant 0 : index
    %39 = vector.load %arg4[%c0_25, %c0_26] : memref<128x256xi32, #tpu.memory_space<vmem>>, vector<128x256xi32>
    %c8_i32 = arith.constant 8 : i32
    %40 = vector.broadcast %c8_i32 : i32 to vector<128x256xi32>
    %41 = arith.shrsi %39, %40 : vector<128x256xi32>
    %c15_i32_27 = arith.constant 15 : i32
    %42 = vector.broadcast %c15_i32_27 : i32 to vector<128x256xi32>
    %43 = arith.andi %41, %42 : vector<128x256xi32>
    %44 = arith.sitofp %43 : vector<128x256xi32> to vector<128x256xf32>
    %c2 = arith.constant 2 : index
    %c0_28 = arith.constant 0 : index
    %45 = vector.load %arg5[%c2, %c0_28] : memref<8x256xf32, #tpu.memory_space<vmem>>, vector<1x256xf32>
    %46 = vector.broadcast %45 : vector<1x256xf32> to vector<128x256xf32>
    %47 = arith.mulf %44, %46 : vector<128x256xf32>
    %c2_29 = arith.constant 2 : index
    %c0_30 = arith.constant 0 : index
    %48 = vector.load %arg6[%c2_29, %c0_30] : memref<8x256xf32, #tpu.memory_space<vmem>>, vector<1x256xf32>
    %49 = vector.broadcast %48 : vector<1x256xf32> to vector<128x256xf32>
    %50 = arith.addf %47, %49 : vector<128x256xf32>
    %51 = arith.truncf %50 : vector<128x256xf32> to vector<128x256xbf16>
    %c0_31 = arith.constant 0 : index
    %c0_32 = arith.constant 0 : index
    %52 = vector.load %arg8[%c0_31, %c0_32] : memref<16x256xf32, #tpu.memory_space<vmem>>, vector<16x256xf32>
    %c0_33 = arith.constant 0 : index
    %c256 = arith.constant 256 : index
    %53 = vector.load %arg3[%c0_33, %c256] : memref<16x1024xbf16, #tpu.memory_space<vmem>>, vector<16x128xbf16>
    %cst_34 = arith.constant dense<0.000000e+00> : vector<16x256xf32>
    %54 = tpu.matmul %53, %51, %cst_34 {dimension_numbers = #tpu.dot_dimension_numbers<[1], [0], [0], [1], [0, 0, 1, 1], [], []>} : vector<16x128xbf16>, vector<128x256xbf16>, vector<16x256xf32> -> vector<16x256xf32>
    %55 = arith.addf %52, %54 : vector<16x256xf32>
    %c0_35 = arith.constant 0 : index
    %c0_36 = arith.constant 0 : index
    %56 = vector.load %arg8[%c0_35, %c0_36] : memref<16x256xf32, #tpu.memory_space<vmem>>, vector<16x256xf32>
    tpu.vector_store %arg8[%c0_35, %c0_36], %55 {strides = array<i32>} : memref<16x256xf32, #tpu.memory_space<vmem>>, vector<16x256xf32>,
    %c0_37 = arith.constant 0 : index
    %c0_38 = arith.constant 0 : index
    %57 = vector.load %arg4[%c0_37, %c0_38] : memref<128x256xi32, #tpu.memory_space<vmem>>, vector<128x256xi32>
    %c12_i32 = arith.constant 12 : i32
    %58 = vector.broadcast %c12_i32 : i32 to vector<128x256xi32>
    %59 = arith.shrsi %57, %58 : vector<128x256xi32>
    %c15_i32_39 = arith.constant 15 : i32
    %60 = vector.broadcast %c15_i32_39 : i32 to vector<128x256xi32>
    %61 = arith.andi %59, %60 : vector<128x256xi32>
    %62 = arith.sitofp %61 : vector<128x256xi32> to vector<128x256xf32>
    %c3 = arith.constant 3 : index
    %c0_40 = arith.constant 0 : index
    %63 = vector.load %arg5[%c3, %c0_40] : memref<8x256xf32, #tpu.memory_space<vmem>>, vector<1x256xf32>
    %64 = vector.broadcast %63 : vector<1x256xf32> to vector<128x256xf32>
    %65 = arith.mulf %62, %64 : vector<128x256xf32>
    %c3_41 = arith.constant 3 : index
    %c0_42 = arith.constant 0 : index
    %66 = vector.load %arg6[%c3_41, %c0_42] : memref<8x256xf32, #tpu.memory_space<vmem>>, vector<1x256xf32>
    %67 = vector.broadcast %66 : vector<1x256xf32> to vector<128x256xf32>
    %68 = arith.addf %65, %67 : vector<128x256xf32>
    %69 = arith.truncf %68 : vector<128x256xf32> to vector<128x256xbf16>
    %c0_43 = arith.constant 0 : index
    %c0_44 = arith.constant 0 : index
    %70 = vector.load %arg8[%c0_43, %c0_44] : memref<16x256xf32, #tpu.memory_space<vmem>>, vector<16x256xf32>
    %c0_45 = arith.constant 0 : index
    %c384 = arith.constant 384 : index
    %71 = vector.load %arg3[%c0_45, %c384] : memref<16x1024xbf16, #tpu.memory_space<vmem>>, vector<16x128xbf16>
    %cst_46 = arith.constant dense<0.000000e+00> : vector<16x256xf32>
    %72 = tpu.matmul %71, %69, %cst_46 {dimension_numbers = #tpu.dot_dimension_numbers<[1], [0], [0], [1], [0, 0, 1, 1], [], []>} : vector<16x128xbf16>, vector<128x256xbf16>, vector<16x256xf32> -> vector<16x256xf32>
    %73 = arith.addf %70, %72 : vector<16x256xf32>
    %c0_47 = arith.constant 0 : index
    %c0_48 = arith.constant 0 : index
    %74 = vector.load %arg8[%c0_47, %c0_48] : memref<16x256xf32, #tpu.memory_space<vmem>>, vector<16x256xf32>
    tpu.vector_store %arg8[%c0_47, %c0_48], %73 {strides = array<i32>} : memref<16x256xf32, #tpu.memory_space<vmem>>, vector<16x256xf32>,
    %c0_49 = arith.constant 0 : index
    %c0_50 = arith.constant 0 : index
    %75 = vector.load %arg4[%c0_49, %c0_50] : memref<128x256xi32, #tpu.memory_space<vmem>>, vector<128x256xi32>
    %c16_i32 = arith.constant 16 : i32
    %76 = vector.broadcast %c16_i32 : i32 to vector<128x256xi32>
    %77 = arith.shrsi %75, %76 : vector<128x256xi32>
    %c15_i32_51 = arith.constant 15 : i32
    %78 = vector.broadcast %c15_i32_51 : i32 to vector<128x256xi32>
    %79 = arith.andi %77, %78 : vector<128x256xi32>
    %80 = arith.sitofp %79 : vector<128x256xi32> to vector<128x256xf32>
    %c4 = arith.constant 4 : index
    %c0_52 = arith.constant 0 : index
    %81 = vector.load %arg5[%c4, %c0_52] : memref<8x256xf32, #tpu.memory_space<vmem>>, vector<1x256xf32>
    %82 = vector.broadcast %81 : vector<1x256xf32> to vector<128x256xf32>
    %83 = arith.mulf %80, %82 : vector<128x256xf32>
    %c4_53 = arith.constant 4 : index
    %c0_54 = arith.constant 0 : index
    %84 = vector.load %arg6[%c4_53, %c0_54] : memref<8x256xf32, #tpu.memory_space<vmem>>, vector<1x256xf32>
    %85 = vector.broadcast %84 : vector<1x256xf32> to vector<128x256xf32>
    %86 = arith.addf %83, %85 : vector<128x256xf32>
    %87 = arith.truncf %86 : vector<128x256xf32> to vector<128x256xbf16>
    %c0_55 = arith.constant 0 : index
    %c0_56 = arith.constant 0 : index
    %88 = vector.load %arg8[%c0_55, %c0_56] : memref<16x256xf32, #tpu.memory_space<vmem>>, vector<16x256xf32>
    %c0_57 = arith.constant 0 : index
    %c512 = arith.constant 512 : index
    %89 = vector.load %arg3[%c0_57, %c512] : memref<16x1024xbf16, #tpu.memory_space<vmem>>, vector<16x128xbf16>
    %cst_58 = arith.constant dense<0.000000e+00> : vector<16x256xf32>
    %90 = tpu.matmul %89, %87, %cst_58 {dimension_numbers = #tpu.dot_dimension_numbers<[1], [0], [0], [1], [0, 0, 1, 1], [], []>} : vector<16x128xbf16>, vector<128x256xbf16>, vector<16x256xf32> -> vector<16x256xf32>
    %91 = arith.addf %88, %90 : vector<16x256xf32>
    %c0_59 = arith.constant 0 : index
    %c0_60 = arith.constant 0 : index
    %92 = vector.load %arg8[%c0_59, %c0_60] : memref<16x256xf32, #tpu.memory_space<vmem>>, vector<16x256xf32>
    tpu.vector_store %arg8[%c0_59, %c0_60], %91 {strides = array<i32>} : memref<16x256xf32, #tpu.memory_space<vmem>>, vector<16x256xf32>,
    %c0_61 = arith.constant 0 : index
    %c0_62 = arith.constant 0 : index
    %93 = vector.load %arg4[%c0_61, %c0_62] : memref<128x256xi32, #tpu.memory_space<vmem>>, vector<128x256xi32>
    %c20_i32 = arith.constant 20 : i32
    %94 = vector.broadcast %c20_i32 : i32 to vector<128x256xi32>
    %95 = arith.shrsi %93, %94 : vector<128x256xi32>
    %c15_i32_63 = arith.constant 15 : i32
    %96 = vector.broadcast %c15_i32_63 : i32 to vector<128x256xi32>
    %97 = arith.andi %95, %96 : vector<128x256xi32>
    %98 = arith.sitofp %97 : vector<128x256xi32> to vector<128x256xf32>
    %c5 = arith.constant 5 : index
    %c0_64 = arith.constant 0 : index
    %99 = vector.load %arg5[%c5, %c0_64] : memref<8x256xf32, #tpu.memory_space<vmem>>, vector<1x256xf32>
    %100 = vector.broadcast %99 : vector<1x256xf32> to vector<128x256xf32>
    %101 = arith.mulf %98, %100 : vector<128x256xf32>
    %c5_65 = arith.constant 5 : index
    %c0_66 = arith.constant 0 : index
    %102 = vector.load %arg6[%c5_65, %c0_66] : memref<8x256xf32, #tpu.memory_space<vmem>>, vector<1x256xf32>
    %103 = vector.broadcast %102 : vector<1x256xf32> to vector<128x256xf32>
    %104 = arith.addf %101, %103 : vector<128x256xf32>
    %105 = arith.truncf %104 : vector<128x256xf32> to vector<128x256xbf16>
    %c0_67 = arith.constant 0 : index
    %c0_68 = arith.constant 0 : index
    %106 = vector.load %arg8[%c0_67, %c0_68] : memref<16x256xf32, #tpu.memory_space<vmem>>, vector<16x256xf32>
    %c0_69 = arith.constant 0 : index
    %c640 = arith.constant 640 : index
    %107 = vector.load %arg3[%c0_69, %c640] : memref<16x1024xbf16, #tpu.memory_space<vmem>>, vector<16x128xbf16>
    %cst_70 = arith.constant dense<0.000000e+00> : vector<16x256xf32>
    %108 = tpu.matmul %107, %105, %cst_70 {dimension_numbers = #tpu.dot_dimension_numbers<[1], [0], [0], [1], [0, 0, 1, 1], [], []>} : vector<16x128xbf16>, vector<128x256xbf16>, vector<16x256xf32> -> vector<16x256xf32>
    %109 = arith.addf %106, %108 : vector<16x256xf32>
    %c0_71 = arith.constant 0 : index
    %c0_72 = arith.constant 0 : index
    %110 = vector.load %arg8[%c0_71, %c0_72] : memref<16x256xf32, #tpu.memory_space<vmem>>, vector<16x256xf32>
    tpu.vector_store %arg8[%c0_71, %c0_72], %109 {strides = array<i32>} : memref<16x256xf32, #tpu.memory_space<vmem>>, vector<16x256xf32>,
    %c0_73 = arith.constant 0 : index
    %c0_74 = arith.constant 0 : index
    %111 = vector.load %arg4[%c0_73, %c0_74] : memref<128x256xi32, #tpu.memory_space<vmem>>, vector<128x256xi32>
    %c24_i32 = arith.constant 24 : i32
    %112 = vector.broadcast %c24_i32 : i32 to vector<128x256xi32>
    %113 = arith.shrsi %111, %112 : vector<128x256xi32>
    %c15_i32_75 = arith.constant 15 : i32
    %114 = vector.broadcast %c15_i32_75 : i32 to vector<128x256xi32>
    %115 = arith.andi %113, %114 : vector<128x256xi32>
    %116 = arith.sitofp %115 : vector<128x256xi32> to vector<128x256xf32>
    %c6 = arith.constant 6 : index
    %c0_76 = arith.constant 0 : index
    %117 = vector.load %arg5[%c6, %c0_76] : memref<8x256xf32, #tpu.memory_space<vmem>>, vector<1x256xf32>
    %118 = vector.broadcast %117 : vector<1x256xf32> to vector<128x256xf32>
    %119 = arith.mulf %116, %118 : vector<128x256xf32>
    %c6_77 = arith.constant 6 : index
    %c0_78 = arith.constant 0 : index
    %120 = vector.load %arg6[%c6_77, %c0_78] : memref<8x256xf32, #tpu.memory_space<vmem>>, vector<1x256xf32>
    %121 = vector.broadcast %120 : vector<1x256xf32> to vector<128x256xf32>
    %122 = arith.addf %119, %121 : vector<128x256xf32>
    %123 = arith.truncf %122 : vector<128x256xf32> to vector<128x256xbf16>
    %c0_79 = arith.constant 0 : index
    %c0_80 = arith.constant 0 : index
    %124 = vector.load %arg8[%c0_79, %c0_80] : memref<16x256xf32, #tpu.memory_space<vmem>>, vector<16x256xf32>
    %c0_81 = arith.constant 0 : index
    %c768 = arith.constant 768 : index
    %125 = vector.load %arg3[%c0_81, %c768] : memref<16x1024xbf16, #tpu.memory_space<vmem>>, vector<16x128xbf16>
    %cst_82 = arith.constant dense<0.000000e+00> : vector<16x256xf32>
    %126 = tpu.matmul %125, %123, %cst_82 {dimension_numbers = #tpu.dot_dimension_numbers<[1], [0], [0], [1], [0, 0, 1, 1], [], []>} : vector<16x128xbf16>, vector<128x256xbf16>, vector<16x256xf32> -> vector<16x256xf32>
    %127 = arith.addf %124, %126 : vector<16x256xf32>
    %c0_83 = arith.constant 0 : index
    %c0_84 = arith.constant 0 : index
    %128 = vector.load %arg8[%c0_83, %c0_84] : memref<16x256xf32, #tpu.memory_space<vmem>>, vector<16x256xf32>
    tpu.vector_store %arg8[%c0_83, %c0_84], %127 {strides = array<i32>} : memref<16x256xf32, #tpu.memory_space<vmem>>, vector<16x256xf32>,
    %c0_85 = arith.constant 0 : index
    %c0_86 = arith.constant 0 : index
    %129 = vector.load %arg4[%c0_85, %c0_86] : memref<128x256xi32, #tpu.memory_space<vmem>>, vector<128x256xi32>
    %c28_i32 = arith.constant 28 : i32
    %130 = vector.broadcast %c28_i32 : i32 to vector<128x256xi32>
    %131 = arith.shrsi %129, %130 : vector<128x256xi32>
    %c15_i32_87 = arith.constant 15 : i32
    %132 = vector.broadcast %c15_i32_87 : i32 to vector<128x256xi32>
    %133 = arith.andi %131, %132 : vector<128x256xi32>
    %134 = arith.sitofp %133 : vector<128x256xi32> to vector<128x256xf32>
    %c7 = arith.constant 7 : index
    %c0_88 = arith.constant 0 : index
    %135 = vector.load %arg5[%c7, %c0_88] : memref<8x256xf32, #tpu.memory_space<vmem>>, vector<1x256xf32>
    %136 = vector.broadcast %135 : vector<1x256xf32> to vector<128x256xf32>
    %137 = arith.mulf %134, %136 : vector<128x256xf32>
    %c7_89 = arith.constant 7 : index
    %c0_90 = arith.constant 0 : index
    %138 = vector.load %arg6[%c7_89, %c0_90] : memref<8x256xf32, #tpu.memory_space<vmem>>, vector<1x256xf32>
    %139 = vector.broadcast %138 : vector<1x256xf32> to vector<128x256xf32>
    %140 = arith.addf %137, %139 : vector<128x256xf32>
    %141 = arith.truncf %140 : vector<128x256xf32> to vector<128x256xbf16>
    %c0_91 = arith.constant 0 : index
    %c0_92 = arith.constant 0 : index
    %142 = vector.load %arg8[%c0_91, %c0_92] : memref<16x256xf32, #tpu.memory_space<vmem>>, vector<16x256xf32>
    %c0_93 = arith.constant 0 : index
    %c896 = arith.constant 896 : index
    %143 = vector.load %arg3[%c0_93, %c896] : memref<16x1024xbf16, #tpu.memory_space<vmem>>, vector<16x128xbf16>
    %cst_94 = arith.constant dense<0.000000e+00> : vector<16x256xf32>
    %144 = tpu.matmul %143, %141, %cst_94 {dimension_numbers = #tpu.dot_dimension_numbers<[1], [0], [0], [1], [0, 0, 1, 1], [], []>} : vector<16x128xbf16>, vector<128x256xbf16>, vector<16x256xf32> -> vector<16x256xf32>
    %145 = arith.addf %142, %144 : vector<16x256xf32>
    %c0_95 = arith.constant 0 : index
    %c0_96 = arith.constant 0 : index
    %146 = vector.load %arg8[%c0_95, %c0_96] : memref<16x256xf32, #tpu.memory_space<vmem>>, vector<16x256xf32>
    tpu.vector_store %arg8[%c0_95, %c0_96], %145 {strides = array<i32>} : memref<16x256xf32, #tpu.memory_space<vmem>>, vector<16x256xf32>,
    %c1_i32 = arith.constant 1 : i32
    %147 = arith.cmpi eq, %arg2, %c1_i32 : i32
    %148 = arith.extui %147 : i1 to i32
    %c0_i32_97 = arith.constant 0 : i32
    %149 = arith.cmpi ne, %148, %c0_i32_97 : i32
    scf.if %149 {
      %c0_98 = arith.constant 0 : index
      %c0_99 = arith.constant 0 : index
      %150 = vector.load %arg8[%c0_98, %c0_99] : memref<16x256xf32, #tpu.memory_space<vmem>>, vector<16x256xf32>
      %151 = arith.truncf %150 : vector<16x256xf32> to vector<16x256xbf16>
      %c0_100 = arith.constant 0 : index
      %c0_101 = arith.constant 0 : index
      %152 = vector.load %arg7[%c0_100, %c0_101] : memref<16x256xbf16, #tpu.memory_space<vmem>>, vector<16x256xbf16>
      tpu.vector_store %arg7[%c0_100, %c0_101], %151 {strides = array<i32>} : memref<16x256xbf16, #tpu.memory_space<vmem>>, vector<16x256xbf16>,
    } else {
    }
    return
  }
  func.func @transform_0(%arg0: i32, %arg1: i32, %arg2: i32) -> (i32, i32) {
    %c0_i32 = arith.constant 0 : i32
    return %arg0, %arg2 : i32, i32
  }
  func.func @transform_1(%arg0: i32, %arg1: i32, %arg2: i32) -> (i32, i32) {
    %c0_i32 = arith.constant 0 : i32
    return %arg2, %arg1 : i32, i32
  }
  func.func @transform_2(%arg0: i32, %arg1: i32, %arg2: i32) -> (i32, i32) {
    %c0_i32 = arith.constant 0 : i32
    return %arg2, %arg1 : i32, i32
  }
  func.func @transform_3(%arg0: i32, %arg1: i32, %arg2: i32) -> (i32, i32) {
    %c0_i32 = arith.constant 0 : i32
    return %arg2, %arg1 : i32, i32
  }
  func.func @transform_4(%arg0: i32, %arg1: i32, %arg2: i32) -> (i32, i32) {
    %c0_i32 = arith.constant 0 : i32
    return %arg0, %arg1 : i32, i32
  }
}

</mosaic_0001>

<llo_original>
// kernel: tpu_custom_call.1
$region0: #{tpu_custom_call.1}
  #allocation0 [shape = 'u32[]', space=smem, size = 0x4, offset = 0x4, fixed_abs, tag = 'smem constant byte address 0x4 - core index']
  #allocation1 [shape = 'u32[144,128]{1,0:T(1,128)}', space=vmem, size = 0x12000, scoped, tag = 'internal scratch']
  #allocation2 [shape = 'f32[16,256]{1,0:T(8,128)}', space=vmem, size = 0x4000, scoped, tag = 'scratch operand']
  %s0 = inlined_call_operand.hbm [shape: bf16[16,2048], index: 0, kind: input, shape index: {}]
  %s1 = inlined_call_operand.hbm [shape: s32[256,768], index: 1, kind: input, shape index: {}]
  %s2 = inlined_call_operand.hbm [shape: f32[16,768], index: 2, kind: input, shape index: {}]
  %s3 = inlined_call_operand.hbm [shape: f32[16,768], index: 3, kind: input, shape index: {}]
  %s4 = inlined_call_operand.hbm [shape: bf16[16,768], index: 4, kind: output, shape index: {}]
  %s5 = sld [smem:[#allocation0]]
  $region73: #{tpu_custom_call.1} parent=0
    _
  %s7 = ssub.s32 1, %s5
  %s8 = scalar_select 0, %s7, %s5
  $region1: #{tpu_custom_call.1} parent=0
    #allocation3 [shape = 'u8[65536]{0}', space=vmem, size = 0x10000, scoped, tag = 'input window, operand 0']
    #allocation4 [shape = 's32[2]{0}', space=sflag, size = 0x8, scoped, tag = 'scoped memory for tpu_custom_call.1']
    #allocation5 [shape = 's32[2]{0}', space=sflag, size = 0x8, scoped, tag = 'scoped memory for tpu_custom_call.1']
    #allocation6 [shape = 'u8[262144]{0}', space=vmem, size = 0x40000, scoped, tag = 'input window, operand 1']
    #allocation7 [shape = 's32[2]{0}', space=sflag, size = 0x8, scoped, tag = 'scoped memory for tpu_custom_call.1']
    #allocation8 [shape = 'u8[16384]{0}', space=vmem, size = 0x4000, scoped, tag = 'input window, operand 2']
    #allocation9 [shape = 'u8[16384]{0}', space=vmem, size = 0x4000, scoped, tag = 'input window, operand 3']
    #allocation10 [shape = 's32[2]{0}', space=sflag, size = 0x8, scoped, tag = 'scoped memory for tpu_custom_call.1']
    #allocation11 [shape = 'u8[16384]{0}', space=vmem, size = 0x4000, scoped, tag = 'output window, operand 0']
    %9 = vsyncpa [#allocation4], 0
    %s10 = scalar_lea.sflag [#allocation4], 1
    %11 = vsyncpa %s10, 0
    %12 = vsyncpa [#allocation7], 0
    %s13 = scalar_lea.sflag [#allocation7], 1
    %14 = vsyncpa %s13, 0
    %15 = vsyncpa [#allocation10], 0
    %s16 = scalar_lea.sflag [#allocation10], 1
    %17 = vsyncpa %s16, 0
    %18 = vsyncpa [#allocation5], 0
    %s19 = scalar_lea.sflag [#allocation5], 1
    %20 = vsyncpa %s19, 0
    loop: start=0, step=1, limit=8
    $region2: #{tpu_custom_call.1} parent=1 // loop_pre_header
      _
    $region3: #{tpu_custom_call.1} parent=1 // loop_header
      %s22 = sphi 0, %s26
      %p23 = scmp.ge.s32.totalorder %s22, 8
      %s29 = sphi 0, %s48
      %s30 = sphi 0, %s44
      %s31 = sphi 0, %s40
      %s32 = sphi 0, %s29
      %s33 = sphi 0, %s30
      %s34 = sphi 0, %s31
      %s35 = sphi 0, %s32
      %s36 = sphi 0, %s33
      %s37 = sphi 0, %s34
      %s53 = sphi 0, %s55
      %s56 = sphi 0, %s53
      %s57 = sphi 0, %s56
      %s73 = sphi 0, %s57
      %s81 = sphi 0, %s83
      %s84 = sphi 0, %s81
      %s85 = sphi 0, %s84
      %s101 = sphi 0, %s85
      %s109 = sphi 0, %s111
      %s112 = sphi 0, %s109
      %s113 = sphi 0, %s112
      %s129 = sphi 0, %s113
      %s137 = sphi 0, %s139
      %s140 = sphi 0, %s137
      %s141 = sphi 0, %s140
      %s157 = sphi 0, %s141
      %s165 = sphi 0, %s167
      %s168 = sphi 0, %s165
      %s169 = sphi 0, %s168
      %s185 = sphi 0, %s169
    $region4: #{tpu_custom_call.1} parent=1 // loop_header_branch
      %25 = sbr.rel (%p23) target = $region8
    $region5: #{tpu_custom_call.1} parent=1 // loop_body
      %s27 = ssub.s32 %s22, 1
      %s28 = ssub.s32 %s22, 2
      %s38 = sadd.s32 1, %s31
      %p39 = scmp.ge.s32.totalorder %s38, 2
      %s40 = scalar_select %p39, 0, %s38
      %s41 = sadd.s32 1, %s30
      %s42 = scalar_select %p39, %s41, %s30
      %p43 = scmp.ge.s32.totalorder %s42, 3
      %s44 = scalar_select %p43, 0, %s42
      %s45 = sadd.s32 1, %s29
      %s46 = scalar_select %p43, %s45, %s29
      %p47 = scmp.ge.s32.totalorder %s46, 1
      %s48 = scalar_select %p47, 0, %s46
      %s49 = ssub.s32 %s29, %s48
      %s50 = ssub.s32 %s31, %s40
      %s51 = sor.u32 %s49, %s50
      %p52 = scmp.eq.s32.totalorder %s51, 0
      %s54 = sadd.s32 %s53, 1
      %s55 = scalar_select %p52, %s53, %s54
      %p58 = pneg %p52
      %p59 = scmp.eq.s32.totalorder %s22, 5
      %p60 = por %p58, %p59
      %p61 = scmp.ne.s32.totalorder %s53, %s56
      %p62 = scmp.eq.s32.totalorder %s22, 0
      %p63 = por %p61, %p62
      %p64 = scmp.ne.s32.totalorder %s53, %s56
      %p65 = scmp.eq.s32.totalorder %s27, 5
      %p66 = por %p64, %p65
      %p67 = scmp.ne.s32.totalorder %s56, %s57
      %p68 = scmp.eq.s32.totalorder %s27, 0
      %p69 = por %p67, %p68
      %p70 = scmp.ne.s32.totalorder %s56, %s57
      %p71 = scmp.eq.s32.totalorder %s28, 5
      %p72 = por %p70, %p71
      %p74 = scmp.ne.s32.totalorder %s57, %s73
      %p75 = scmp.eq.s32.totalorder %s28, 0
      %p76 = por %p74, %p75
      %s77 = ssub.s32 %s31, %s40
      %s78 = ssub.s32 %s30, %s44
      %s79 = sor.u32 %s77, %s78
      %p80 = scmp.eq.s32.totalorder %s79, 0
      %s82 = sadd.s32 %s81, 1
      %s83 = scalar_select %p80, %s81, %s82
      %p86 = pneg %p80
      %p87 = scmp.eq.s32.totalorder %s22, 5
      %p88 = por %p86, %p87
      %p89 = scmp.ne.s32.totalorder %s81, %s84
      %p90 = scmp.eq.s32.totalorder %s22, 0
      %p91 = por %p89, %p90
      %p92 = scmp.ne.s32.totalorder %s81, %s84
      %p93 = scmp.eq.s32.totalorder %s27, 5
      %p94 = por %p92, %p93
      %p95 = scmp.ne.s32.totalorder %s84, %s85
      %p96 = scmp.eq.s32.totalorder %s27, 0
      %p97 = por %p95, %p96
      %p98 = scmp.ne.s32.totalorder %s84, %s85
      %p99 = scmp.eq.s32.totalorder %s28, 5
      %p100 = por %p98, %p99
      %p102 = scmp.ne.s32.totalorder %s85, %s101
      %p103 = scmp.eq.s32.totalorder %s28, 0
      %p104 = por %p102, %p103
      %s105 = ssub.s32 %s31, %s40
      %s106 = ssub.s32 %s30, %s44
      %s107 = sor.u32 %s105, %s106
      %p108 = scmp.eq.s32.totalorder %s107, 0
      %s110 = sadd.s32 %s109, 1
      %s111 = scalar_select %p108, %s109, %s110
      %p114 = pneg %p108
      %p115 = scmp.eq.s32.totalorder %s22, 5
      %p116 = por %p114, %p115
      %p117 = scmp.ne.s32.totalorder %s109, %s112
      %p118 = scmp.eq.s32.totalorder %s22, 0
      %p119 = por %p117, %p118
      %p120 = scmp.ne.s32.totalorder %s109, %s112
      %p121 = scmp.eq.s32.totalorder %s27, 5
      %p122 = por %p120, %p121
      %p123 = scmp.ne.s32.totalorder %s112, %s113
      %p124 = scmp.eq.s32.totalorder %s27, 0
      %p125 = por %p123, %p124
      %p126 = scmp.ne.s32.totalorder %s112, %s113
      %p127 = scmp.eq.s32.totalorder %s28, 5
      %p128 = por %p126, %p127
      %p130 = scmp.ne.s32.totalorder %s113, %s129
      %p131 = scmp.eq.s32.totalorder %s28, 0
      %p132 = por %p130, %p131
      %s133 = ssub.s32 %s31, %s40
      %s134 = ssub.s32 %s30, %s44
      %s135 = sor.u32 %s133, %s134
      %p136 = scmp.eq.s32.totalorder %s135, 0
      %s138 = sadd.s32 %s137, 1
      %s139 = scalar_select %p136, %s137, %s138
      %p142 = pneg %p136
      %p143 = scmp.eq.s32.totalorder %s22, 5
      %p144 = por %p142, %p143
      %p145 = scmp.ne.s32.totalorder %s137, %s140
      %p146 = scmp.eq.s32.totalorder %s22, 0
      %p147 = por %p145, %p146
      %p148 = scmp.ne.s32.totalorder %s137, %s140
      %p149 = scmp.eq.s32.totalorder %s27, 5
      %p150 = por %p148, %p149
      %p151 = scmp.ne.s32.totalorder %s140, %s141
      %p152 = scmp.eq.s32.totalorder %s27, 0
      %p153 = por %p151, %p152
      %p154 = scmp.ne.s32.totalorder %s140, %s141
      %p155 = scmp.eq.s32.totalorder %s28, 5
      %p156 = por %p154, %p155
      %p158 = scmp.ne.s32.totalorder %s141, %s157
      %p159 = scmp.eq.s32.totalorder %s28, 0
      %p160 = por %p158, %p159
      %s161 = ssub.s32 %s29, %s48
      %s162 = ssub.s32 %s30, %s44
      %s163 = sor.u32 %s161, %s162
      %p164 = scmp.eq.s32.totalorder %s163, 0
      %s166 = sadd.s32 %s165, 1
      %s167 = scalar_select %p164, %s165, %s166
      %p170 = pneg %p164
      %p171 = scmp.eq.s32.totalorder %s22, 5
      %p172 = por %p170, %p171
      %p173 = scmp.ne.s32.totalorder %s165, %s168
      %p174 = scmp.eq.s32.totalorder %s22, 0
      %p175 = por %p173, %p174
      %p176 = scmp.ne.s32.totalorder %s165, %s168
      %p177 = scmp.eq.s32.totalorder %s27, 5
      %p178 = por %p176, %p177
      %p179 = scmp.ne.s32.totalorder %s168, %s169
      %p180 = scmp.eq.s32.totalorder %s27, 0
      %p181 = por %p179, %p180
      %p182 = scmp.ne.s32.totalorder %s168, %s169
      %p183 = scmp.eq.s32.totalorder %s28, 5
      %p184 = por %p182, %p183
      %p186 = scmp.ne.s32.totalorder %s169, %s185
      %p187 = scmp.eq.s32.totalorder %s28, 0
      %p188 = por %p186, %p187
      %p189 = scmp.le.s32.totalorder 1, %s22
      %p190 = scmp.lt.s32.totalorder %s22, 7
      %p191 = pnand %p189, %p190
      %p192 = pneg %p191
      // Predicated region
      $region9: #{tpu_custom_call.1} parent=5 // pred_check
        _
      $region10: #{tpu_custom_call.1} parent=5 // pred_check_branch
        %194 = sbr.rel (%p191) target = $region12
      $region11: #{tpu_custom_call.1} parent=5 // pred_region
        %s195 = ssub.s32 %s22, 1
      $region12: #{tpu_custom_call.1} parent=5 // pred_fallthru
        _
      %p196 = scmp.lt.s32.totalorder %s22, 6
      // Predicated region
      $region13: #{tpu_custom_call.1} parent=5 // pred_check
        %p197 = pneg %p196
      $region14: #{tpu_custom_call.1} parent=5 // pred_check_branch
        %199 = sbr.rel (%p197) target = $region16
      $region15: #{tpu_custom_call.1} parent=5 // pred_region
        // Predicated region
        $region17: #{tpu_custom_call.1} parent=15 // pred_check
          %p200 = pneg %p63
        $region18: #{tpu_custom_call.1} parent=15 // pred_check_branch
          %202 = sbr.rel (%p200) target = $region20
        $region19: #{tpu_custom_call.1} parent=15 // pred_region
          %s203 = sand.u32 %s53, 1
          %s204 = scalar_lea.sflag [#allocation4], %s203
          %s205 = sand.u32 %s53, 1
          %s206 = smul.addr %s205, 64
          %s207 = scalar_lea.vmem [#allocation3], %s206
          %s208 = smul.u32 2, %s29
          %s209 = smul.u32 8, %s31
          %s211 = ssub.s32 1024, 1024
          %212 = vsyncadd %s204, %s211
          %s213 = smul.addr %s208, 16
          %s214 = sadd.s32 %s209, %s213
          %s215 = smul.addr %s214, 64
          %s216 = scalar_lea.hbm %s0, %s215
          %s217 = sshll.u32 %s207, 4
          %s218 = int_to_ptr.vmem [resolvable:$true] %s217
          %223 = dma.hbm_to_vmem [thread:$0]  %s216, 1024, %s218, %s204, 1024, 512, 32
        $region20: #{tpu_custom_call.1} parent=15 // pred_fallthru
          _
        // Predicated region
        $region21: #{tpu_custom_call.1} parent=15 // pred_check
          %p224 = pneg %p91
        $region22: #{tpu_custom_call.1} parent=15 // pred_check_branch
          %226 = sbr.rel (%p224) target = $region24
        $region23: #{tpu_custom_call.1} parent=15 // pred_region
          %s227 = sand.u32 %s22, 1
          %s228 = scalar_lea.sflag [#allocation7], %s227
          %s229 = sand.u32 %s81, 1
          %s230 = smul.addr %s229, 256
          %s231 = scalar_lea.vmem [#allocation6], %s230
          %s232 = smul.u32 16, %s31
          %s233 = smul.u32 2, %s30
          %s235 = ssub.s32 4096, 4096
          %236 = vsyncadd %s228, %s235
          %s237 = smul.addr %s232, 6
          %s238 = sadd.s32 %s233, %s237
          %s239 = smul.addr %s238, 128
          %s240 = scalar_lea.hbm %s1, %s239
          %s241 = sshll.u32 %s231, 4
          %s242 = int_to_ptr.vmem [resolvable:$true] %s241
          %247 = dma.hbm_to_vmem [thread:$0]  %s240, 4096, %s242, %s228, 768, 256, 16
        $region24: #{tpu_custom_call.1} parent=15 // pred_fallthru
          _
        // Predicated region
        $region25: #{tpu_custom_call.1} parent=15 // pred_check
          %p248 = pneg %p119
        $region26: #{tpu_custom_call.1} parent=15 // pred_check_branch
          %250 = sbr.rel (%p248) target = $region28
        $region27: #{tpu_custom_call.1} parent=15 // pred_region
          %s251 = sand.u32 %s22, 1
          %s252 = scalar_lea.sflag [#allocation7], %s251
          %s253 = sand.u32 %s109, 1
          %s254 = smul.addr %s253, 16
          %s255 = scalar_lea.vmem [#allocation8], %s254
          %s256 = smul.u32 2, %s30
          %s258 = ssub.s32 256, 256
          %259 = vsyncadd %s252, %s258
          %s260 = smul.addr %s31, 6
          %s261 = sadd.s32 %s256, %s260
          %s262 = smul.addr %s261, 128
          %s263 = scalar_lea.hbm %s2, %s262
          %s265 = sshll.u32 %s255, 4
          %s266 = int_to_ptr.vmem [resolvable:$true] %s265
          %268 = dma.hbm_to_vmem [thread:$0]  %s263, 256, %s266, %s252
        $region28: #{tpu_custom_call.1} parent=15 // pred_fallthru
          _
        // Predicated region
        $region29: #{tpu_custom_call.1} parent=15 // pred_check
          %p269 = pneg %p147
        $region30: #{tpu_custom_call.1} parent=15 // pred_check_branch
          %271 = sbr.rel (%p269) target = $region32
        $region31: #{tpu_custom_call.1} parent=15 // pred_region
          %s272 = sand.u32 %s137, 1
          %s273 = scalar_lea.sflag [#allocation10], %s272
          %s274 = sand.u32 %s137, 1
          %s275 = smul.addr %s274, 16
          %s276 = scalar_lea.vmem [#allocation9], %s275
          %s277 = smul.u32 2, %s30
          %s279 = ssub.s32 256, 256
          %280 = vsyncadd %s273, %s279
          %s281 = smul.addr %s31, 6
          %s282 = sadd.s32 %s277, %s281
          %s283 = smul.addr %s282, 128
          %s284 = scalar_lea.hbm %s3, %s283
          %s286 = sshll.u32 %s276, 4
          %s287 = int_to_ptr.vmem [resolvable:$true] %s286
          %289 = dma.hbm_to_vmem [thread:$0]  %s284, 256, %s287, %s273
        $region32: #{tpu_custom_call.1} parent=15 // pred_fallthru
          _
      $region16: #{tpu_custom_call.1} parent=5 // pred_fallthru
        _
      %p290 = scmp.le.s32.totalorder 1, %s22
      %p291 = scmp.lt.s32.totalorder %s22, 7
      %p292 = pnand %p290, %p291
      %p293 = pneg %p292
      // Predicated region
      $region33: #{tpu_custom_call.1} parent=5 // pred_check
        _
      $region34: #{tpu_custom_call.1} parent=5 // pred_check_branch
        %295 = sbr.rel (%p292) target = $region36
      $region35: #{tpu_custom_call.1} parent=5 // pred_region
        %s296 = ssub.s32 %s22, 1
        %s297 = sand.u32 %s56, 1
        %s298 = scalar_lea.sflag [#allocation4], %s297
        %s299 = sand.u32 %s56, 1
        %s300 = smul.addr %s299, 64
        %s301 = scalar_lea.vmem [#allocation3], %s300
        // Predicated region
        $region37: #{tpu_custom_call.1} parent=35 // pred_check
          %p302 = pneg %p69
        $region38: #{tpu_custom_call.1} parent=35 // pred_check_branch
          %304 = sbr.rel (%p302) target = $region40
        $region39: #{tpu_custom_call.1} parent=35 // pred_region
          %305 = dma.done %s298, 1024
        $region40: #{tpu_custom_call.1} parent=35 // pred_fallthru
          _
        %s306 = sand.u32 %s27, 1
        %s307 = scalar_lea.sflag [#allocation7], %s306
        %s308 = sand.u32 %s84, 1
        %s309 = smul.addr %s308, 256
        %s310 = scalar_lea.vmem [#allocation6], %s309
        // Predicated region
        $region41: #{tpu_custom_call.1} parent=35 // pred_check
          %p311 = pneg %p97
        $region42: #{tpu_custom_call.1} parent=35 // pred_check_branch
          %313 = sbr.rel (%p311) target = $region44
        $region43: #{tpu_custom_call.1} parent=35 // pred_region
          %314 = dma.done %s307, 4096
        $region44: #{tpu_custom_call.1} parent=35 // pred_fallthru
          _
        %s315 = sand.u32 %s27, 1
        %s316 = scalar_lea.sflag [#allocation7], %s315
        %s317 = sand.u32 %s112, 1
        %s318 = smul.addr %s317, 16
        %s319 = scalar_lea.vmem [#allocation8], %s318
        // Predicated region
        $region45: #{tpu_custom_call.1} parent=35 // pred_check
          %p320 = pneg %p125
        $region46: #{tpu_custom_call.1} parent=35 // pred_check_branch
          %322 = sbr.rel (%p320) target = $region48
        $region47: #{tpu_custom_call.1} parent=35 // pred_region
          %323 = dma.done %s316, 256
        $region48: #{tpu_custom_call.1} parent=35 // pred_fallthru
          _
        %s324 = sand.u32 %s140, 1
        %s325 = scalar_lea.sflag [#allocation10], %s324
        %s326 = sand.u32 %s140, 1
        %s327 = smul.addr %s326, 16
        %s328 = scalar_lea.vmem [#allocation9], %s327
        // Predicated region
        $region49: #{tpu_custom_call.1} parent=35 // pred_check
          %p329 = pneg %p153
        $region50: #{tpu_custom_call.1} parent=35 // pred_check_branch
          %331 = sbr.rel (%p329) target = $region52
        $region51: #{tpu_custom_call.1} parent=35 // pred_region
          %332 = dma.done %s325, 256
        $region52: #{tpu_custom_call.1} parent=35 // pred_fallthru
          _
        %s333 = sand.u32 %s56, 1
        %s334 = scalar_lea.sflag [#allocation4], %s333
        %s335 = sand.u32 %s56, 1
        %s336 = smul.addr %s335, 64
        %s337 = scalar_lea.vmem [#allocation3], %s336
        %p338 = pneg %p69
        %p339 = pneg %p66
        %s340 = sand.u32 %s27, 1
        %s341 = scalar_lea.sflag [#allocation7], %s340
        %s342 = sand.u32 %s84, 1
        %s343 = smul.addr %s342, 256
        %s344 = scalar_lea.vmem [#allocation6], %s343
        %p345 = pneg %p97
        %p346 = pneg %p94
        %s347 = sand.u32 %s27, 1
        %s348 = scalar_lea.sflag [#allocation7], %s347
        %s349 = sand.u32 %s112, 1
        %s350 = smul.addr %s349, 16
        %s351 = scalar_lea.vmem [#allocation8], %s350
        %p352 = pneg %p125
        %p353 = pneg %p122
        %s354 = sand.u32 %s140, 1
        %s355 = scalar_lea.sflag [#allocation10], %s354
        %s356 = sand.u32 %s140, 1
        %s357 = smul.addr %s356, 16
        %s358 = scalar_lea.vmem [#allocation9], %s357
        %p359 = pneg %p153
        %p360 = pneg %p150
        %p361 = pneg %p181
        %p362 = pneg %p178
        %s363 = sand.u32 %s168, 1
        %s364 = scalar_lea.sflag [#allocation5], %s363
        %s365 = sand.u32 %s168, 1
        %s366 = smul.addr %s365, 16
        %s367 = scalar_lea.vmem [#allocation11], %s366
        %s368 = smul.u32 2, %s32
        %s369 = smul.u32 8, %s34
        %s370 = smul.u32 16, %s34
        %s371 = smul.u32 2, %s33
        %s372 = smul.u32 2, %s33
        %s373 = smul.u32 2, %s33
        %s374 = smul.u32 2, %s32
        %s375 = smul.u32 2, %s33
        %p377 = scmp.eq.s32.totalorder %s34, 0
        // Predicated region
        $region53: #{tpu_custom_call.1} parent=35 // pred_check
          %p378 = pneg %p377
        $region54: #{tpu_custom_call.1} parent=35 // pred_check_branch
          %380 = sbr.rel (%p378) target = $region56
        $region55: #{tpu_custom_call.1} parent=35 // pred_region
          %381 = vst [vmem:[#allocation2] sm:$0xff] 0.0
          %382 = vst [vmem:[#allocation2 + $0x8] sm:$0xff] 0.0
          %383 = vst [vmem:[#allocation2 + $0x10] sm:$0xff] 0.0
          %384 = vst [vmem:[#allocation2 + $0x18] sm:$0xff] 0.0
        $region56: #{tpu_custom_call.1} parent=35 // pred_fallthru
          _
        %v385 = vld [vmem:[%s310] sm:$0xff]
        %v386 = vld [vmem:[%s310 + $0x8] sm:$0xff]
        %v387 = vld [vmem:[%s310 + $0x10] sm:$0xff]
        %v388 = vld [vmem:[%s310 + $0x18] sm:$0xff]
        %v389 = vld [vmem:[%s310 + $0x20] sm:$0xff]
        %v390 = vld [vmem:[%s310 + $0x28] sm:$0xff]
        %v391 = vld [vmem:[%s310 + $0x30] sm:$0xff]
        %v392 = vld [vmem:[%s310 + $0x38] sm:$0xff]
        %v393 = vld [vmem:[%s310 + $0x40] sm:$0xff]
        %v394 = vld [vmem:[%s310 + $0x48] sm:$0xff]
        %v395 = vld [vmem:[%s310 + $0x50] sm:$0xff]
        %v396 = vld [vmem:[%s310 + $0x58] sm:$0xff]
        %v397 = vld [vmem:[%s310 + $0x60] sm:$0xff]
        %v398 = vld [vmem:[%s310 + $0x68] sm:$0xff]
        %v399 = vld [vmem:[%s310 + $0x70] sm:$0xff]
        %v400 = vld [vmem:[%s310 + $0x78] sm:$0xff]
        %v401 = vld [vmem:[%s310 + $0x80] sm:$0xff]
        %v402 = vld [vmem:[%s310 + $0x88] sm:$0xff]
        %v403 = vld [vmem:[%s310 + $0x90] sm:$0xff]
        %v404 = vld [vmem:[%s310 + $0x98] sm:$0xff]
        %v405 = vld [vmem:[%s310 + $0xa0] sm:$0xff]
        %v406 = vld [vmem:[%s310 + $0xa8] sm:$0xff]
        %v407 = vld [vmem:[%s310 + $0xb0] sm:$0xff]
        %v408 = vld [vmem:[%s310 + $0xb8] sm:$0xff]
        %v409 = vld [vmem:[%s310 + $0xc0] sm:$0xff]
        %v410 = vld [vmem:[%s310 + $0xc8] sm:$0xff]
        %v411 = vld [vmem:[%s310 + $0xd0] sm:$0xff]
        %v412 = vld [vmem:[%s310 + $0xd8] sm:$0xff]
        %v413 = vld [vmem:[%s310 + $0xe0] sm:$0xff]
        %v414 = vld [vmem:[%s310 + $0xe8] sm:$0xff]
        %v415 = vld [vmem:[%s310 + $0xf0] sm:$0xff]
        %v416 = vld [vmem:[%s310 + $0xf8] sm:$0xff]
        %v417 = vand.u32 %v385, 15
        %v418 = vand.u32 %v386, 15
        %v419 = vand.u32 %v387, 15
        %v420 = vand.u32 %v388, 15
        %v421 = vand.u32 %v389, 15
        %v422 = vand.u32 %v390, 15
        %v423 = vand.u32 %v391, 15
        %v424 = vand.u32 %v392, 15
        %v425 = vand.u32 %v393, 15
        %v426 = vand.u32 %v394, 15
        %v427 = vand.u32 %v395, 15
        %v428 = vand.u32 %v396, 15
        %v429 = vand.u32 %v397, 15
        %v430 = vand.u32 %v398, 15
        %v431 = vand.u32 %v399, 15
        %v432 = vand.u32 %v400, 15
        %v433 = vand.u32 %v401, 15
        %v434 = vand.u32 %v402, 15
        %v435 = vand.u32 %v403, 15
        %v436 = vand.u32 %v404, 15
        %v437 = vand.u32 %v405, 15
        %v438 = vand.u32 %v406, 15
        %v439 = vand.u32 %v407, 15
        %v440 = vand.u32 %v408, 15
        %v441 = vand.u32 %v409, 15
        %v442 = vand.u32 %v410, 15
        %v443 = vand.u32 %v411, 15
        %v444 = vand.u32 %v412, 15
        %v445 = vand.u32 %v413, 15
        %v446 = vand.u32 %v414, 15
        %v447 = vand.u32 %v415, 15
        %v448 = vand.u32 %v416, 15
        %v449 = vcvt.s32.f32 %v417
        %v450 = vcvt.s32.f32 %v418
        %v451 = vcvt.s32.f32 %v419
        %v452 = vcvt.s32.f32 %v420
        %v453 = vcvt.s32.f32 %v421
        %v454 = vcvt.s32.f32 %v422
        %v455 = vcvt.s32.f32 %v423
        %v456 = vcvt.s32.f32 %v424
        %v457 = vcvt.s32.f32 %v425
        %v458 = vcvt.s32.f32 %v426
        %v459 = vcvt.s32.f32 %v427
        %v460 = vcvt.s32.f32 %v428
        %v461 = vcvt.s32.f32 %v429
        %v462 = vcvt.s32.f32 %v430
        %v463 = vcvt.s32.f32 %v431
        %v464 = vcvt.s32.f32 %v432
        %v465 = vcvt.s32.f32 %v433
        %v466 = vcvt.s32.f32 %v434
        %v467 = vcvt.s32.f32 %v435
        %v468 = vcvt.s32.f32 %v436
        %v469 = vcvt.s32.f32 %v437
        %v470 = vcvt.s32.f32 %v438
        %v471 = vcvt.s32.f32 %v439
        %v472 = vcvt.s32.f32 %v440
        %v473 = vcvt.s32.f32 %v441
        %v474 = vcvt.s32.f32 %v442
        %v475 = vcvt.s32.f32 %v443
        %v476 = vcvt.s32.f32 %v444
        %v477 = vcvt.s32.f32 %v445
        %v478 = vcvt.s32.f32 %v446
        %v479 = vcvt.s32.f32 %v447
        %v480 = vcvt.s32.f32 %v448
        %v481 = vld [vmem:[%s319] ss:$8 sm:$0x3]
        %v483 = vlaneseq
        %v484 = vshrl.u32 %v483, 7
        %v485 = vsub.s32 0, %v484
        %v486 = vrot.slane %v481, %v485
        %v487 = vlaneseq
        %v488 = vshrl.u32 %v487, 7
        %v489 = vsub.s32 1, %v488
        %v490 = vrot.slane %v481, %v489
        %v493 = vmul.f32 %v449, %v486
        %v494 = vmul.f32 %v450, %v490
        %v495 = vmul.f32 %v451, %v486
        %v496 = vmul.f32 %v452, %v490
        %v497 = vmul.f32 %v453, %v486
        %v498 = vmul.f32 %v454, %v490
        %v499 = vmul.f32 %v455, %v486
        %v500 = vmul.f32 %v456, %v490
        %v501 = vmul.f32 %v457, %v486
        %v502 = vmul.f32 %v458, %v490
        %v503 = vmul.f32 %v459, %v486
        %v504 = vmul.f32 %v460, %v490
        %v505 = vmul.f32 %v461, %v486
        %v506 = vmul.f32 %v462, %v490
        %v507 = vmul.f32 %v463, %v486
        %v508 = vmul.f32 %v464, %v490
        %v509 = vmul.f32 %v465, %v486
        %v510 = vmul.f32 %v466, %v490
        %v511 = vmul.f32 %v467, %v486
        %v512 = vmul.f32 %v468, %v490
        %v513 = vmul.f32 %v469, %v486
        %v514 = vmul.f32 %v470, %v490
        %v515 = vmul.f32 %v471, %v486
        %v516 = vmul.f32 %v472, %v490
        %v517 = vmul.f32 %v473, %v486
        %v518 = vmul.f32 %v474, %v490
        %v519 = vmul.f32 %v475, %v486
        %v520 = vmul.f32 %v476, %v490
        %v521 = vmul.f32 %v477, %v486
        %v522 = vmul.f32 %v478, %v490
        %v523 = vmul.f32 %v479, %v486
        %v524 = vmul.f32 %v480, %v490
        %v525 = vld [vmem:[%s328] ss:$8 sm:$0x3]
        %v527 = vlaneseq
        %v528 = vshrl.u32 %v527, 7
        %v529 = vsub.s32 0, %v528
        %v530 = vrot.slane %v525, %v529
        %v531 = vlaneseq
        %v532 = vshrl.u32 %v531, 7
        %v533 = vsub.s32 1, %v532
        %v534 = vrot.slane %v525, %v533
        %v537 = vadd.f32 %v493, %v530
        %v538 = vadd.f32 %v494, %v534
        %v539 = vadd.f32 %v495, %v530
        %v540 = vadd.f32 %v496, %v534
        %v541 = vadd.f32 %v497, %v530
        %v542 = vadd.f32 %v498, %v534
        %v543 = vadd.f32 %v499, %v530
        %v544 = vadd.f32 %v500, %v534
        %v545 = vadd.f32 %v501, %v530
        %v546 = vadd.f32 %v502, %v534
        %v547 = vadd.f32 %v503, %v530
        %v548 = vadd.f32 %v504, %v534
        %v549 = vadd.f32 %v505, %v530
        %v550 = vadd.f32 %v506, %v534
        %v551 = vadd.f32 %v507, %v530
        %v552 = vadd.f32 %v508, %v534
        %v553 = vadd.f32 %v509, %v530
        %v554 = vadd.f32 %v510, %v534
        %v555 = vadd.f32 %v511, %v530
        %v556 = vadd.f32 %v512, %v534
        %v557 = vadd.f32 %v513, %v530
        %v558 = vadd.f32 %v514, %v534
        %v559 = vadd.f32 %v515, %v530
        %v560 = vadd.f32 %v516, %v534
        %v561 = vadd.f32 %v517, %v530
        %v562 = vadd.f32 %v518, %v534
        %v563 = vadd.f32 %v519, %v530
        %v564 = vadd.f32 %v520, %v534
        %v565 = vadd.f32 %v521, %v530
        %v566 = vadd.f32 %v522, %v534
        %v567 = vadd.f32 %v523, %v530
        %v568 = vadd.f32 %v524, %v534
        %v569 = vpack.c.bf16 %v539, %v537
        %v570 = vpack.c.bf16 %v540, %v538
        %v571 = vpack.c.bf16 %v543, %v541
        %v572 = vpack.c.bf16 %v544, %v542
        %v573 = vpack.c.bf16 %v547, %v545
        %v574 = vpack.c.bf16 %v548, %v546
        %v575 = vpack.c.bf16 %v551, %v549
        %v576 = vpack.c.bf16 %v552, %v550
        %v577 = vpack.c.bf16 %v555, %v553
        %v578 = vpack.c.bf16 %v556, %v554
        %v579 = vpack.c.bf16 %v559, %v557
        %v580 = vpack.c.bf16 %v560, %v558
        %v581 = vpack.c.bf16 %v563, %v561
        %v582 = vpack.c.bf16 %v564, %v562
        %v583 = vpack.c.bf16 %v567, %v565
        %v584 = vpack.c.bf16 %v568, %v566
        %v585 = vld [vmem:[#allocation2] sm:$0xff]
        %v586 = vld [vmem:[#allocation2 + $0x8] sm:$0xff]
        %v587 = vld [vmem:[#allocation2 + $0x10] sm:$0xff]
        %v588 = vld [vmem:[#allocation2 + $0x18] sm:$0xff]
        %v589 = vld [vmem:[%s301] sm:$0xf]
        %v590 = vld [vmem:[%s301 + $0x20] sm:$0xf]
        %v593 = vunpack.c.l.b16 %v589
        %v594 = vunpack.c.l.b16 %v590
        %v595 = vpack.c.b16 %v594, %v593
        %597 = vmatprep.subr.bf16.mxu0 %v570
        %598 = vmatpush1.bf16.msra.mxu0 %v569
        %599 = vmatprep.subr.bf16.mxu0 %v572
        %600 = vmatpush1.bf16.msra.mxu0 %v571
        %601 = vmatprep.subr.bf16.mxu0 %v574
        %602 = vmatpush1.bf16.msra.mxu0 %v573
        %603 = vmatprep.subr.bf16.mxu0 %v576
        %604 = vmatpush1.bf16.msra.mxu0 %v575
        %605 = vmatprep.subr.bf16.mxu0 %v578
        %606 = vmatpush1.bf16.msra.mxu0 %v577
        %607 = vmatprep.subr.bf16.mxu0 %v580
        %608 = vmatpush1.bf16.msra.mxu0 %v579
        %609 = vmatprep.subr.bf16.mxu0 %v582
        %610 = vmatpush1.bf16.msra.mxu0 %v581
        %611 = vmatprep.subr.bf16.mxu0 %v584
        %612 = vmatpush1.bf16.msra.mxu0 %v583
        %613 = vmatprep.subr.bf16.mxu0 0
        %614 = vmatpush1.bf16.msra.mxu0 0
        %615 = vmatprep.subr.bf16.mxu0 0
        %616 = vmatpush1.bf16.msra.mxu0 0
        %617 = vmatprep.subr.bf16.mxu0 0
        %618 = vmatpush1.bf16.msra.mxu0 0
        %619 = vmatprep.subr.bf16.mxu0 0
        %620 = vmatpush1.bf16.msra.mxu0 0
        %621 = vmatprep.subr.bf16.mxu0 0
        %622 = vmatpush1.bf16.msra.mxu0 0
        %623 = vmatprep.subr.bf16.mxu0 0
        %624 = vmatpush1.bf16.msra.mxu0 0
        %625 = vmatprep.subr.bf16.mxu0 0
        %626 = vmatpush1.bf16.msra.mxu0 0
        %627 = vmatprep.subr.bf16.mxu0 0
        %628 = vmatpush1.bf16.msra.mxu0 0
        %629 = vmatprep.mubr.bf16.mxu0 0
        %630 = vmatmul.mubr.bf16.gmra.mrb[0].mxu0 %v595
        %v631 = vpop.f32.mrb[0].mxu0
        %v632 = vadd.f32 0.0, %v631
        %v633 = vpop.f32.mrb[0].mxu0
        %v634 = vadd.f32 0.0, %v633
        %v635 = vpop.f32.mrb[0].mxu0
        %v636 = vadd.f32 0.0, %v635
        %v637 = vpop.f32.mrb[0].mxu0
        %v638 = vadd.f32 0.0, %v637
        %639 = vdwg.mxu0
        %v640 = vadd.f32 %v585, %v632
        %v641 = vadd.f32 %v586, %v634
        %v642 = vadd.f32 %v587, %v636
        %v643 = vadd.f32 %v588, %v638
        %644 = vst [vmem:[#allocation2] sm:$0xff] %v640
        %645 = vst [vmem:[#allocation2 + $0x8] sm:$0xff] %v641
        %646 = vst [vmem:[#allocation2 + $0x10] sm:$0xff] %v642
        %647 = vst [vmem:[#allocation2 + $0x18] sm:$0xff] %v643
        %v648 = vld [vmem:[%s310] sm:$0xff]
        %v649 = vld [vmem:[%s310 + $0x8] sm:$0xff]
        %v650 = vld [vmem:[%s310 + $0x10] sm:$0xff]
        %v651 = vld [vmem:[%s310 + $0x18] sm:$0xff]
        %v652 = vld [vmem:[%s310 + $0x20] sm:$0xff]
        %v653 = vld [vmem:[%s310 + $0x28] sm:$0xff]
        %v654 = vld [vmem:[%s310 + $0x30] sm:$0xff]
        %v655 = vld [vmem:[%s310 + $0x38] sm:$0xff]
        %v656 = vld [vmem:[%s310 + $0x40] sm:$0xff]
        %v657 = vld [vmem:[%s310 + $0x48] sm:$0xff]
        %v658 = vld [vmem:[%s310 + $0x50] sm:$0xff]
        %v659 = vld [vmem:[%s310 + $0x58] sm:$0xff]
        %v660 = vld [vmem:[%s310 + $0x60] sm:$0xff]
        %v661 = vld [vmem:[%s310 + $0x68] sm:$0xff]
        %v662 = vld [vmem:[%s310 + $0x70] sm:$0xff]
        %v663 = vld [vmem:[%s310 + $0x78] sm:$0xff]
        %v664 = vld [vmem:[%s310 + $0x80] sm:$0xff]
        %v665 = vld [vmem:[%s310 + $0x88] sm:$0xff]
        %v666 = vld [vmem:[%s310 + $0x90] sm:$0xff]
        %v667 = vld [vmem:[%s310 + $0x98] sm:$0xff]
        %v668 = vld [vmem:[%s310 + $0xa0] sm:$0xff]
        %v669 = vld [vmem:[%s310 + $0xa8] sm:$0xff]
        %v670 = vld [vmem:[%s310 + $0xb0] sm:$0xff]
        %v671 = vld [vmem:[%s310 + $0xb8] sm:$0xff]
        %v672 = vld [vmem:[%s310 + $0xc0] sm:$0xff]
        %v673 = vld [vmem:[%s310 + $0xc8] sm:$0xff]
        %v674 = vld [vmem:[%s310 + $0xd0] sm:$0xff]
        %v675 = vld [vmem:[%s310 + $0xd8] sm:$0xff]
        %v676 = vld [vmem:[%s310 + $0xe0] sm:$0xff]
        %v677 = vld [vmem:[%s310 + $0xe8] sm:$0xff]
        %v678 = vld [vmem:[%s310 + $0xf0] sm:$0xff]
        %v679 = vld [vmem:[%s310 + $0xf8] sm:$0xff]
        %v680 = vshra.s32 %v648, 4
        %v681 = vshra.s32 %v649, 4
        %v682 = vshra.s32 %v650, 4
        %v683 = vshra.s32 %v651, 4
        %v684 = vshra.s32 %v652, 4
        %v685 = vshra.s32 %v653, 4
        %v686 = vshra.s32 %v654, 4
        %v687 = vshra.s32 %v655, 4
        %v688 = vshra.s32 %v656, 4
        %v689 = vshra.s32 %v657, 4
        %v690 = vshra.s32 %v658, 4
        %v691 = vshra.s32 %v659, 4
        %v692 = vshra.s32 %v660, 4
        %v693 = vshra.s32 %v661, 4
        %v694 = vshra.s32 %v662, 4
        %v695 = vshra.s32 %v663, 4
        %v696 = vshra.s32 %v664, 4
        %v697 = vshra.s32 %v665, 4
        %v698 = vshra.s32 %v666, 4
        %v699 = vshra.s32 %v667, 4
        %v700 = vshra.s32 %v668, 4
        %v701 = vshra.s32 %v669, 4
        %v702 = vshra.s32 %v670, 4
        %v703 = vshra.s32 %v671, 4
        %v704 = vshra.s32 %v672, 4
        %v705 = vshra.s32 %v673, 4
        %v706 = vshra.s32 %v674, 4
        %v707 = vshra.s32 %v675, 4
        %v708 = vshra.s32 %v676, 4
        %v709 = vshra.s32 %v677, 4
        %v710 = vshra.s32 %v678, 4
        %v711 = vshra.s32 %v679, 4
        %v712 = vand.u32 %v680, 15
        %v713 = vand.u32 %v681, 15
        %v714 = vand.u32 %v682, 15
        %v715 = vand.u32 %v683, 15
        %v716 = vand.u32 %v684, 15
        %v717 = vand.u32 %v685, 15
        %v718 = vand.u32 %v686, 15
        %v719 = vand.u32 %v687, 15
        %v720 = vand.u32 %v688, 15
        %v721 = vand.u32 %v689, 15
        %v722 = vand.u32 %v690, 15
        %v723 = vand.u32 %v691, 15
        %v724 = vand.u32 %v692, 15
        %v725 = vand.u32 %v693, 15
        %v726 = vand.u32 %v694, 15
        %v727 = vand.u32 %v695, 15
        %v728 = vand.u32 %v696, 15
        %v729 = vand.u32 %v697, 15
        %v730 = vand.u32 %v698, 15
        %v731 = vand.u32 %v699, 15
        %v732 = vand.u32 %v700, 15
        %v733 = vand.u32 %v701, 15
        %v734 = vand.u32 %v702, 15
        %v735 = vand.u32 %v703, 15
        %v736 = vand.u32 %v704, 15
        %v737 = vand.u32 %v705, 15
        %v738 = vand.u32 %v706, 15
        %v739 = vand.u32 %v707, 15
        %v740 = vand.u32 %v708, 15
        %v741 = vand.u32 %v709, 15
        %v742 = vand.u32 %v710, 15
        %v743 = vand.u32 %v711, 15
        %v744 = vcvt.s32.f32 %v712
        %v745 = vcvt.s32.f32 %v713
        %v746 = vcvt.s32.f32 %v714
        %v747 = vcvt.s32.f32 %v715
        %v748 = vcvt.s32.f32 %v716
        %v749 = vcvt.s32.f32 %v717
        %v750 = vcvt.s32.f32 %v718
        %v751 = vcvt.s32.f32 %v719
        %v752 = vcvt.s32.f32 %v720
        %v753 = vcvt.s32.f32 %v721
        %v754 = vcvt.s32.f32 %v722
        %v755 = vcvt.s32.f32 %v723
        %v756 = vcvt.s32.f32 %v724
        %v757 = vcvt.s32.f32 %v725
        %v758 = vcvt.s32.f32 %v726
        %v759 = vcvt.s32.f32 %v727
        %v760 = vcvt.s32.f32 %v728
        %v761 = vcvt.s32.f32 %v729
        %v762 = vcvt.s32.f32 %v730
        %v763 = vcvt.s32.f32 %v731
        %v764 = vcvt.s32.f32 %v732
        %v765 = vcvt.s32.f32 %v733
        %v766 = vcvt.s32.f32 %v734
        %v767 = vcvt.s32.f32 %v735
        %v768 = vcvt.s32.f32 %v736
        %v769 = vcvt.s32.f32 %v737
        %v770 = vcvt.s32.f32 %v738
        %v771 = vcvt.s32.f32 %v739
        %v772 = vcvt.s32.f32 %v740
        %v773 = vcvt.s32.f32 %v741
        %v774 = vcvt.s32.f32 %v742
        %v775 = vcvt.s32.f32 %v743
        %s776 = scalar_lea.vmem %s319, 1 [#allocation8]
        %v777 = vld [vmem:[%s776] ss:$8 sm:$0x3]
        %v779 = vlaneseq
        %v780 = vshrl.u32 %v779, 7
        %v781 = vsub.s32 0, %v780
        %v782 = vrot.slane %v777, %v781
        %v783 = vlaneseq
        %v784 = vshrl.u32 %v783, 7
        %v785 = vsub.s32 1, %v784
        %v786 = vrot.slane %v777, %v785
        %v789 = vmul.f32 %v744, %v782
        %v790 = vmul.f32 %v745, %v786
        %v791 = vmul.f32 %v746, %v782
        %v792 = vmul.f32 %v747, %v786
        %v793 = vmul.f32 %v748, %v782
        %v794 = vmul.f32 %v749, %v786
        %v795 = vmul.f32 %v750, %v782
        %v796 = vmul.f32 %v751, %v786
        %v797 = vmul.f32 %v752, %v782
        %v798 = vmul.f32 %v753, %v786
        %v799 = vmul.f32 %v754, %v782
        %v800 = vmul.f32 %v755, %v786
        %v801 = vmul.f32 %v756, %v782
        %v802 = vmul.f32 %v757, %v786
        %v803 = vmul.f32 %v758, %v782
        %v804 = vmul.f32 %v759, %v786
        %v805 = vmul.f32 %v760, %v782
        %v806 = vmul.f32 %v761, %v786
        %v807 = vmul.f32 %v762, %v782
        %v808 = vmul.f32 %v763, %v786
        %v809 = vmul.f32 %v764, %v782
        %v810 = vmul.f32 %v765, %v786
        %v811 = vmul.f32 %v766, %v782
        %v812 = vmul.f32 %v767, %v786
        %v813 = vmul.f32 %v768, %v782
        %v814 = vmul.f32 %v769, %v786
        %v815 = vmul.f32 %v770, %v782
        %v816 = vmul.f32 %v771, %v786
        %v817 = vmul.f32 %v772, %v782
        %v818 = vmul.f32 %v773, %v786
        %v819 = vmul.f32 %v774, %v782
        %v820 = vmul.f32 %v775, %v786
        %s821 = scalar_lea.vmem %s328, 1 [#allocation9]
        %v822 = vld [vmem:[%s821] ss:$8 sm:$0x3]
        %v824 = vlaneseq
        %v825 = vshrl.u32 %v824, 7
        %v826 = vsub.s32 0, %v825
        %v827 = vrot.slane %v822, %v826
        %v828 = vlaneseq
        %v829 = vshrl.u32 %v828, 7
        %v830 = vsub.s32 1, %v829
        %v831 = vrot.slane %v822, %v830
        %v834 = vadd.f32 %v789, %v827
        %v835 = vadd.f32 %v790, %v831
        %v836 = vadd.f32 %v791, %v827
        %v837 = vadd.f32 %v792, %v831
        %v838 = vadd.f32 %v793, %v827
        %v839 = vadd.f32 %v794, %v831
        %v840 = vadd.f32 %v795, %v827
        %v841 = vadd.f32 %v796, %v831
        %v842 = vadd.f32 %v797, %v827
        %v843 = vadd.f32 %v798, %v831
        %v844 = vadd.f32 %v799, %v827
        %v845 = vadd.f32 %v800, %v831
        %v846 = vadd.f32 %v801, %v827
        %v847 = vadd.f32 %v802, %v831
        %v848 = vadd.f32 %v803, %v827
        %v849 = vadd.f32 %v804, %v831
        %v850 = vadd.f32 %v805, %v827
        %v851 = vadd.f32 %v806, %v831
        %v852 = vadd.f32 %v807, %v827
        %v853 = vadd.f32 %v808, %v831
        %v854 = vadd.f32 %v809, %v827
        %v855 = vadd.f32 %v810, %v831
        %v856 = vadd.f32 %v811, %v827
        %v857 = vadd.f32 %v812, %v831
        %v858 = vadd.f32 %v813, %v827
        %v859 = vadd.f32 %v814, %v831
        %v860 = vadd.f32 %v815, %v827
        %v861 = vadd.f32 %v816, %v831
        %v862 = vadd.f32 %v817, %v827
        %v863 = vadd.f32 %v818, %v831
        %v864 = vadd.f32 %v819, %v827
        %v865 = vadd.f32 %v820, %v831
        %v866 = vpack.c.bf16 %v836, %v834
        %v867 = vpack.c.bf16 %v837, %v835
        %v868 = vpack.c.bf16 %v840, %v838
        %v869 = vpack.c.bf16 %v841, %v839
        %v870 = vpack.c.bf16 %v844, %v842
        %v871 = vpack.c.bf16 %v845, %v843
        %v872 = vpack.c.bf16 %v848, %v846
        %v873 = vpack.c.bf16 %v849, %v847
        %v874 = vpack.c.bf16 %v852, %v850
        %v875 = vpack.c.bf16 %v853, %v851
        %v876 = vpack.c.bf16 %v856, %v854
        %v877 = vpack.c.bf16 %v857, %v855
        %v878 = vpack.c.bf16 %v860, %v858
        %v879 = vpack.c.bf16 %v861, %v859
        %v880 = vpack.c.bf16 %v864, %v862
        %v881 = vpack.c.bf16 %v865, %v863
        %v882 = vld [vmem:[#allocation2] sm:$0xff]
        %v883 = vld [vmem:[#allocation2 + $0x8] sm:$0xff]
        %v884 = vld [vmem:[#allocation2 + $0x10] sm:$0xff]
        %v885 = vld [vmem:[#allocation2 + $0x18] sm:$0xff]
        %v886 = vld [vmem:[%s301 + $0x4] sm:$0xf]
        %v887 = vld [vmem:[%s301 + $0x24] sm:$0xf]
        %v890 = vunpack.c.l.b16 %v886
        %v891 = vunpack.c.l.b16 %v887
        %v892 = vpack.c.b16 %v891, %v890
        %894 = vmatprep.subr.bf16.mxu0 %v867
        %895 = vmatpush1.bf16.msra.mxu0 %v866
        %896 = vmatprep.subr.bf16.mxu0 %v869
        %897 = vmatpush1.bf16.msra.mxu0 %v868
        %898 = vmatprep.subr.bf16.mxu0 %v871
        %899 = vmatpush1.bf16.msra.mxu0 %v870
        %900 = vmatprep.subr.bf16.mxu0 %v873
        %901 = vmatpush1.bf16.msra.mxu0 %v872
        %902 = vmatprep.subr.bf16.mxu0 %v875
        %903 = vmatpush1.bf16.msra.mxu0 %v874
        %904 = vmatprep.subr.bf16.mxu0 %v877
        %905 = vmatpush1.bf16.msra.mxu0 %v876
        %906 = vmatprep.subr.bf16.mxu0 %v879
        %907 = vmatpush1.bf16.msra.mxu0 %v878
        %908 = vmatprep.subr.bf16.mxu0 %v881
        %909 = vmatpush1.bf16.msra.mxu0 %v880
        %910 = vmatprep.subr.bf16.mxu0 0
        %911 = vmatpush1.bf16.msra.mxu0 0
        %912 = vmatprep.subr.bf16.mxu0 0
        %913 = vmatpush1.bf16.msra.mxu0 0
        %914 = vmatprep.subr.bf16.mxu0 0
        %915 = vmatpush1.bf16.msra.mxu0 0
        %916 = vmatprep.subr.bf16.mxu0 0
        %917 = vmatpush1.bf16.msra.mxu0 0
        %918 = vmatprep.subr.bf16.mxu0 0
        %919 = vmatpush1.bf16.msra.mxu0 0
        %920 = vmatprep.subr.bf16.mxu0 0
        %921 = vmatpush1.bf16.msra.mxu0 0
        %922 = vmatprep.subr.bf16.mxu0 0
        %923 = vmatpush1.bf16.msra.mxu0 0
        %924 = vmatprep.subr.bf16.mxu0 0
        %925 = vmatpush1.bf16.msra.mxu0 0
        %926 = vmatprep.mubr.bf16.mxu0 0
        %927 = vmatmul.mubr.bf16.gmra.mrb[0].mxu0 %v892
        %v928 = vpop.f32.mrb[0].mxu0
        %v929 = vadd.f32 0.0, %v928
        %v930 = vpop.f32.mrb[0].mxu0
        %v931 = vadd.f32 0.0, %v930
        %v932 = vpop.f32.mrb[0].mxu0
        %v933 = vadd.f32 0.0, %v932
        %v934 = vpop.f32.mrb[0].mxu0
        %v935 = vadd.f32 0.0, %v934
        %936 = vdwg.mxu0
        %v937 = vadd.f32 %v882, %v929
        %v938 = vadd.f32 %v883, %v931
        %v939 = vadd.f32 %v884, %v933
        %v940 = vadd.f32 %v885, %v935
        %941 = vst [vmem:[#allocation2] sm:$0xff] %v937
        %942 = vst [vmem:[#allocation2 + $0x8] sm:$0xff] %v938
        %943 = vst [vmem:[#allocation2 + $0x10] sm:$0xff] %v939
        %944 = vst [vmem:[#allocation2 + $0x18] sm:$0xff] %v940
        %v945 = vld [vmem:[%s310] sm:$0xff]
        %v946 = vld [vmem:[%s310 + $0x8] sm:$0xff]
        %v947 = vld [vmem:[%s310 + $0x10] sm:$0xff]
        %v948 = vld [vmem:[%s310 + $0x18] sm:$0xff]
        %v949 = vld [vmem:[%s310 + $0x20] sm:$0xff]
        %v950 = vld [vmem:[%s310 + $0x28] sm:$0xff]
        %v951 = vld [vmem:[%s310 + $0x30] sm:$0xff]
        %v952 = vld [vmem:[%s310 + $0x38] sm:$0xff]
        %v953 = vld [vmem:[%s310 + $0x40] sm:$0xff]
        %v954 = vld [vmem:[%s310 + $0x48] sm:$0xff]
        %v955 = vld [vmem:[%s310 + $0x50] sm:$0xff]
        %v956 = vld [vmem:[%s310 + $0x58] sm:$0xff]
        %v957 = vld [vmem:[%s310 + $0x60] sm:$0xff]
        %v958 = vld [vmem:[%s310 + $0x68] sm:$0xff]
        %v959 = vld [vmem:[%s310 + $0x70] sm:$0xff]
        %v960 = vld [vmem:[%s310 + $0x78] sm:$0xff]
        %v961 = vld [vmem:[%s310 + $0x80] sm:$0xff]
        %v962 = vld [vmem:[%s310 + $0x88] sm:$0xff]
        %v963 = vld [vmem:[%s310 + $0x90] sm:$0xff]
        %v964 = vld [vmem:[%s310 + $0x98] sm:$0xff]
        %v965 = vld [vmem:[%s310 + $0xa0] sm:$0xff]
        %v966 = vld [vmem:[%s310 + $0xa8] sm:$0xff]
        %v967 = vld [vmem:[%s310 + $0xb0] sm:$0xff]
        %v968 = vld [vmem:[%s310 + $0xb8] sm:$0xff]
        %v969 = vld [vmem:[%s310 + $0xc0] sm:$0xff]
        %v970 = vld [vmem:[%s310 + $0xc8] sm:$0xff]
        %v971 = vld [vmem:[%s310 + $0xd0] sm:$0xff]
        %v972 = vld [vmem:[%s310 + $0xd8] sm:$0xff]
        %v973 = vld [vmem:[%s310 + $0xe0] sm:$0xff]
        %v974 = vld [vmem:[%s310 + $0xe8] sm:$0xff]
        %v975 = vld [vmem:[%s310 + $0xf0] sm:$0xff]
        %v976 = vld [vmem:[%s310 + $0xf8] sm:$0xff]
        %v977 = vshra.s32 %v945, 8
        %v978 = vshra.s32 %v946, 8
        %v979 = vshra.s32 %v947, 8
        %v980 = vshra.s32 %v948, 8
        %v981 = vshra.s32 %v949, 8
        %v982 = vshra.s32 %v950, 8
        %v983 = vshra.s32 %v951, 8
        %v984 = vshra.s32 %v952, 8
        %v985 = vshra.s32 %v953, 8
        %v986 = vshra.s32 %v954, 8
        %v987 = vshra.s32 %v955, 8
        %v988 = vshra.s32 %v956, 8
        %v989 = vshra.s32 %v957, 8
        %v990 = vshra.s32 %v958, 8
        %v991 = vshra.s32 %v959, 8
        %v992 = vshra.s32 %v960, 8
        %v993 = vshra.s32 %v961, 8
        %v994 = vshra.s32 %v962, 8
        %v995 = vshra.s32 %v963, 8
        %v996 = vshra.s32 %v964, 8
        %v997 = vshra.s32 %v965, 8
        %v998 = vshra.s32 %v966, 8
        %v999 = vshra.s32 %v967, 8
        %v1000 = vshra.s32 %v968, 8
        %v1001 = vshra.s32 %v969, 8
        %v1002 = vshra.s32 %v970, 8
        %v1003 = vshra.s32 %v971, 8
        %v1004 = vshra.s32 %v972, 8
        %v1005 = vshra.s32 %v973, 8
        %v1006 = vshra.s32 %v974, 8
        %v1007 = vshra.s32 %v975, 8
        %v1008 = vshra.s32 %v976, 8
        %v1009 = vand.u32 %v977, 15
        %v1010 = vand.u32 %v978, 15
        %v1011 = vand.u32 %v979, 15
        %v1012 = vand.u32 %v980, 15
        %v1013 = vand.u32 %v981, 15
        %v1014 = vand.u32 %v982, 15
        %v1015 = vand.u32 %v983, 15
        %v1016 = vand.u32 %v984, 15
        %v1017 = vand.u32 %v985, 15
        %v1018 = vand.u32 %v986, 15
        %v1019 = vand.u32 %v987, 15
        %v1020 = vand.u32 %v988, 15
        %v1021 = vand.u32 %v989, 15
        %v1022 = vand.u32 %v990, 15
        %v1023 = vand.u32 %v991, 15
        %v1024 = vand.u32 %v992, 15
        %v1025 = vand.u32 %v993, 15
        %v1026 = vand.u32 %v994, 15
        %v1027 = vand.u32 %v995, 15
        %v1028 = vand.u32 %v996, 15
        %v1029 = vand.u32 %v997, 15
        %v1030 = vand.u32 %v998, 15
        %v1031 = vand.u32 %v999, 15
        %v1032 = vand.u32 %v1000, 15
        %v1033 = vand.u32 %v1001, 15
        %v1034 = vand.u32 %v1002, 15
        %v1035 = vand.u32 %v1003, 15
        %v1036 = vand.u32 %v1004, 15
        %v1037 = vand.u32 %v1005, 15
        %v1038 = vand.u32 %v1006, 15
        %v1039 = vand.u32 %v1007, 15
        %v1040 = vand.u32 %v1008, 15
        %v1041 = vcvt.s32.f32 %v1009
        %v1042 = vcvt.s32.f32 %v1010
        %v1043 = vcvt.s32.f32 %v1011
        %v1044 = vcvt.s32.f32 %v1012
        %v1045 = vcvt.s32.f32 %v1013
        %v1046 = vcvt.s32.f32 %v1014
        %v1047 = vcvt.s32.f32 %v1015
        %v1048 = vcvt.s32.f32 %v1016
        %v1049 = vcvt.s32.f32 %v1017
        %v1050 = vcvt.s32.f32 %v1018
        %v1051 = vcvt.s32.f32 %v1019
        %v1052 = vcvt.s32.f32 %v1020
        %v1053 = vcvt.s32.f32 %v1021
        %v1054 = vcvt.s32.f32 %v1022
        %v1055 = vcvt.s32.f32 %v1023
        %v1056 = vcvt.s32.f32 %v1024
        %v1057 = vcvt.s32.f32 %v1025
        %v1058 = vcvt.s32.f32 %v1026
        %v1059 = vcvt.s32.f32 %v1027
        %v1060 = vcvt.s32.f32 %v1028
        %v1061 = vcvt.s32.f32 %v1029
        %v1062 = vcvt.s32.f32 %v1030
        %v1063 = vcvt.s32.f32 %v1031
        %v1064 = vcvt.s32.f32 %v1032
        %v1065 = vcvt.s32.f32 %v1033
        %v1066 = vcvt.s32.f32 %v1034
        %v1067 = vcvt.s32.f32 %v1035
        %v1068 = vcvt.s32.f32 %v1036
        %v1069 = vcvt.s32.f32 %v1037
        %v1070 = vcvt.s32.f32 %v1038
        %v1071 = vcvt.s32.f32 %v1039
        %v1072 = vcvt.s32.f32 %v1040
        %s1073 = scalar_lea.vmem %s319, 2 [#allocation8]
        %v1074 = vld [vmem:[%s1073] ss:$8 sm:$0x3]
        %v1076 = vlaneseq
        %v1077 = vshrl.u32 %v1076, 7
        %v1078 = vsub.s32 0, %v1077
        %v1079 = vrot.slane %v1074, %v1078
        %v1080 = vlaneseq
        %v1081 = vshrl.u32 %v1080, 7
        %v1082 = vsub.s32 1, %v1081
        %v1083 = vrot.slane %v1074, %v1082
        %v1086 = vmul.f32 %v1041, %v1079
        %v1087 = vmul.f32 %v1042, %v1083
        %v1088 = vmul.f32 %v1043, %v1079
        %v1089 = vmul.f32 %v1044, %v1083
        %v1090 = vmul.f32 %v1045, %v1079
        %v1091 = vmul.f32 %v1046, %v1083
        %v1092 = vmul.f32 %v1047, %v1079
        %v1093 = vmul.f32 %v1048, %v1083
        %v1094 = vmul.f32 %v1049, %v1079
        %v1095 = vmul.f32 %v1050, %v1083
        %v1096 = vmul.f32 %v1051, %v1079
        %v1097 = vmul.f32 %v1052, %v1083
        %v1098 = vmul.f32 %v1053, %v1079
        %v1099 = vmul.f32 %v1054, %v1083
        %v1100 = vmul.f32 %v1055, %v1079
        %v1101 = vmul.f32 %v1056, %v1083
        %v1102 = vmul.f32 %v1057, %v1079
        %v1103 = vmul.f32 %v1058, %v1083
        %v1104 = vmul.f32 %v1059, %v1079
        %v1105 = vmul.f32 %v1060, %v1083
        %v1106 = vmul.f32 %v1061, %v1079
        %v1107 = vmul.f32 %v1062, %v1083
        %v1108 = vmul.f32 %v1063, %v1079
        %v1109 = vmul.f32 %v1064, %v1083
        %v1110 = vmul.f32 %v1065, %v1079
        %v1111 = vmul.f32 %v1066, %v1083
        %v1112 = vmul.f32 %v1067, %v1079
        %v1113 = vmul.f32 %v1068, %v1083
        %v1114 = vmul.f32 %v1069, %v1079
        %v1115 = vmul.f32 %v1070, %v1083
        %v1116 = vmul.f32 %v1071, %v1079
        %v1117 = vmul.f32 %v1072, %v1083
        %s1118 = scalar_lea.vmem %s328, 2 [#allocation9]
        %v1119 = vld [vmem:[%s1118] ss:$8 sm:$0x3]
        %v1121 = vlaneseq
        %v1122 = vshrl.u32 %v1121, 7
        %v1123 = vsub.s32 0, %v1122
        %v1124 = vrot.slane %v1119, %v1123
        %v1125 = vlaneseq
        %v1126 = vshrl.u32 %v1125, 7
        %v1127 = vsub.s32 1, %v1126
        %v1128 = vrot.slane %v1119, %v1127
        %v1131 = vadd.f32 %v1086, %v1124
        %v1132 = vadd.f32 %v1087, %v1128
        %v1133 = vadd.f32 %v1088, %v1124
        %v1134 = vadd.f32 %v1089, %v1128
        %v1135 = vadd.f32 %v1090, %v1124
        %v1136 = vadd.f32 %v1091, %v1128
        %v1137 = vadd.f32 %v1092, %v1124
        %v1138 = vadd.f32 %v1093, %v1128
        %v1139 = vadd.f32 %v1094, %v1124
        %v1140 = vadd.f32 %v1095, %v1128
        %v1141 = vadd.f32 %v1096, %v1124
        %v1142 = vadd.f32 %v1097, %v1128
        %v1143 = vadd.f32 %v1098, %v1124
        %v1144 = vadd.f32 %v1099, %v1128
        %v1145 = vadd.f32 %v1100, %v1124
        %v1146 = vadd.f32 %v1101, %v1128
        %v1147 = vadd.f32 %v1102, %v1124
        %v1148 = vadd.f32 %v1103, %v1128
        %v1149 = vadd.f32 %v1104, %v1124
        %v1150 = vadd.f32 %v1105, %v1128
        %v1151 = vadd.f32 %v1106, %v1124
        %v1152 = vadd.f32 %v1107, %v1128
        %v1153 = vadd.f32 %v1108, %v1124
        %v1154 = vadd.f32 %v1109, %v1128
        %v1155 = vadd.f32 %v1110, %v1124
        %v1156 = vadd.f32 %v1111, %v1128
        %v1157 = vadd.f32 %v1112, %v1124
        %v1158 = vadd.f32 %v1113, %v1128
        %v1159 = vadd.f32 %v1114, %v1124
        %v1160 = vadd.f32 %v1115, %v1128
        %v1161 = vadd.f32 %v1116, %v1124
        %v1162 = vadd.f32 %v1117, %v1128
        %v1163 = vpack.c.bf16 %v1133, %v1131
        %v1164 = vpack.c.bf16 %v1134, %v1132
        %v1165 = vpack.c.bf16 %v1137, %v1135
        %v1166 = vpack.c.bf16 %v1138, %v1136
        %v1167 = vpack.c.bf16 %v1141, %v1139
        %v1168 = vpack.c.bf16 %v1142, %v1140
        %v1169 = vpack.c.bf16 %v1145, %v1143
        %v1170 = vpack.c.bf16 %v1146, %v1144
        %v1171 = vpack.c.bf16 %v1149, %v1147
        %v1172 = vpack.c.bf16 %v1150, %v1148
        %v1173 = vpack.c.bf16 %v1153, %v1151
        %v1174 = vpack.c.bf16 %v1154, %v1152
        %v1175 = vpack.c.bf16 %v1157, %v1155
        %v1176 = vpack.c.bf16 %v1158, %v1156
        %v1177 = vpack.c.bf16 %v1161, %v1159
        %v1178 = vpack.c.bf16 %v1162, %v1160
        %v1179 = vld [vmem:[#allocation2] sm:$0xff]
        %v1180 = vld [vmem:[#allocation2 + $0x8] sm:$0xff]
        %v1181 = vld [vmem:[#allocation2 + $0x10] sm:$0xff]
        %v1182 = vld [vmem:[#allocation2 + $0x18] sm:$0xff]
        %v1183 = vld [vmem:[%s301 + $0x8] sm:$0xf]
        %v1184 = vld [vmem:[%s301 + $0x28] sm:$0xf]
        %v1187 = vunpack.c.l.b16 %v1183
        %v1188 = vunpack.c.l.b16 %v1184
        %v1189 = vpack.c.b16 %v1188, %v1187
        %1191 = vmatprep.subr.bf16.mxu0 %v1164
        %1192 = vmatpush1.bf16.msra.mxu0 %v1163
        %1193 = vmatprep.subr.bf16.mxu0 %v1166
        %1194 = vmatpush1.bf16.msra.mxu0 %v1165
        %1195 = vmatprep.subr.bf16.mxu0 %v1168
        %1196 = vmatpush1.bf16.msra.mxu0 %v1167
        %1197 = vmatprep.subr.bf16.mxu0 %v1170
        %1198 = vmatpush1.bf16.msra.mxu0 %v1169
        %1199 = vmatprep.subr.bf16.mxu0 %v1172
        %1200 = vmatpush1.bf16.msra.mxu0 %v1171
        %1201 = vmatprep.subr.bf16.mxu0 %v1174
        %1202 = vmatpush1.bf16.msra.mxu0 %v1173
        %1203 = vmatprep.subr.bf16.mxu0 %v1176
        %1204 = vmatpush1.bf16.msra.mxu0 %v1175
        %1205 = vmatprep.subr.bf16.mxu0 %v1178
        %1206 = vmatpush1.bf16.msra.mxu0 %v1177
        %1207 = vmatprep.subr.bf16.mxu0 0
        %1208 = vmatpush1.bf16.msra.mxu0 0
        %1209 = vmatprep.subr.bf16.mxu0 0
        %1210 = vmatpush1.bf16.msra.mxu0 0
        %1211 = vmatprep.subr.bf16.mxu0 0
        %1212 = vmatpush1.bf16.msra.mxu0 0
        %1213 = vmatprep.subr.bf16.mxu0 0
        %1214 = vmatpush1.bf16.msra.mxu0 0
        %1215 = vmatprep.subr.bf16.mxu0 0
        %1216 = vmatpush1.bf16.msra.mxu0 0
        %1217 = vmatprep.subr.bf16.mxu0 0
        %1218 = vmatpush1.bf16.msra.mxu0 0
        %1219 = vmatprep.subr.bf16.mxu0 0
        %1220 = vmatpush1.bf16.msra.mxu0 0
        %1221 = vmatprep.subr.bf16.mxu0 0
        %1222 = vmatpush1.bf16.msra.mxu0 0
        %1223 = vmatprep.mubr.bf16.mxu0 0
        %1224 = vmatmul.mubr.bf16.gmra.mrb[0].mxu0 %v1189
        %v1225 = vpop.f32.mrb[0].mxu0
        %v1226 = vadd.f32 0.0, %v1225
        %v1227 = vpop.f32.mrb[0].mxu0
        %v1228 = vadd.f32 0.0, %v1227
        %v1229 = vpop.f32.mrb[0].mxu0
        %v1230 = vadd.f32 0.0, %v1229
        %v1231 = vpop.f32.mrb[0].mxu0
        %v1232 = vadd.f32 0.0, %v1231
        %1233 = vdwg.mxu0
        %v1234 = vadd.f32 %v1179, %v1226
        %v1235 = vadd.f32 %v1180, %v1228
        %v1236 = vadd.f32 %v1181, %v1230
        %v1237 = vadd.f32 %v1182, %v1232
        %1238 = vst [vmem:[#allocation2] sm:$0xff] %v1234
        %1239 = vst [vmem:[#allocation2 + $0x8] sm:$0xff] %v1235
        %1240 = vst [vmem:[#allocation2 + $0x10] sm:$0xff] %v1236
        %1241 = vst [vmem:[#allocation2 + $0x18] sm:$0xff] %v1237
        %v1242 = vld [vmem:[%s310] sm:$0xff]
        %v1243 = vld [vmem:[%s310 + $0x8] sm:$0xff]
        %v1244 = vld [vmem:[%s310 + $0x10] sm:$0xff]
        %v1245 = vld [vmem:[%s310 + $0x18] sm:$0xff]
        %v1246 = vld [vmem:[%s310 + $0x20] sm:$0xff]
        %v1247 = vld [vmem:[%s310 + $0x28] sm:$0xff]
        %v1248 = vld [vmem:[%s310 + $0x30] sm:$0xff]
        %v1249 = vld [vmem:[%s310 + $0x38] sm:$0xff]
        %v1250 = vld [vmem:[%s310 + $0x40] sm:$0xff]
        %v1251 = vld [vmem:[%s310 + $0x48] sm:$0xff]
        %v1252 = vld [vmem:[%s310 + $0x50] sm:$0xff]
        %v1253 = vld [vmem:[%s310 + $0x58] sm:$0xff]
        %v1254 = vld [vmem:[%s310 + $0x60] sm:$0xff]
        %v1255 = vld [vmem:[%s310 + $0x68] sm:$0xff]
        %v1256 = vld [vmem:[%s310 + $0x70] sm:$0xff]
        %v1257 = vld [vmem:[%s310 + $0x78] sm:$0xff]
        %v1258 = vld [vmem:[%s310 + $0x80] sm:$0xff]
        %v1259 = vld [vmem:[%s310 + $0x88] sm:$0xff]
        %v1260 = vld [vmem:[%s310 + $0x90] sm:$0xff]
        %v1261 = vld [vmem:[%s310 + $0x98] sm:$0xff]
        %v1262 = vld [vmem:[%s310 + $0xa0] sm:$0xff]
        %v1263 = vld [vmem:[%s310 + $0xa8] sm:$0xff]
        %v1264 = vld [vmem:[%s310 + $0xb0] sm:$0xff]
        %v1265 = vld [vmem:[%s310 + $0xb8] sm:$0xff]
        %v1266 = vld [vmem:[%s310 + $0xc0] sm:$0xff]
        %v1267 = vld [vmem:[%s310 + $0xc8] sm:$0xff]
        %v1268 = vld [vmem:[%s310 + $0xd0] sm:$0xff]
        %v1269 = vld [vmem:[%s310 + $0xd8] sm:$0xff]
        %v1270 = vld [vmem:[%s310 + $0xe0] sm:$0xff]
        %v1271 = vld [vmem:[%s310 + $0xe8] sm:$0xff]
        %v1272 = vld [vmem:[%s310 + $0xf0] sm:$0xff]
        %v1273 = vld [vmem:[%s310 + $0xf8] sm:$0xff]
        %v1274 = vshra.s32 %v1242, 12
        %v1275 = vshra.s32 %v1243, 12
        %v1276 = vshra.s32 %v1244, 12
        %v1277 = vshra.s32 %v1245, 12
        %v1278 = vshra.s32 %v1246, 12
        %v1279 = vshra.s32 %v1247, 12
        %v1280 = vshra.s32 %v1248, 12
        %v1281 = vshra.s32 %v1249, 12
        %v1282 = vshra.s32 %v1250, 12
        %v1283 = vshra.s32 %v1251, 12
        %v1284 = vshra.s32 %v1252, 12
        %v1285 = vshra.s32 %v1253, 12
        %v1286 = vshra.s32 %v1254, 12
        %v1287 = vshra.s32 %v1255, 12
        %v1288 = vshra.s32 %v1256, 12
        %v1289 = vshra.s32 %v1257, 12
        %v1290 = vshra.s32 %v1258, 12
        %v1291 = vshra.s32 %v1259, 12
        %v1292 = vshra.s32 %v1260, 12
        %v1293 = vshra.s32 %v1261, 12
        %v1294 = vshra.s32 %v1262, 12
        %v1295 = vshra.s32 %v1263, 12
        %v1296 = vshra.s32 %v1264, 12
        %v1297 = vshra.s32 %v1265, 12
        %v1298 = vshra.s32 %v1266, 12
        %v1299 = vshra.s32 %v1267, 12
        %v1300 = vshra.s32 %v1268, 12
        %v1301 = vshra.s32 %v1269, 12
        %v1302 = vshra.s32 %v1270, 12
        %v1303 = vshra.s32 %v1271, 12
        %v1304 = vshra.s32 %v1272, 12
        %v1305 = vshra.s32 %v1273, 12
        %v1306 = vand.u32 %v1274, 15
        %v1307 = vand.u32 %v1275, 15
        %v1308 = vand.u32 %v1276, 15
        %v1309 = vand.u32 %v1277, 15
        %v1310 = vand.u32 %v1278, 15
        %v1311 = vand.u32 %v1279, 15
        %v1312 = vand.u32 %v1280, 15
        %v1313 = vand.u32 %v1281, 15
        %v1314 = vand.u32 %v1282, 15
        %v1315 = vand.u32 %v1283, 15
        %v1316 = vand.u32 %v1284, 15
        %v1317 = vand.u32 %v1285, 15
        %v1318 = vand.u32 %v1286, 15
        %v1319 = vand.u32 %v1287, 15
        %v1320 = vand.u32 %v1288, 15
        %v1321 = vand.u32 %v1289, 15
        %v1322 = vand.u32 %v1290, 15
        %v1323 = vand.u32 %v1291, 15
        %v1324 = vand.u32 %v1292, 15
        %v1325 = vand.u32 %v1293, 15
        %v1326 = vand.u32 %v1294, 15
        %v1327 = vand.u32 %v1295, 15
        %v1328 = vand.u32 %v1296, 15
        %v1329 = vand.u32 %v1297, 15
        %v1330 = vand.u32 %v1298, 15
        %v1331 = vand.u32 %v1299, 15
        %v1332 = vand.u32 %v1300, 15
        %v1333 = vand.u32 %v1301, 15
        %v1334 = vand.u32 %v1302, 15
        %v1335 = vand.u32 %v1303, 15
        %v1336 = vand.u32 %v1304, 15
        %v1337 = vand.u32 %v1305, 15
        %v1338 = vcvt.s32.f32 %v1306
        %v1339 = vcvt.s32.f32 %v1307
        %v1340 = vcvt.s32.f32 %v1308
        %v1341 = vcvt.s32.f32 %v1309
        %v1342 = vcvt.s32.f32 %v1310
        %v1343 = vcvt.s32.f32 %v1311
        %v1344 = vcvt.s32.f32 %v1312
        %v1345 = vcvt.s32.f32 %v1313
        %v1346 = vcvt.s32.f32 %v1314
        %v1347 = vcvt.s32.f32 %v1315
        %v1348 = vcvt.s32.f32 %v1316
        %v1349 = vcvt.s32.f32 %v1317
        %v1350 = vcvt.s32.f32 %v1318
        %v1351 = vcvt.s32.f32 %v1319
        %v1352 = vcvt.s32.f32 %v1320
        %v1353 = vcvt.s32.f32 %v1321
        %v1354 = vcvt.s32.f32 %v1322
        %v1355 = vcvt.s32.f32 %v1323
        %v1356 = vcvt.s32.f32 %v1324
        %v1357 = vcvt.s32.f32 %v1325
        %v1358 = vcvt.s32.f32 %v1326
        %v1359 = vcvt.s32.f32 %v1327
        %v1360 = vcvt.s32.f32 %v1328
        %v1361 = vcvt.s32.f32 %v1329
        %v1362 = vcvt.s32.f32 %v1330
        %v1363 = vcvt.s32.f32 %v1331
        %v1364 = vcvt.s32.f32 %v1332
        %v1365 = vcvt.s32.f32 %v1333
        %v1366 = vcvt.s32.f32 %v1334
        %v1367 = vcvt.s32.f32 %v1335
        %v1368 = vcvt.s32.f32 %v1336
        %v1369 = vcvt.s32.f32 %v1337
        %s1370 = scalar_lea.vmem %s319, 3 [#allocation8]
        %v1371 = vld [vmem:[%s1370] ss:$8 sm:$0x3]
        %v1373 = vlaneseq
        %v1374 = vshrl.u32 %v1373, 7
        %v1375 = vsub.s32 0, %v1374
        %v1376 = vrot.slane %v1371, %v1375
        %v1377 = vlaneseq
        %v1378 = vshrl.u32 %v1377, 7
        %v1379 = vsub.s32 1, %v1378
        %v1380 = vrot.slane %v1371, %v1379
        %v1383 = vmul.f32 %v1338, %v1376
        %v1384 = vmul.f32 %v1339, %v1380
        %v1385 = vmul.f32 %v1340, %v1376
        %v1386 = vmul.f32 %v1341, %v1380
        %v1387 = vmul.f32 %v1342, %v1376
        %v1388 = vmul.f32 %v1343, %v1380
        %v1389 = vmul.f32 %v1344, %v1376
        %v1390 = vmul.f32 %v1345, %v1380
        %v1391 = vmul.f32 %v1346, %v1376
        %v1392 = vmul.f32 %v1347, %v1380
        %v1393 = vmul.f32 %v1348, %v1376
        %v1394 = vmul.f32 %v1349, %v1380
        %v1395 = vmul.f32 %v1350, %v1376
        %v1396 = vmul.f32 %v1351, %v1380
        %v1397 = vmul.f32 %v1352, %v1376
        %v1398 = vmul.f32 %v1353, %v1380
        %v1399 = vmul.f32 %v1354, %v1376
        %v1400 = vmul.f32 %v1355, %v1380
        %v1401 = vmul.f32 %v1356, %v1376
        %v1402 = vmul.f32 %v1357, %v1380
        %v1403 = vmul.f32 %v1358, %v1376
        %v1404 = vmul.f32 %v1359, %v1380
        %v1405 = vmul.f32 %v1360, %v1376
        %v1406 = vmul.f32 %v1361, %v1380
        %v1407 = vmul.f32 %v1362, %v1376
        %v1408 = vmul.f32 %v1363, %v1380
        %v1409 = vmul.f32 %v1364, %v1376
        %v1410 = vmul.f32 %v1365, %v1380
        %v1411 = vmul.f32 %v1366, %v1376
        %v1412 = vmul.f32 %v1367, %v1380
        %v1413 = vmul.f32 %v1368, %v1376
        %v1414 = vmul.f32 %v1369, %v1380
        %s1415 = scalar_lea.vmem %s328, 3 [#allocation9]
        %v1416 = vld [vmem:[%s1415] ss:$8 sm:$0x3]
        %v1418 = vlaneseq
        %v1419 = vshrl.u32 %v1418, 7
        %v1420 = vsub.s32 0, %v1419
        %v1421 = vrot.slane %v1416, %v1420
        %v1422 = vlaneseq
        %v1423 = vshrl.u32 %v1422, 7
        %v1424 = vsub.s32 1, %v1423
        %v1425 = vrot.slane %v1416, %v1424
        %v1428 = vadd.f32 %v1383, %v1421
        %v1429 = vadd.f32 %v1384, %v1425
        %v1430 = vadd.f32 %v1385, %v1421
        %v1431 = vadd.f32 %v1386, %v1425
        %v1432 = vadd.f32 %v1387, %v1421
        %v1433 = vadd.f32 %v1388, %v1425
        %v1434 = vadd.f32 %v1389, %v1421
        %v1435 = vadd.f32 %v1390, %v1425
        %v1436 = vadd.f32 %v1391, %v1421
        %v1437 = vadd.f32 %v1392, %v1425
        %v1438 = vadd.f32 %v1393, %v1421
        %v1439 = vadd.f32 %v1394, %v1425
        %v1440 = vadd.f32 %v1395, %v1421
        %v1441 = vadd.f32 %v1396, %v1425
        %v1442 = vadd.f32 %v1397, %v1421
        %v1443 = vadd.f32 %v1398, %v1425
        %v1444 = vadd.f32 %v1399, %v1421
        %v1445 = vadd.f32 %v1400, %v1425
        %v1446 = vadd.f32 %v1401, %v1421
        %v1447 = vadd.f32 %v1402, %v1425
        %v1448 = vadd.f32 %v1403, %v1421
        %v1449 = vadd.f32 %v1404, %v1425
        %v1450 = vadd.f32 %v1405, %v1421
        %v1451 = vadd.f32 %v1406, %v1425
        %v1452 = vadd.f32 %v1407, %v1421
        %v1453 = vadd.f32 %v1408, %v1425
        %v1454 = vadd.f32 %v1409, %v1421
        %v1455 = vadd.f32 %v1410, %v1425
        %v1456 = vadd.f32 %v1411, %v1421
        %v1457 = vadd.f32 %v1412, %v1425
        %v1458 = vadd.f32 %v1413, %v1421
        %v1459 = vadd.f32 %v1414, %v1425
        %v1460 = vpack.c.bf16 %v1430, %v1428
        %v1461 = vpack.c.bf16 %v1431, %v1429
        %v1462 = vpack.c.bf16 %v1434, %v1432
        %v1463 = vpack.c.bf16 %v1435, %v1433
        %v1464 = vpack.c.bf16 %v1438, %v1436
        %v1465 = vpack.c.bf16 %v1439, %v1437
        %v1466 = vpack.c.bf16 %v1442, %v1440
        %v1467 = vpack.c.bf16 %v1443, %v1441
        %v1468 = vpack.c.bf16 %v1446, %v1444
        %v1469 = vpack.c.bf16 %v1447, %v1445
        %v1470 = vpack.c.bf16 %v1450, %v1448
        %v1471 = vpack.c.bf16 %v1451, %v1449
        %v1472 = vpack.c.bf16 %v1454, %v1452
        %v1473 = vpack.c.bf16 %v1455, %v1453
        %v1474 = vpack.c.bf16 %v1458, %v1456
        %v1475 = vpack.c.bf16 %v1459, %v1457
        %v1476 = vld [vmem:[#allocation2] sm:$0xff]
        %v1477 = vld [vmem:[#allocation2 + $0x8] sm:$0xff]
        %v1478 = vld [vmem:[#allocation2 + $0x10] sm:$0xff]
        %v1479 = vld [vmem:[#allocation2 + $0x18] sm:$0xff]
        %v1480 = vld [vmem:[%s301 + $0xc] sm:$0xf]
        %v1481 = vld [vmem:[%s301 + $0x2c] sm:$0xf]
        %v1484 = vunpack.c.l.b16 %v1480
        %v1485 = vunpack.c.l.b16 %v1481
        %v1486 = vpack.c.b16 %v1485, %v1484
        %1488 = vmatprep.subr.bf16.mxu0 %v1461
        %1489 = vmatpush1.bf16.msra.mxu0 %v1460
        %1490 = vmatprep.subr.bf16.mxu0 %v1463
        %1491 = vmatpush1.bf16.msra.mxu0 %v1462
        %1492 = vmatprep.subr.bf16.mxu0 %v1465
        %1493 = vmatpush1.bf16.msra.mxu0 %v1464
        %1494 = vmatprep.subr.bf16.mxu0 %v1467
        %1495 = vmatpush1.bf16.msra.mxu0 %v1466
        %1496 = vmatprep.subr.bf16.mxu0 %v1469
        %1497 = vmatpush1.bf16.msra.mxu0 %v1468
        %1498 = vmatprep.subr.bf16.mxu0 %v1471
        %1499 = vmatpush1.bf16.msra.mxu0 %v1470
        %1500 = vmatprep.subr.bf16.mxu0 %v1473
        %1501 = vmatpush1.bf16.msra.mxu0 %v1472
        %1502 = vmatprep.subr.bf16.mxu0 %v1475
        %1503 = vmatpush1.bf16.msra.mxu0 %v1474
        %1504 = vmatprep.subr.bf16.mxu0 0
        %1505 = vmatpush1.bf16.msra.mxu0 0
        %1506 = vmatprep.subr.bf16.mxu0 0
        %1507 = vmatpush1.bf16.msra.mxu0 0
        %1508 = vmatprep.subr.bf16.mxu0 0
        %1509 = vmatpush1.bf16.msra.mxu0 0
        %1510 = vmatprep.subr.bf16.mxu0 0
        %1511 = vmatpush1.bf16.msra.mxu0 0
        %1512 = vmatprep.subr.bf16.mxu0 0
        %1513 = vmatpush1.bf16.msra.mxu0 0
        %1514 = vmatprep.subr.bf16.mxu0 0
        %1515 = vmatpush1.bf16.msra.mxu0 0
        %1516 = vmatprep.subr.bf16.mxu0 0
        %1517 = vmatpush1.bf16.msra.mxu0 0
        %1518 = vmatprep.subr.bf16.mxu0 0
        %1519 = vmatpush1.bf16.msra.mxu0 0
        %1520 = vmatprep.mubr.bf16.mxu0 0
        %1521 = vmatmul.mubr.bf16.gmra.mrb[0].mxu0 %v1486
        %v1522 = vpop.f32.mrb[0].mxu0
        %v1523 = vadd.f32 0.0, %v1522
        %v1524 = vpop.f32.mrb[0].mxu0
        %v1525 = vadd.f32 0.0, %v1524
        %v1526 = vpop.f32.mrb[0].mxu0
        %v1527 = vadd.f32 0.0, %v1526
        %v1528 = vpop.f32.mrb[0].mxu0
        %v1529 = vadd.f32 0.0, %v1528
        %1530 = vdwg.mxu0
        %v1531 = vadd.f32 %v1476, %v1523
        %v1532 = vadd.f32 %v1477, %v1525
        %v1533 = vadd.f32 %v1478, %v1527
        %v1534 = vadd.f32 %v1479, %v1529
        %1535 = vst [vmem:[#allocation2] sm:$0xff] %v1531
        %1536 = vst [vmem:[#allocation2 + $0x8] sm:$0xff] %v1532
        %1537 = vst [vmem:[#allocation2 + $0x10] sm:$0xff] %v1533
        %1538 = vst [vmem:[#allocation2 + $0x18] sm:$0xff] %v1534
        %v1539 = vld [vmem:[%s310] sm:$0xff]
        %v1540 = vld [vmem:[%s310 + $0x8] sm:$0xff]
        %v1541 = vld [vmem:[%s310 + $0x10] sm:$0xff]
        %v1542 = vld [vmem:[%s310 + $0x18] sm:$0xff]
        %v1543 = vld [vmem:[%s310 + $0x20] sm:$0xff]
        %v1544 = vld [vmem:[%s310 + $0x28] sm:$0xff]
        %v1545 = vld [vmem:[%s310 + $0x30] sm:$0xff]
        %v1546 = vld [vmem:[%s310 + $0x38] sm:$0xff]
        %v1547 = vld [vmem:[%s310 + $0x40] sm:$0xff]
        %v1548 = vld [vmem:[%s310 + $0x48] sm:$0xff]
        %v1549 = vld [vmem:[%s310 + $0x50] sm:$0xff]
        %v1550 = vld [vmem:[%s310 + $0x58] sm:$0xff]
        %v1551 = vld [vmem:[%s310 + $0x60] sm:$0xff]
        %v1552 = vld [vmem:[%s310 + $0x68] sm:$0xff]
        %v1553 = vld [vmem:[%s310 + $0x70] sm:$0xff]
        %v1554 = vld [vmem:[%s310 + $0x78] sm:$0xff]
        %v1555 = vld [vmem:[%s310 + $0x80] sm:$0xff]
        %v1556 = vld [vmem:[%s310 + $0x88] sm:$0xff]
        %v1557 = vld [vmem:[%s310 + $0x90] sm:$0xff]
        %v1558 = vld [vmem:[%s310 + $0x98] sm:$0xff]
        %v1559 = vld [vmem:[%s310 + $0xa0] sm:$0xff]
        %v1560 = vld [vmem:[%s310 + $0xa8] sm:$0xff]
        %v1561 = vld [vmem:[%s310 + $0xb0] sm:$0xff]
        %v1562 = vld [vmem:[%s310 + $0xb8] sm:$0xff]
        %v1563 = vld [vmem:[%s310 + $0xc0] sm:$0xff]
        %v1564 = vld [vmem:[%s310 + $0xc8] sm:$0xff]
        %v1565 = vld [vmem:[%s310 + $0xd0] sm:$0xff]
        %v1566 = vld [vmem:[%s310 + $0xd8] sm:$0xff]
        %v1567 = vld [vmem:[%s310 + $0xe0] sm:$0xff]
        %v1568 = vld [vmem:[%s310 + $0xe8] sm:$0xff]
        %v1569 = vld [vmem:[%s310 + $0xf0] sm:$0xff]
        %v1570 = vld [vmem:[%s310 + $0xf8] sm:$0xff]
        %v1571 = vshra.s32 %v1539, 16
        %v1572 = vshra.s32 %v1540, 16
        %v1573 = vshra.s32 %v1541, 16
        %v1574 = vshra.s32 %v1542, 16
        %v1575 = vshra.s32 %v1543, 16
        %v1576 = vshra.s32 %v1544, 16
        %v1577 = vshra.s32 %v1545, 16
        %v1578 = vshra.s32 %v1546, 16
        %v1579 = vshra.s32 %v1547, 16
        %v1580 = vshra.s32 %v1548, 16
        %v1581 = vshra.s32 %v1549, 16
        %v1582 = vshra.s32 %v1550, 16
        %v1583 = vshra.s32 %v1551, 16
        %v1584 = vshra.s32 %v1552, 16
        %v1585 = vshra.s32 %v1553, 16
        %v1586 = vshra.s32 %v1554, 16
        %v1587 = vshra.s32 %v1555, 16
        %v1588 = vshra.s32 %v1556, 16
        %v1589 = vshra.s32 %v1557, 16
        %v1590 = vshra.s32 %v1558, 16
        %v1591 = vshra.s32 %v1559, 16
        %v1592 = vshra.s32 %v1560, 16
        %v1593 = vshra.s32 %v1561, 16
        %v1594 = vshra.s32 %v1562, 16
        %v1595 = vshra.s32 %v1563, 16
        %v1596 = vshra.s32 %v1564, 16
        %v1597 = vshra.s32 %v1565, 16
        %v1598 = vshra.s32 %v1566, 16
        %v1599 = vshra.s32 %v1567, 16
        %v1600 = vshra.s32 %v1568, 16
        %v1601 = vshra.s32 %v1569, 16
        %v1602 = vshra.s32 %v1570, 16
        %v1603 = vand.u32 %v1571, 15
        %v1604 = vand.u32 %v1572, 15
        %v1605 = vand.u32 %v1573, 15
        %v1606 = vand.u32 %v1574, 15
        %v1607 = vand.u32 %v1575, 15
        %v1608 = vand.u32 %v1576, 15
        %v1609 = vand.u32 %v1577, 15
        %v1610 = vand.u32 %v1578, 15
        %v1611 = vand.u32 %v1579, 15
        %v1612 = vand.u32 %v1580, 15
        %v1613 = vand.u32 %v1581, 15
        %v1614 = vand.u32 %v1582, 15
        %v1615 = vand.u32 %v1583, 15
        %v1616 = vand.u32 %v1584, 15
        %v1617 = vand.u32 %v1585, 15
        %v1618 = vand.u32 %v1586, 15
        %v1619 = vand.u32 %v1587, 15
        %v1620 = vand.u32 %v1588, 15
        %v1621 = vand.u32 %v1589, 15
        %v1622 = vand.u32 %v1590, 15
        %v1623 = vand.u32 %v1591, 15
        %v1624 = vand.u32 %v1592, 15
        %v1625 = vand.u32 %v1593, 15
        %v1626 = vand.u32 %v1594, 15
        %v1627 = vand.u32 %v1595, 15
        %v1628 = vand.u32 %v1596, 15
        %v1629 = vand.u32 %v1597, 15
        %v1630 = vand.u32 %v1598, 15
        %v1631 = vand.u32 %v1599, 15
        %v1632 = vand.u32 %v1600, 15
        %v1633 = vand.u32 %v1601, 15
        %v1634 = vand.u32 %v1602, 15
        %v1635 = vcvt.s32.f32 %v1603
        %v1636 = vcvt.s32.f32 %v1604
        %v1637 = vcvt.s32.f32 %v1605
        %v1638 = vcvt.s32.f32 %v1606
        %v1639 = vcvt.s32.f32 %v1607
        %v1640 = vcvt.s32.f32 %v1608
        %v1641 = vcvt.s32.f32 %v1609
        %v1642 = vcvt.s32.f32 %v1610
        %v1643 = vcvt.s32.f32 %v1611
        %v1644 = vcvt.s32.f32 %v1612
        %v1645 = vcvt.s32.f32 %v1613
        %v1646 = vcvt.s32.f32 %v1614
        %v1647 = vcvt.s32.f32 %v1615
        %v1648 = vcvt.s32.f32 %v1616
        %v1649 = vcvt.s32.f32 %v1617
        %v1650 = vcvt.s32.f32 %v1618
        %v1651 = vcvt.s32.f32 %v1619
        %v1652 = vcvt.s32.f32 %v1620
        %v1653 = vcvt.s32.f32 %v1621
        %v1654 = vcvt.s32.f32 %v1622
        %v1655 = vcvt.s32.f32 %v1623
        %v1656 = vcvt.s32.f32 %v1624
        %v1657 = vcvt.s32.f32 %v1625
        %v1658 = vcvt.s32.f32 %v1626
        %v1659 = vcvt.s32.f32 %v1627
        %v1660 = vcvt.s32.f32 %v1628
        %v1661 = vcvt.s32.f32 %v1629
        %v1662 = vcvt.s32.f32 %v1630
        %v1663 = vcvt.s32.f32 %v1631
        %v1664 = vcvt.s32.f32 %v1632
        %v1665 = vcvt.s32.f32 %v1633
        %v1666 = vcvt.s32.f32 %v1634
        %s1667 = scalar_lea.vmem %s319, 4 [#allocation8]
        %v1668 = vld [vmem:[%s1667] ss:$8 sm:$0x3]
        %v1670 = vlaneseq
        %v1671 = vshrl.u32 %v1670, 7
        %v1672 = vsub.s32 0, %v1671
        %v1673 = vrot.slane %v1668, %v1672
        %v1674 = vlaneseq
        %v1675 = vshrl.u32 %v1674, 7
        %v1676 = vsub.s32 1, %v1675
        %v1677 = vrot.slane %v1668, %v1676
        %v1680 = vmul.f32 %v1635, %v1673
        %v1681 = vmul.f32 %v1636, %v1677
        %v1682 = vmul.f32 %v1637, %v1673
        %v1683 = vmul.f32 %v1638, %v1677
        %v1684 = vmul.f32 %v1639, %v1673
        %v1685 = vmul.f32 %v1640, %v1677
        %v1686 = vmul.f32 %v1641, %v1673
        %v1687 = vmul.f32 %v1642, %v1677
        %v1688 = vmul.f32 %v1643, %v1673
        %v1689 = vmul.f32 %v1644, %v1677
        %v1690 = vmul.f32 %v1645, %v1673
        %v1691 = vmul.f32 %v1646, %v1677
        %v1692 = vmul.f32 %v1647, %v1673
        %v1693 = vmul.f32 %v1648, %v1677
        %v1694 = vmul.f32 %v1649, %v1673
        %v1695 = vmul.f32 %v1650, %v1677
        %v1696 = vmul.f32 %v1651, %v1673
        %v1697 = vmul.f32 %v1652, %v1677
        %v1698 = vmul.f32 %v1653, %v1673
        %v1699 = vmul.f32 %v1654, %v1677
        %v1700 = vmul.f32 %v1655, %v1673
        %v1701 = vmul.f32 %v1656, %v1677
        %v1702 = vmul.f32 %v1657, %v1673
        %v1703 = vmul.f32 %v1658, %v1677
        %v1704 = vmul.f32 %v1659, %v1673
        %v1705 = vmul.f32 %v1660, %v1677
        %v1706 = vmul.f32 %v1661, %v1673
        %v1707 = vmul.f32 %v1662, %v1677
        %v1708 = vmul.f32 %v1663, %v1673
        %v1709 = vmul.f32 %v1664, %v1677
        %v1710 = vmul.f32 %v1665, %v1673
        %v1711 = vmul.f32 %v1666, %v1677
        %s1712 = scalar_lea.vmem %s328, 4 [#allocation9]
        %v1713 = vld [vmem:[%s1712] ss:$8 sm:$0x3]
        %v1715 = vlaneseq
        %v1716 = vshrl.u32 %v1715, 7
        %v1717 = vsub.s32 0, %v1716
        %v1718 = vrot.slane %v1713, %v1717
        %v1719 = vlaneseq
        %v1720 = vshrl.u32 %v1719, 7
        %v1721 = vsub.s32 1, %v1720
        %v1722 = vrot.slane %v1713, %v1721
        %v1725 = vadd.f32 %v1680, %v1718
        %v1726 = vadd.f32 %v1681, %v1722
        %v1727 = vadd.f32 %v1682, %v1718
        %v1728 = vadd.f32 %v1683, %v1722
        %v1729 = vadd.f32 %v1684, %v1718
        %v1730 = vadd.f32 %v1685, %v1722
        %v1731 = vadd.f32 %v1686, %v1718
        %v1732 = vadd.f32 %v1687, %v1722
        %v1733 = vadd.f32 %v1688, %v1718
        %v1734 = vadd.f32 %v1689, %v1722
        %v1735 = vadd.f32 %v1690, %v1718
        %v1736 = vadd.f32 %v1691, %v1722
        %v1737 = vadd.f32 %v1692, %v1718
        %v1738 = vadd.f32 %v1693, %v1722
        %v1739 = vadd.f32 %v1694, %v1718
        %v1740 = vadd.f32 %v1695, %v1722
        %v1741 = vadd.f32 %v1696, %v1718
        %v1742 = vadd.f32 %v1697, %v1722
        %v1743 = vadd.f32 %v1698, %v1718
        %v1744 = vadd.f32 %v1699, %v1722
        %v1745 = vadd.f32 %v1700, %v1718
        %v1746 = vadd.f32 %v1701, %v1722
        %v1747 = vadd.f32 %v1702, %v1718
        %v1748 = vadd.f32 %v1703, %v1722
        %v1749 = vadd.f32 %v1704, %v1718
        %v1750 = vadd.f32 %v1705, %v1722
        %v1751 = vadd.f32 %v1706, %v1718
        %v1752 = vadd.f32 %v1707, %v1722
        %v1753 = vadd.f32 %v1708, %v1718
        %v1754 = vadd.f32 %v1709, %v1722
        %v1755 = vadd.f32 %v1710, %v1718
        %v1756 = vadd.f32 %v1711, %v1722
        %v1757 = vpack.c.bf16 %v1727, %v1725
        %v1758 = vpack.c.bf16 %v1728, %v1726
        %v1759 = vpack.c.bf16 %v1731, %v1729
        %v1760 = vpack.c.bf16 %v1732, %v1730
        %v1761 = vpack.c.bf16 %v1735, %v1733
        %v1762 = vpack.c.bf16 %v1736, %v1734
        %v1763 = vpack.c.bf16 %v1739, %v1737
        %v1764 = vpack.c.bf16 %v1740, %v1738
        %v1765 = vpack.c.bf16 %v1743, %v1741
        %v1766 = vpack.c.bf16 %v1744, %v1742
        %v1767 = vpack.c.bf16 %v1747, %v1745
        %v1768 = vpack.c.bf16 %v1748, %v1746
        %v1769 = vpack.c.bf16 %v1751, %v1749
        %v1770 = vpack.c.bf16 %v1752, %v1750
        %v1771 = vpack.c.bf16 %v1755, %v1753
        %v1772 = vpack.c.bf16 %v1756, %v1754
        %v1773 = vld [vmem:[#allocation2] sm:$0xff]
        %v1774 = vld [vmem:[#allocation2 + $0x8] sm:$0xff]
        %v1775 = vld [vmem:[#allocation2 + $0x10] sm:$0xff]
        %v1776 = vld [vmem:[#allocation2 + $0x18] sm:$0xff]
        %v1777 = vld [vmem:[%s301 + $0x10] sm:$0xf]
        %v1778 = vld [vmem:[%s301 + $0x30] sm:$0xf]
        %v1781 = vunpack.c.l.b16 %v1777
        %v1782 = vunpack.c.l.b16 %v1778
        %v1783 = vpack.c.b16 %v1782, %v1781
        %1785 = vmatprep.subr.bf16.mxu0 %v1758
        %1786 = vmatpush1.bf16.msra.mxu0 %v1757
        %1787 = vmatprep.subr.bf16.mxu0 %v1760
        %1788 = vmatpush1.bf16.msra.mxu0 %v1759
        %1789 = vmatprep.subr.bf16.mxu0 %v1762
        %1790 = vmatpush1.bf16.msra.mxu0 %v1761
        %1791 = vmatprep.subr.bf16.mxu0 %v1764
        %1792 = vmatpush1.bf16.msra.mxu0 %v1763
        %1793 = vmatprep.subr.bf16.mxu0 %v1766
        %1794 = vmatpush1.bf16.msra.mxu0 %v1765
        %1795 = vmatprep.subr.bf16.mxu0 %v1768
        %1796 = vmatpush1.bf16.msra.mxu0 %v1767
        %1797 = vmatprep.subr.bf16.mxu0 %v1770
        %1798 = vmatpush1.bf16.msra.mxu0 %v1769
        %1799 = vmatprep.subr.bf16.mxu0 %v1772
        %1800 = vmatpush1.bf16.msra.mxu0 %v1771
        %1801 = vmatprep.subr.bf16.mxu0 0
        %1802 = vmatpush1.bf16.msra.mxu0 0
        %1803 = vmatprep.subr.bf16.mxu0 0
        %1804 = vmatpush1.bf16.msra.mxu0 0
        %1805 = vmatprep.subr.bf16.mxu0 0
        %1806 = vmatpush1.bf16.msra.mxu0 0
        %1807 = vmatprep.subr.bf16.mxu0 0
        %1808 = vmatpush1.bf16.msra.mxu0 0
        %1809 = vmatprep.subr.bf16.mxu0 0
        %1810 = vmatpush1.bf16.msra.mxu0 0
        %1811 = vmatprep.subr.bf16.mxu0 0
        %1812 = vmatpush1.bf16.msra.mxu0 0
        %1813 = vmatprep.subr.bf16.mxu0 0
        %1814 = vmatpush1.bf16.msra.mxu0 0
        %1815 = vmatprep.subr.bf16.mxu0 0
        %1816 = vmatpush1.bf16.msra.mxu0 0
        %1817 = vmatprep.mubr.bf16.mxu0 0
        %1818 = vmatmul.mubr.bf16.gmra.mrb[0].mxu0 %v1783
        %v1819 = vpop.f32.mrb[0].mxu0
        %v1820 = vadd.f32 0.0, %v1819
        %v1821 = vpop.f32.mrb[0].mxu0
        %v1822 = vadd.f32 0.0, %v1821
        %v1823 = vpop.f32.mrb[0].mxu0
        %v1824 = vadd.f32 0.0, %v1823
        %v1825 = vpop.f32.mrb[0].mxu0
        %v1826 = vadd.f32 0.0, %v1825
        %1827 = vdwg.mxu0
        %v1828 = vadd.f32 %v1773, %v1820
        %v1829 = vadd.f32 %v1774, %v1822
        %v1830 = vadd.f32 %v1775, %v1824
        %v1831 = vadd.f32 %v1776, %v1826
        %1832 = vst [vmem:[#allocation2] sm:$0xff] %v1828
        %1833 = vst [vmem:[#allocation2 + $0x8] sm:$0xff] %v1829
        %1834 = vst [vmem:[#allocation2 + $0x10] sm:$0xff] %v1830
        %1835 = vst [vmem:[#allocation2 + $0x18] sm:$0xff] %v1831
        %v1836 = vld [vmem:[%s310] sm:$0xff]
        %v1837 = vld [vmem:[%s310 + $0x8] sm:$0xff]
        %v1838 = vld [vmem:[%s310 + $0x10] sm:$0xff]
        %v1839 = vld [vmem:[%s310 + $0x18] sm:$0xff]
        %v1840 = vld [vmem:[%s310 + $0x20] sm:$0xff]
        %v1841 = vld [vmem:[%s310 + $0x28] sm:$0xff]
        %v1842 = vld [vmem:[%s310 + $0x30] sm:$0xff]
        %v1843 = vld [vmem:[%s310 + $0x38] sm:$0xff]
        %v1844 = vld [vmem:[%s310 + $0x40] sm:$0xff]
        %v1845 = vld [vmem:[%s310 + $0x48] sm:$0xff]
        %v1846 = vld [vmem:[%s310 + $0x50] sm:$0xff]
        %v1847 = vld [vmem:[%s310 + $0x58] sm:$0xff]
        %v1848 = vld [vmem:[%s310 + $0x60] sm:$0xff]
        %v1849 = vld [vmem:[%s310 + $0x68] sm:$0xff]
        %v1850 = vld [vmem:[%s310 + $0x70] sm:$0xff]
        %v1851 = vld [vmem:[%s310 + $0x78] sm:$0xff]
        %v1852 = vld [vmem:[%s310 + $0x80] sm:$0xff]
        %v1853 = vld [vmem:[%s310 + $0x88] sm:$0xff]
        %v1854 = vld [vmem:[%s310 + $0x90] sm:$0xff]
        %v1855 = vld [vmem:[%s310 + $0x98] sm:$0xff]
        %v1856 = vld [vmem:[%s310 + $0xa0] sm:$0xff]
        %v1857 = vld [vmem:[%s310 + $0xa8] sm:$0xff]
        %v1858 = vld [vmem:[%s310 + $0xb0] sm:$0xff]
        %v1859 = vld [vmem:[%s310 + $0xb8] sm:$0xff]
        %v1860 = vld [vmem:[%s310 + $0xc0] sm:$0xff]
        %v1861 = vld [vmem:[%s310 + $0xc8] sm:$0xff]
        %v1862 = vld [vmem:[%s310 + $0xd0] sm:$0xff]
        %v1863 = vld [vmem:[%s310 + $0xd8] sm:$0xff]
        %v1864 = vld [vmem:[%s310 + $0xe0] sm:$0xff]
        %v1865 = vld [vmem:[%s310 + $0xe8] sm:$0xff]
        %v1866 = vld [vmem:[%s310 + $0xf0] sm:$0xff]
        %v1867 = vld [vmem:[%s310 + $0xf8] sm:$0xff]
        %v1868 = vshra.s32 %v1836, 20
        %v1869 = vshra.s32 %v1837, 20
        %v1870 = vshra.s32 %v1838, 20
        %v1871 = vshra.s32 %v1839, 20
        %v1872 = vshra.s32 %v1840, 20
        %v1873 = vshra.s32 %v1841, 20
        %v1874 = vshra.s32 %v1842, 20
        %v1875 = vshra.s32 %v1843, 20
        %v1876 = vshra.s32 %v1844, 20
        %v1877 = vshra.s32 %v1845, 20
        %v1878 = vshra.s32 %v1846, 20
        %v1879 = vshra.s32 %v1847, 20
        %v1880 = vshra.s32 %v1848, 20
        %v1881 = vshra.s32 %v1849, 20
        %v1882 = vshra.s32 %v1850, 20
        %v1883 = vshra.s32 %v1851, 20
        %v1884 = vshra.s32 %v1852, 20
        %v1885 = vshra.s32 %v1853, 20
        %v1886 = vshra.s32 %v1854, 20
        %v1887 = vshra.s32 %v1855, 20
        %v1888 = vshra.s32 %v1856, 20
        %v1889 = vshra.s32 %v1857, 20
        %v1890 = vshra.s32 %v1858, 20
        %v1891 = vshra.s32 %v1859, 20
        %v1892 = vshra.s32 %v1860, 20
        %v1893 = vshra.s32 %v1861, 20
        %v1894 = vshra.s32 %v1862, 20
        %v1895 = vshra.s32 %v1863, 20
        %v1896 = vshra.s32 %v1864, 20
        %v1897 = vshra.s32 %v1865, 20
        %v1898 = vshra.s32 %v1866, 20
        %v1899 = vshra.s32 %v1867, 20
        %v1900 = vand.u32 %v1868, 15
        %v1901 = vand.u32 %v1869, 15
        %v1902 = vand.u32 %v1870, 15
        %v1903 = vand.u32 %v1871, 15
        %v1904 = vand.u32 %v1872, 15
        %v1905 = vand.u32 %v1873, 15
        %v1906 = vand.u32 %v1874, 15
        %v1907 = vand.u32 %v1875, 15
        %v1908 = vand.u32 %v1876, 15
        %v1909 = vand.u32 %v1877, 15
        %v1910 = vand.u32 %v1878, 15
        %v1911 = vand.u32 %v1879, 15
        %v1912 = vand.u32 %v1880, 15
        %v1913 = vand.u32 %v1881, 15
        %v1914 = vand.u32 %v1882, 15
        %v1915 = vand.u32 %v1883, 15
        %v1916 = vand.u32 %v1884, 15
        %v1917 = vand.u32 %v1885, 15
        %v1918 = vand.u32 %v1886, 15
        %v1919 = vand.u32 %v1887, 15
        %v1920 = vand.u32 %v1888, 15
        %v1921 = vand.u32 %v1889, 15
        %v1922 = vand.u32 %v1890, 15
        %v1923 = vand.u32 %v1891, 15
        %v1924 = vand.u32 %v1892, 15
        %v1925 = vand.u32 %v1893, 15
        %v1926 = vand.u32 %v1894, 15
        %v1927 = vand.u32 %v1895, 15
        %v1928 = vand.u32 %v1896, 15
        %v1929 = vand.u32 %v1897, 15
        %v1930 = vand.u32 %v1898, 15
        %v1931 = vand.u32 %v1899, 15
        %v1932 = vcvt.s32.f32 %v1900
        %v1933 = vcvt.s32.f32 %v1901
        %v1934 = vcvt.s32.f32 %v1902
        %v1935 = vcvt.s32.f32 %v1903
        %v1936 = vcvt.s32.f32 %v1904
        %v1937 = vcvt.s32.f32 %v1905
        %v1938 = vcvt.s32.f32 %v1906
        %v1939 = vcvt.s32.f32 %v1907
        %v1940 = vcvt.s32.f32 %v1908
        %v1941 = vcvt.s32.f32 %v1909
        %v1942 = vcvt.s32.f32 %v1910
        %v1943 = vcvt.s32.f32 %v1911
        %v1944 = vcvt.s32.f32 %v1912
        %v1945 = vcvt.s32.f32 %v1913
        %v1946 = vcvt.s32.f32 %v1914
        %v1947 = vcvt.s32.f32 %v1915
        %v1948 = vcvt.s32.f32 %v1916
        %v1949 = vcvt.s32.f32 %v1917
        %v1950 = vcvt.s32.f32 %v1918
        %v1951 = vcvt.s32.f32 %v1919
        %v1952 = vcvt.s32.f32 %v1920
        %v1953 = vcvt.s32.f32 %v1921
        %v1954 = vcvt.s32.f32 %v1922
        %v1955 = vcvt.s32.f32 %v1923
        %v1956 = vcvt.s32.f32 %v1924
        %v1957 = vcvt.s32.f32 %v1925
        %v1958 = vcvt.s32.f32 %v1926
        %v1959 = vcvt.s32.f32 %v1927
        %v1960 = vcvt.s32.f32 %v1928
        %v1961 = vcvt.s32.f32 %v1929
        %v1962 = vcvt.s32.f32 %v1930
        %v1963 = vcvt.s32.f32 %v1931
        %s1964 = scalar_lea.vmem %s319, 5 [#allocation8]
        %v1965 = vld [vmem:[%s1964] ss:$8 sm:$0x3]
        %v1967 = vlaneseq
        %v1968 = vshrl.u32 %v1967, 7
        %v1969 = vsub.s32 0, %v1968
        %v1970 = vrot.slane %v1965, %v1969
        %v1971 = vlaneseq
        %v1972 = vshrl.u32 %v1971, 7
        %v1973 = vsub.s32 1, %v1972
        %v1974 = vrot.slane %v1965, %v1973
        %v1977 = vmul.f32 %v1932, %v1970
        %v1978 = vmul.f32 %v1933, %v1974
        %v1979 = vmul.f32 %v1934, %v1970
        %v1980 = vmul.f32 %v1935, %v1974
        %v1981 = vmul.f32 %v1936, %v1970
        %v1982 = vmul.f32 %v1937, %v1974
        %v1983 = vmul.f32 %v1938, %v1970
        %v1984 = vmul.f32 %v1939, %v1974
        %v1985 = vmul.f32 %v1940, %v1970
        %v1986 = vmul.f32 %v1941, %v1974
        %v1987 = vmul.f32 %v1942, %v1970
        %v1988 = vmul.f32 %v1943, %v1974
        %v1989 = vmul.f32 %v1944, %v1970
        %v1990 = vmul.f32 %v1945, %v1974
        %v1991 = vmul.f32 %v1946, %v1970
        %v1992 = vmul.f32 %v1947, %v1974
        %v1993 = vmul.f32 %v1948, %v1970
        %v1994 = vmul.f32 %v1949, %v1974
        %v1995 = vmul.f32 %v1950, %v1970
        %v1996 = vmul.f32 %v1951, %v1974
        %v1997 = vmul.f32 %v1952, %v1970
        %v1998 = vmul.f32 %v1953, %v1974
        %v1999 = vmul.f32 %v1954, %v1970
        %v2000 = vmul.f32 %v1955, %v1974
        %v2001 = vmul.f32 %v1956, %v1970
        %v2002 = vmul.f32 %v1957, %v1974
        %v2003 = vmul.f32 %v1958, %v1970
        %v2004 = vmul.f32 %v1959, %v1974
        %v2005 = vmul.f32 %v1960, %v1970
        %v2006 = vmul.f32 %v1961, %v1974
        %v2007 = vmul.f32 %v1962, %v1970
        %v2008 = vmul.f32 %v1963, %v1974
        %s2009 = scalar_lea.vmem %s328, 5 [#allocation9]
        %v2010 = vld [vmem:[%s2009] ss:$8 sm:$0x3]
        %v2012 = vlaneseq
        %v2013 = vshrl.u32 %v2012, 7
        %v2014 = vsub.s32 0, %v2013
        %v2015 = vrot.slane %v2010, %v2014
        %v2016 = vlaneseq
        %v2017 = vshrl.u32 %v2016, 7
        %v2018 = vsub.s32 1, %v2017
        %v2019 = vrot.slane %v2010, %v2018
        %v2022 = vadd.f32 %v1977, %v2015
        %v2023 = vadd.f32 %v1978, %v2019
        %v2024 = vadd.f32 %v1979, %v2015
        %v2025 = vadd.f32 %v1980, %v2019
        %v2026 = vadd.f32 %v1981, %v2015
        %v2027 = vadd.f32 %v1982, %v2019
        %v2028 = vadd.f32 %v1983, %v2015
        %v2029 = vadd.f32 %v1984, %v2019
        %v2030 = vadd.f32 %v1985, %v2015
        %v2031 = vadd.f32 %v1986, %v2019
        %v2032 = vadd.f32 %v1987, %v2015
        %v2033 = vadd.f32 %v1988, %v2019
        %v2034 = vadd.f32 %v1989, %v2015
        %v2035 = vadd.f32 %v1990, %v2019
        %v2036 = vadd.f32 %v1991, %v2015
        %v2037 = vadd.f32 %v1992, %v2019
        %v2038 = vadd.f32 %v1993, %v2015
        %v2039 = vadd.f32 %v1994, %v2019
        %v2040 = vadd.f32 %v1995, %v2015
        %v2041 = vadd.f32 %v1996, %v2019
        %v2042 = vadd.f32 %v1997, %v2015
        %v2043 = vadd.f32 %v1998, %v2019
        %v2044 = vadd.f32 %v1999, %v2015
        %v2045 = vadd.f32 %v2000, %v2019
        %v2046 = vadd.f32 %v2001, %v2015
        %v2047 = vadd.f32 %v2002, %v2019
        %v2048 = vadd.f32 %v2003, %v2015
        %v2049 = vadd.f32 %v2004, %v2019
        %v2050 = vadd.f32 %v2005, %v2015
        %v2051 = vadd.f32 %v2006, %v2019
        %v2052 = vadd.f32 %v2007, %v2015
        %v2053 = vadd.f32 %v2008, %v2019
        %v2054 = vpack.c.bf16 %v2024, %v2022
        %v2055 = vpack.c.bf16 %v2025, %v2023
        %v2056 = vpack.c.bf16 %v2028, %v2026
        %v2057 = vpack.c.bf16 %v2029, %v2027
        %v2058 = vpack.c.bf16 %v2032, %v2030
        %v2059 = vpack.c.bf16 %v2033, %v2031
        %v2060 = vpack.c.bf16 %v2036, %v2034
        %v2061 = vpack.c.bf16 %v2037, %v2035
        %v2062 = vpack.c.bf16 %v2040, %v2038
        %v2063 = vpack.c.bf16 %v2041, %v2039
        %v2064 = vpack.c.bf16 %v2044, %v2042
        %v2065 = vpack.c.bf16 %v2045, %v2043
        %v2066 = vpack.c.bf16 %v2048, %v2046
        %v2067 = vpack.c.bf16 %v2049, %v2047
        %v2068 = vpack.c.bf16 %v2052, %v2050
        %v2069 = vpack.c.bf16 %v2053, %v2051
        %v2070 = vld [vmem:[#allocation2] sm:$0xff]
        %v2071 = vld [vmem:[#allocation2 + $0x8] sm:$0xff]
        %v2072 = vld [vmem:[#allocation2 + $0x10] sm:$0xff]
        %v2073 = vld [vmem:[#allocation2 + $0x18] sm:$0xff]
        %v2074 = vld [vmem:[%s301 + $0x14] sm:$0xf]
        %v2075 = vld [vmem:[%s301 + $0x34] sm:$0xf]
        %v2078 = vunpack.c.l.b16 %v2074
        %v2079 = vunpack.c.l.b16 %v2075
        %v2080 = vpack.c.b16 %v2079, %v2078
        %2082 = vmatprep.subr.bf16.mxu0 %v2055
        %2083 = vmatpush1.bf16.msra.mxu0 %v2054
        %2084 = vmatprep.subr.bf16.mxu0 %v2057
        %2085 = vmatpush1.bf16.msra.mxu0 %v2056
        %2086 = vmatprep.subr.bf16.mxu0 %v2059
        %2087 = vmatpush1.bf16.msra.mxu0 %v2058
        %2088 = vmatprep.subr.bf16.mxu0 %v2061
        %2089 = vmatpush1.bf16.msra.mxu0 %v2060
        %2090 = vmatprep.subr.bf16.mxu0 %v2063
        %2091 = vmatpush1.bf16.msra.mxu0 %v2062
        %2092 = vmatprep.subr.bf16.mxu0 %v2065
        %2093 = vmatpush1.bf16.msra.mxu0 %v2064
        %2094 = vmatprep.subr.bf16.mxu0 %v2067
        %2095 = vmatpush1.bf16.msra.mxu0 %v2066
        %2096 = vmatprep.subr.bf16.mxu0 %v2069
        %2097 = vmatpush1.bf16.msra.mxu0 %v2068
        %2098 = vmatprep.subr.bf16.mxu0 0
        %2099 = vmatpush1.bf16.msra.mxu0 0
        %2100 = vmatprep.subr.bf16.mxu0 0
        %2101 = vmatpush1.bf16.msra.mxu0 0
        %2102 = vmatprep.subr.bf16.mxu0 0
        %2103 = vmatpush1.bf16.msra.mxu0 0
        %2104 = vmatprep.subr.bf16.mxu0 0
        %2105 = vmatpush1.bf16.msra.mxu0 0
        %2106 = vmatprep.subr.bf16.mxu0 0
        %2107 = vmatpush1.bf16.msra.mxu0 0
        %2108 = vmatprep.subr.bf16.mxu0 0
        %2109 = vmatpush1.bf16.msra.mxu0 0
        %2110 = vmatprep.subr.bf16.mxu0 0
        %2111 = vmatpush1.bf16.msra.mxu0 0
        %2112 = vmatprep.subr.bf16.mxu0 0
        %2113 = vmatpush1.bf16.msra.mxu0 0
        %2114 = vmatprep.mubr.bf16.mxu0 0
        %2115 = vmatmul.mubr.bf16.gmra.mrb[0].mxu0 %v2080
        %v2116 = vpop.f32.mrb[0].mxu0
        %v2117 = vadd.f32 0.0, %v2116
        %v2118 = vpop.f32.mrb[0].mxu0
        %v2119 = vadd.f32 0.0, %v2118
        %v2120 = vpop.f32.mrb[0].mxu0
        %v2121 = vadd.f32 0.0, %v2120
        %v2122 = vpop.f32.mrb[0].mxu0
        %v2123 = vadd.f32 0.0, %v2122
        %2124 = vdwg.mxu0
        %v2125 = vadd.f32 %v2070, %v2117
        %v2126 = vadd.f32 %v2071, %v2119
        %v2127 = vadd.f32 %v2072, %v2121
        %v2128 = vadd.f32 %v2073, %v2123
        %2129 = vst [vmem:[#allocation2] sm:$0xff] %v2125
        %2130 = vst [vmem:[#allocation2 + $0x8] sm:$0xff] %v2126
        %2131 = vst [vmem:[#allocation2 + $0x10] sm:$0xff] %v2127
        %2132 = vst [vmem:[#allocation2 + $0x18] sm:$0xff] %v2128
        %v2133 = vld [vmem:[%s310] sm:$0xff]
        %v2134 = vld [vmem:[%s310 + $0x8] sm:$0xff]
        %v2135 = vld [vmem:[%s310 + $0x10] sm:$0xff]
        %v2136 = vld [vmem:[%s310 + $0x18] sm:$0xff]
        %v2137 = vld [vmem:[%s310 + $0x20] sm:$0xff]
        %v2138 = vld [vmem:[%s310 + $0x28] sm:$0xff]
        %v2139 = vld [vmem:[%s310 + $0x30] sm:$0xff]
        %v2140 = vld [vmem:[%s310 + $0x38] sm:$0xff]
        %v2141 = vld [vmem:[%s310 + $0x40] sm:$0xff]
        %v2142 = vld [vmem:[%s310 + $0x48] sm:$0xff]
        %v2143 = vld [vmem:[%s310 + $0x50] sm:$0xff]
        %v2144 = vld [vmem:[%s310 + $0x58] sm:$0xff]
        %v2145 = vld [vmem:[%s310 + $0x60] sm:$0xff]
        %v2146 = vld [vmem:[%s310 + $0x68] sm:$0xff]
        %v2147 = vld [vmem:[%s310 + $0x70] sm:$0xff]
        %v2148 = vld [vmem:[%s310 + $0x78] sm:$0xff]
        %v2149 = vld [vmem:[%s310 + $0x80] sm:$0xff]
        %v2150 = vld [vmem:[%s310 + $0x88] sm:$0xff]
        %v2151 = vld [vmem:[%s310 + $0x90] sm:$0xff]
        %v2152 = vld [vmem:[%s310 + $0x98] sm:$0xff]
        %v2153 = vld [vmem:[%s310 + $0xa0] sm:$0xff]
        %v2154 = vld [vmem:[%s310 + $0xa8] sm:$0xff]
        %v2155 = vld [vmem:[%s310 + $0xb0] sm:$0xff]
        %v2156 = vld [vmem:[%s310 + $0xb8] sm:$0xff]
        %v2157 = vld [vmem:[%s310 + $0xc0] sm:$0xff]
        %v2158 = vld [vmem:[%s310 + $0xc8] sm:$0xff]
        %v2159 = vld [vmem:[%s310 + $0xd0] sm:$0xff]
        %v2160 = vld [vmem:[%s310 + $0xd8] sm:$0xff]
        %v2161 = vld [vmem:[%s310 + $0xe0] sm:$0xff]
        %v2162 = vld [vmem:[%s310 + $0xe8] sm:$0xff]
        %v2163 = vld [vmem:[%s310 + $0xf0] sm:$0xff]
        %v2164 = vld [vmem:[%s310 + $0xf8] sm:$0xff]
        %v2165 = vshra.s32 %v2133, 24
        %v2166 = vshra.s32 %v2134, 24
        %v2167 = vshra.s32 %v2135, 24
        %v2168 = vshra.s32 %v2136, 24
        %v2169 = vshra.s32 %v2137, 24
        %v2170 = vshra.s32 %v2138, 24
        %v2171 = vshra.s32 %v2139, 24
        %v2172 = vshra.s32 %v2140, 24
        %v2173 = vshra.s32 %v2141, 24
        %v2174 = vshra.s32 %v2142, 24
        %v2175 = vshra.s32 %v2143, 24
        %v2176 = vshra.s32 %v2144, 24
        %v2177 = vshra.s32 %v2145, 24
        %v2178 = vshra.s32 %v2146, 24
        %v2179 = vshra.s32 %v2147, 24
        %v2180 = vshra.s32 %v2148, 24
        %v2181 = vshra.s32 %v2149, 24
        %v2182 = vshra.s32 %v2150, 24
        %v2183 = vshra.s32 %v2151, 24
        %v2184 = vshra.s32 %v2152, 24
        %v2185 = vshra.s32 %v2153, 24
        %v2186 = vshra.s32 %v2154, 24
        %v2187 = vshra.s32 %v2155, 24
        %v2188 = vshra.s32 %v2156, 24
        %v2189 = vshra.s32 %v2157, 24
        %v2190 = vshra.s32 %v2158, 24
        %v2191 = vshra.s32 %v2159, 24
        %v2192 = vshra.s32 %v2160, 24
        %v2193 = vshra.s32 %v2161, 24
        %v2194 = vshra.s32 %v2162, 24
        %v2195 = vshra.s32 %v2163, 24
        %v2196 = vshra.s32 %v2164, 24
        %v2197 = vand.u32 %v2165, 15
        %v2198 = vand.u32 %v2166, 15
        %v2199 = vand.u32 %v2167, 15
        %v2200 = vand.u32 %v2168, 15
        %v2201 = vand.u32 %v2169, 15
        %v2202 = vand.u32 %v2170, 15
        %v2203 = vand.u32 %v2171, 15
        %v2204 = vand.u32 %v2172, 15
        %v2205 = vand.u32 %v2173, 15
        %v2206 = vand.u32 %v2174, 15
        %v2207 = vand.u32 %v2175, 15
        %v2208 = vand.u32 %v2176, 15
        %v2209 = vand.u32 %v2177, 15
        %v2210 = vand.u32 %v2178, 15
        %v2211 = vand.u32 %v2179, 15
        %v2212 = vand.u32 %v2180, 15
        %v2213 = vand.u32 %v2181, 15
        %v2214 = vand.u32 %v2182, 15
        %v2215 = vand.u32 %v2183, 15
        %v2216 = vand.u32 %v2184, 15
        %v2217 = vand.u32 %v2185, 15
        %v2218 = vand.u32 %v2186, 15
        %v2219 = vand.u32 %v2187, 15
        %v2220 = vand.u32 %v2188, 15
        %v2221 = vand.u32 %v2189, 15
        %v2222 = vand.u32 %v2190, 15
        %v2223 = vand.u32 %v2191, 15
        %v2224 = vand.u32 %v2192, 15
        %v2225 = vand.u32 %v2193, 15
        %v2226 = vand.u32 %v2194, 15
        %v2227 = vand.u32 %v2195, 15
        %v2228 = vand.u32 %v2196, 15
        %v2229 = vcvt.s32.f32 %v2197
        %v2230 = vcvt.s32.f32 %v2198
        %v2231 = vcvt.s32.f32 %v2199
        %v2232 = vcvt.s32.f32 %v2200
        %v2233 = vcvt.s32.f32 %v2201
        %v2234 = vcvt.s32.f32 %v2202
        %v2235 = vcvt.s32.f32 %v2203
        %v2236 = vcvt.s32.f32 %v2204
        %v2237 = vcvt.s32.f32 %v2205
        %v2238 = vcvt.s32.f32 %v2206
        %v2239 = vcvt.s32.f32 %v2207
        %v2240 = vcvt.s32.f32 %v2208
        %v2241 = vcvt.s32.f32 %v2209
        %v2242 = vcvt.s32.f32 %v2210
        %v2243 = vcvt.s32.f32 %v2211
        %v2244 = vcvt.s32.f32 %v2212
        %v2245 = vcvt.s32.f32 %v2213
        %v2246 = vcvt.s32.f32 %v2214
        %v2247 = vcvt.s32.f32 %v2215
        %v2248 = vcvt.s32.f32 %v2216
        %v2249 = vcvt.s32.f32 %v2217
        %v2250 = vcvt.s32.f32 %v2218
        %v2251 = vcvt.s32.f32 %v2219
        %v2252 = vcvt.s32.f32 %v2220
        %v2253 = vcvt.s32.f32 %v2221
        %v2254 = vcvt.s32.f32 %v2222
        %v2255 = vcvt.s32.f32 %v2223
        %v2256 = vcvt.s32.f32 %v2224
        %v2257 = vcvt.s32.f32 %v2225
        %v2258 = vcvt.s32.f32 %v2226
        %v2259 = vcvt.s32.f32 %v2227
        %v2260 = vcvt.s32.f32 %v2228
        %s2261 = scalar_lea.vmem %s319, 6 [#allocation8]
        %v2262 = vld [vmem:[%s2261] ss:$8 sm:$0x3]
        %v2264 = vlaneseq
        %v2265 = vshrl.u32 %v2264, 7
        %v2266 = vsub.s32 0, %v2265
        %v2267 = vrot.slane %v2262, %v2266
        %v2268 = vlaneseq
        %v2269 = vshrl.u32 %v2268, 7
        %v2270 = vsub.s32 1, %v2269
        %v2271 = vrot.slane %v2262, %v2270
        %v2274 = vmul.f32 %v2229, %v2267
        %v2275 = vmul.f32 %v2230, %v2271
        %v2276 = vmul.f32 %v2231, %v2267
        %v2277 = vmul.f32 %v2232, %v2271
        %v2278 = vmul.f32 %v2233, %v2267
        %v2279 = vmul.f32 %v2234, %v2271
        %v2280 = vmul.f32 %v2235, %v2267
        %v2281 = vmul.f32 %v2236, %v2271
        %v2282 = vmul.f32 %v2237, %v2267
        %v2283 = vmul.f32 %v2238, %v2271
        %v2284 = vmul.f32 %v2239, %v2267
        %v2285 = vmul.f32 %v2240, %v2271
        %v2286 = vmul.f32 %v2241, %v2267
        %v2287 = vmul.f32 %v2242, %v2271
        %v2288 = vmul.f32 %v2243, %v2267
        %v2289 = vmul.f32 %v2244, %v2271
        %v2290 = vmul.f32 %v2245, %v2267
        %v2291 = vmul.f32 %v2246, %v2271
        %v2292 = vmul.f32 %v2247, %v2267
        %v2293 = vmul.f32 %v2248, %v2271
        %v2294 = vmul.f32 %v2249, %v2267
        %v2295 = vmul.f32 %v2250, %v2271
        %v2296 = vmul.f32 %v2251, %v2267
        %v2297 = vmul.f32 %v2252, %v2271
        %v2298 = vmul.f32 %v2253, %v2267
        %v2299 = vmul.f32 %v2254, %v2271
        %v2300 = vmul.f32 %v2255, %v2267
        %v2301 = vmul.f32 %v2256, %v2271
        %v2302 = vmul.f32 %v2257, %v2267
        %v2303 = vmul.f32 %v2258, %v2271
        %v2304 = vmul.f32 %v2259, %v2267
        %v2305 = vmul.f32 %v2260, %v2271
        %s2306 = scalar_lea.vmem %s328, 6 [#allocation9]
        %v2307 = vld [vmem:[%s2306] ss:$8 sm:$0x3]
        %v2309 = vlaneseq
        %v2310 = vshrl.u32 %v2309, 7
        %v2311 = vsub.s32 0, %v2310
        %v2312 = vrot.slane %v2307, %v2311
        %v2313 = vlaneseq
        %v2314 = vshrl.u32 %v2313, 7
        %v2315 = vsub.s32 1, %v2314
        %v2316 = vrot.slane %v2307, %v2315
        %v2319 = vadd.f32 %v2274, %v2312
        %v2320 = vadd.f32 %v2275, %v2316
        %v2321 = vadd.f32 %v2276, %v2312
        %v2322 = vadd.f32 %v2277, %v2316
        %v2323 = vadd.f32 %v2278, %v2312
        %v2324 = vadd.f32 %v2279, %v2316
        %v2325 = vadd.f32 %v2280, %v2312
        %v2326 = vadd.f32 %v2281, %v2316
        %v2327 = vadd.f32 %v2282, %v2312
        %v2328 = vadd.f32 %v2283, %v2316
        %v2329 = vadd.f32 %v2284, %v2312
        %v2330 = vadd.f32 %v2285, %v2316
        %v2331 = vadd.f32 %v2286, %v2312
        %v2332 = vadd.f32 %v2287, %v2316
        %v2333 = vadd.f32 %v2288, %v2312
        %v2334 = vadd.f32 %v2289, %v2316
        %v2335 = vadd.f32 %v2290, %v2312
        %v2336 = vadd.f32 %v2291, %v2316
        %v2337 = vadd.f32 %v2292, %v2312
        %v2338 = vadd.f32 %v2293, %v2316
        %v2339 = vadd.f32 %v2294, %v2312
        %v2340 = vadd.f32 %v2295, %v2316
        %v2341 = vadd.f32 %v2296, %v2312
        %v2342 = vadd.f32 %v2297, %v2316
        %v2343 = vadd.f32 %v2298, %v2312
        %v2344 = vadd.f32 %v2299, %v2316
        %v2345 = vadd.f32 %v2300, %v2312
        %v2346 = vadd.f32 %v2301, %v2316
        %v2347 = vadd.f32 %v2302, %v2312
        %v2348 = vadd.f32 %v2303, %v2316
        %v2349 = vadd.f32 %v2304, %v2312
        %v2350 = vadd.f32 %v2305, %v2316
        %v2351 = vpack.c.bf16 %v2321, %v2319
        %v2352 = vpack.c.bf16 %v2322, %v2320
        %v2353 = vpack.c.bf16 %v2325, %v2323
        %v2354 = vpack.c.bf16 %v2326, %v2324
        %v2355 = vpack.c.bf16 %v2329, %v2327
        %v2356 = vpack.c.bf16 %v2330, %v2328
        %v2357 = vpack.c.bf16 %v2333, %v2331
        %v2358 = vpack.c.bf16 %v2334, %v2332
        %v2359 = vpack.c.bf16 %v2337, %v2335
        %v2360 = vpack.c.bf16 %v2338, %v2336
        %v2361 = vpack.c.bf16 %v2341, %v2339
        %v2362 = vpack.c.bf16 %v2342, %v2340
        %v2363 = vpack.c.bf16 %v2345, %v2343
        %v2364 = vpack.c.bf16 %v2346, %v2344
        %v2365 = vpack.c.bf16 %v2349, %v2347
        %v2366 = vpack.c.bf16 %v2350, %v2348
        %v2367 = vld [vmem:[#allocation2] sm:$0xff]
        %v2368 = vld [vmem:[#allocation2 + $0x8] sm:$0xff]
        %v2369 = vld [vmem:[#allocation2 + $0x10] sm:$0xff]
        %v2370 = vld [vmem:[#allocation2 + $0x18] sm:$0xff]
        %v2371 = vld [vmem:[%s301 + $0x18] sm:$0xf]
        %v2372 = vld [vmem:[%s301 + $0x38] sm:$0xf]
        %v2375 = vunpack.c.l.b16 %v2371
        %v2376 = vunpack.c.l.b16 %v2372
        %v2377 = vpack.c.b16 %v2376, %v2375
        %2379 = vmatprep.subr.bf16.mxu0 %v2352
        %2380 = vmatpush1.bf16.msra.mxu0 %v2351
        %2381 = vmatprep.subr.bf16.mxu0 %v2354
        %2382 = vmatpush1.bf16.msra.mxu0 %v2353
        %2383 = vmatprep.subr.bf16.mxu0 %v2356
        %2384 = vmatpush1.bf16.msra.mxu0 %v2355
        %2385 = vmatprep.subr.bf16.mxu0 %v2358
        %2386 = vmatpush1.bf16.msra.mxu0 %v2357
        %2387 = vmatprep.subr.bf16.mxu0 %v2360
        %2388 = vmatpush1.bf16.msra.mxu0 %v2359
        %2389 = vmatprep.subr.bf16.mxu0 %v2362
        %2390 = vmatpush1.bf16.msra.mxu0 %v2361
        %2391 = vmatprep.subr.bf16.mxu0 %v2364
        %2392 = vmatpush1.bf16.msra.mxu0 %v2363
        %2393 = vmatprep.subr.bf16.mxu0 %v2366
        %2394 = vmatpush1.bf16.msra.mxu0 %v2365
        %2395 = vmatprep.subr.bf16.mxu0 0
        %2396 = vmatpush1.bf16.msra.mxu0 0
        %2397 = vmatprep.subr.bf16.mxu0 0
        %2398 = vmatpush1.bf16.msra.mxu0 0
        %2399 = vmatprep.subr.bf16.mxu0 0
        %2400 = vmatpush1.bf16.msra.mxu0 0
        %2401 = vmatprep.subr.bf16.mxu0 0
        %2402 = vmatpush1.bf16.msra.mxu0 0
        %2403 = vmatprep.subr.bf16.mxu0 0
        %2404 = vmatpush1.bf16.msra.mxu0 0
        %2405 = vmatprep.subr.bf16.mxu0 0
        %2406 = vmatpush1.bf16.msra.mxu0 0
        %2407 = vmatprep.subr.bf16.mxu0 0
        %2408 = vmatpush1.bf16.msra.mxu0 0
        %2409 = vmatprep.subr.bf16.mxu0 0
        %2410 = vmatpush1.bf16.msra.mxu0 0
        %2411 = vmatprep.mubr.bf16.mxu0 0
        %2412 = vmatmul.mubr.bf16.gmra.mrb[0].mxu0 %v2377
        %v2413 = vpop.f32.mrb[0].mxu0
        %v2414 = vadd.f32 0.0, %v2413
        %v2415 = vpop.f32.mrb[0].mxu0
        %v2416 = vadd.f32 0.0, %v2415
        %v2417 = vpop.f32.mrb[0].mxu0
        %v2418 = vadd.f32 0.0, %v2417
        %v2419 = vpop.f32.mrb[0].mxu0
        %v2420 = vadd.f32 0.0, %v2419
        %2421 = vdwg.mxu0
        %v2422 = vadd.f32 %v2367, %v2414
        %v2423 = vadd.f32 %v2368, %v2416
        %v2424 = vadd.f32 %v2369, %v2418
        %v2425 = vadd.f32 %v2370, %v2420
        %2426 = vst [vmem:[#allocation2] sm:$0xff] %v2422
        %2427 = vst [vmem:[#allocation2 + $0x8] sm:$0xff] %v2423
        %2428 = vst [vmem:[#allocation2 + $0x10] sm:$0xff] %v2424
        %2429 = vst [vmem:[#allocation2 + $0x18] sm:$0xff] %v2425
        %v2430 = vld [vmem:[%s310] sm:$0xff]
        %v2431 = vld [vmem:[%s310 + $0x8] sm:$0xff]
        %v2432 = vld [vmem:[%s310 + $0x10] sm:$0xff]
        %v2433 = vld [vmem:[%s310 + $0x18] sm:$0xff]
        %v2434 = vld [vmem:[%s310 + $0x20] sm:$0xff]
        %v2435 = vld [vmem:[%s310 + $0x28] sm:$0xff]
        %v2436 = vld [vmem:[%s310 + $0x30] sm:$0xff]
        %v2437 = vld [vmem:[%s310 + $0x38] sm:$0xff]
        %v2438 = vld [vmem:[%s310 + $0x40] sm:$0xff]
        %v2439 = vld [vmem:[%s310 + $0x48] sm:$0xff]
        %v2440 = vld [vmem:[%s310 + $0x50] sm:$0xff]
        %v2441 = vld [vmem:[%s310 + $0x58] sm:$0xff]
        %v2442 = vld [vmem:[%s310 + $0x60] sm:$0xff]
        %v2443 = vld [vmem:[%s310 + $0x68] sm:$0xff]
        %v2444 = vld [vmem:[%s310 + $0x70] sm:$0xff]
        %v2445 = vld [vmem:[%s310 + $0x78] sm:$0xff]
        %v2446 = vld [vmem:[%s310 + $0x80] sm:$0xff]
        %v2447 = vld [vmem:[%s310 + $0x88] sm:$0xff]
        %v2448 = vld [vmem:[%s310 + $0x90] sm:$0xff]
        %v2449 = vld [vmem:[%s310 + $0x98] sm:$0xff]
        %v2450 = vld [vmem:[%s310 + $0xa0] sm:$0xff]
        %v2451 = vld [vmem:[%s310 + $0xa8] sm:$0xff]
        %v2452 = vld [vmem:[%s310 + $0xb0] sm:$0xff]
        %v2453 = vld [vmem:[%s310 + $0xb8] sm:$0xff]
        %v2454 = vld [vmem:[%s310 + $0xc0] sm:$0xff]
        %v2455 = vld [vmem:[%s310 + $0xc8] sm:$0xff]
        %v2456 = vld [vmem:[%s310 + $0xd0] sm:$0xff]
        %v2457 = vld [vmem:[%s310 + $0xd8] sm:$0xff]
        %v2458 = vld [vmem:[%s310 + $0xe0] sm:$0xff]
        %v2459 = vld [vmem:[%s310 + $0xe8] sm:$0xff]
        %v2460 = vld [vmem:[%s310 + $0xf0] sm:$0xff]
        %v2461 = vld [vmem:[%s310 + $0xf8] sm:$0xff]
        %v2462 = vshra.s32 %v2430, 28
        %v2463 = vshra.s32 %v2431, 28
        %v2464 = vshra.s32 %v2432, 28
        %v2465 = vshra.s32 %v2433, 28
        %v2466 = vshra.s32 %v2434, 28
        %v2467 = vshra.s32 %v2435, 28
        %v2468 = vshra.s32 %v2436, 28
        %v2469 = vshra.s32 %v2437, 28
        %v2470 = vshra.s32 %v2438, 28
        %v2471 = vshra.s32 %v2439, 28
        %v2472 = vshra.s32 %v2440, 28
        %v2473 = vshra.s32 %v2441, 28
        %v2474 = vshra.s32 %v2442, 28
        %v2475 = vshra.s32 %v2443, 28
        %v2476 = vshra.s32 %v2444, 28
        %v2477 = vshra.s32 %v2445, 28
        %v2478 = vshra.s32 %v2446, 28
        %v2479 = vshra.s32 %v2447, 28
        %v2480 = vshra.s32 %v2448, 28
        %v2481 = vshra.s32 %v2449, 28
        %v2482 = vshra.s32 %v2450, 28
        %v2483 = vshra.s32 %v2451, 28
        %v2484 = vshra.s32 %v2452, 28
        %v2485 = vshra.s32 %v2453, 28
        %v2486 = vshra.s32 %v2454, 28
        %v2487 = vshra.s32 %v2455, 28
        %v2488 = vshra.s32 %v2456, 28
        %v2489 = vshra.s32 %v2457, 28
        %v2490 = vshra.s32 %v2458, 28
        %v2491 = vshra.s32 %v2459, 28
        %v2492 = vshra.s32 %v2460, 28
        %v2493 = vshra.s32 %v2461, 28
        %v2494 = vand.u32 %v2462, 15
        %v2495 = vand.u32 %v2463, 15
        %v2496 = vand.u32 %v2464, 15
        %v2497 = vand.u32 %v2465, 15
        %v2498 = vand.u32 %v2466, 15
        %v2499 = vand.u32 %v2467, 15
        %v2500 = vand.u32 %v2468, 15
        %v2501 = vand.u32 %v2469, 15
        %v2502 = vand.u32 %v2470, 15
        %v2503 = vand.u32 %v2471, 15
        %v2504 = vand.u32 %v2472, 15
        %v2505 = vand.u32 %v2473, 15
        %v2506 = vand.u32 %v2474, 15
        %v2507 = vand.u32 %v2475, 15
        %v2508 = vand.u32 %v2476, 15
        %v2509 = vand.u32 %v2477, 15
        %v2510 = vand.u32 %v2478, 15
        %v2511 = vand.u32 %v2479, 15
        %v2512 = vand.u32 %v2480, 15
        %v2513 = vand.u32 %v2481, 15
        %v2514 = vand.u32 %v2482, 15
        %v2515 = vand.u32 %v2483, 15
        %v2516 = vand.u32 %v2484, 15
        %v2517 = vand.u32 %v2485, 15
        %v2518 = vand.u32 %v2486, 15
        %v2519 = vand.u32 %v2487, 15
        %v2520 = vand.u32 %v2488, 15
        %v2521 = vand.u32 %v2489, 15
        %v2522 = vand.u32 %v2490, 15
        %v2523 = vand.u32 %v2491, 15
        %v2524 = vand.u32 %v2492, 15
        %v2525 = vand.u32 %v2493, 15
        %v2526 = vcvt.s32.f32 %v2494
        %v2527 = vcvt.s32.f32 %v2495
        %v2528 = vcvt.s32.f32 %v2496
        %v2529 = vcvt.s32.f32 %v2497
        %v2530 = vcvt.s32.f32 %v2498
        %v2531 = vcvt.s32.f32 %v2499
        %v2532 = vcvt.s32.f32 %v2500
        %v2533 = vcvt.s32.f32 %v2501
        %v2534 = vcvt.s32.f32 %v2502
        %v2535 = vcvt.s32.f32 %v2503
        %v2536 = vcvt.s32.f32 %v2504
        %v2537 = vcvt.s32.f32 %v2505
        %v2538 = vcvt.s32.f32 %v2506
        %v2539 = vcvt.s32.f32 %v2507
        %v2540 = vcvt.s32.f32 %v2508
        %v2541 = vcvt.s32.f32 %v2509
        %v2542 = vcvt.s32.f32 %v2510
        %v2543 = vcvt.s32.f32 %v2511
        %v2544 = vcvt.s32.f32 %v2512
        %v2545 = vcvt.s32.f32 %v2513
        %v2546 = vcvt.s32.f32 %v2514
        %v2547 = vcvt.s32.f32 %v2515
        %v2548 = vcvt.s32.f32 %v2516
        %v2549 = vcvt.s32.f32 %v2517
        %v2550 = vcvt.s32.f32 %v2518
        %v2551 = vcvt.s32.f32 %v2519
        %v2552 = vcvt.s32.f32 %v2520
        %v2553 = vcvt.s32.f32 %v2521
        %v2554 = vcvt.s32.f32 %v2522
        %v2555 = vcvt.s32.f32 %v2523
        %v2556 = vcvt.s32.f32 %v2524
        %v2557 = vcvt.s32.f32 %v2525
        %s2558 = scalar_lea.vmem %s319, 7 [#allocation8]
        %v2559 = vld [vmem:[%s2558] ss:$8 sm:$0x3]
        %v2561 = vlaneseq
        %v2562 = vshrl.u32 %v2561, 7
        %v2563 = vsub.s32 0, %v2562
        %v2564 = vrot.slane %v2559, %v2563
        %v2565 = vlaneseq
        %v2566 = vshrl.u32 %v2565, 7
        %v2567 = vsub.s32 1, %v2566
        %v2568 = vrot.slane %v2559, %v2567
        %v2571 = vmul.f32 %v2526, %v2564
        %v2572 = vmul.f32 %v2527, %v2568
        %v2573 = vmul.f32 %v2528, %v2564
        %v2574 = vmul.f32 %v2529, %v2568
        %v2575 = vmul.f32 %v2530, %v2564
        %v2576 = vmul.f32 %v2531, %v2568
        %v2577 = vmul.f32 %v2532, %v2564
        %v2578 = vmul.f32 %v2533, %v2568
        %v2579 = vmul.f32 %v2534, %v2564
        %v2580 = vmul.f32 %v2535, %v2568
        %v2581 = vmul.f32 %v2536, %v2564
        %v2582 = vmul.f32 %v2537, %v2568
        %v2583 = vmul.f32 %v2538, %v2564
        %v2584 = vmul.f32 %v2539, %v2568
        %v2585 = vmul.f32 %v2540, %v2564
        %v2586 = vmul.f32 %v2541, %v2568
        %v2587 = vmul.f32 %v2542, %v2564
        %v2588 = vmul.f32 %v2543, %v2568
        %v2589 = vmul.f32 %v2544, %v2564
        %v2590 = vmul.f32 %v2545, %v2568
        %v2591 = vmul.f32 %v2546, %v2564
        %v2592 = vmul.f32 %v2547, %v2568
        %v2593 = vmul.f32 %v2548, %v2564
        %v2594 = vmul.f32 %v2549, %v2568
        %v2595 = vmul.f32 %v2550, %v2564
        %v2596 = vmul.f32 %v2551, %v2568
        %v2597 = vmul.f32 %v2552, %v2564
        %v2598 = vmul.f32 %v2553, %v2568
        %v2599 = vmul.f32 %v2554, %v2564
        %v2600 = vmul.f32 %v2555, %v2568
        %v2601 = vmul.f32 %v2556, %v2564
        %v2602 = vmul.f32 %v2557, %v2568
        %s2603 = scalar_lea.vmem %s328, 7 [#allocation9]
        %v2604 = vld [vmem:[%s2603] ss:$8 sm:$0x3]
        %v2606 = vlaneseq
        %v2607 = vshrl.u32 %v2606, 7
        %v2608 = vsub.s32 0, %v2607
        %v2609 = vrot.slane %v2604, %v2608
        %v2610 = vlaneseq
        %v2611 = vshrl.u32 %v2610, 7
        %v2612 = vsub.s32 1, %v2611
        %v2613 = vrot.slane %v2604, %v2612
        %v2616 = vadd.f32 %v2571, %v2609
        %v2617 = vadd.f32 %v2572, %v2613
        %v2618 = vadd.f32 %v2573, %v2609
        %v2619 = vadd.f32 %v2574, %v2613
        %v2620 = vadd.f32 %v2575, %v2609
        %v2621 = vadd.f32 %v2576, %v2613
        %v2622 = vadd.f32 %v2577, %v2609
        %v2623 = vadd.f32 %v2578, %v2613
        %v2624 = vadd.f32 %v2579, %v2609
        %v2625 = vadd.f32 %v2580, %v2613
        %v2626 = vadd.f32 %v2581, %v2609
        %v2627 = vadd.f32 %v2582, %v2613
        %v2628 = vadd.f32 %v2583, %v2609
        %v2629 = vadd.f32 %v2584, %v2613
        %v2630 = vadd.f32 %v2585, %v2609
        %v2631 = vadd.f32 %v2586, %v2613
        %v2632 = vadd.f32 %v2587, %v2609
        %v2633 = vadd.f32 %v2588, %v2613
        %v2634 = vadd.f32 %v2589, %v2609
        %v2635 = vadd.f32 %v2590, %v2613
        %v2636 = vadd.f32 %v2591, %v2609
        %v2637 = vadd.f32 %v2592, %v2613
        %v2638 = vadd.f32 %v2593, %v2609
        %v2639 = vadd.f32 %v2594, %v2613
        %v2640 = vadd.f32 %v2595, %v2609
        %v2641 = vadd.f32 %v2596, %v2613
        %v2642 = vadd.f32 %v2597, %v2609
        %v2643 = vadd.f32 %v2598, %v2613
        %v2644 = vadd.f32 %v2599, %v2609
        %v2645 = vadd.f32 %v2600, %v2613
        %v2646 = vadd.f32 %v2601, %v2609
        %v2647 = vadd.f32 %v2602, %v2613
        %v2648 = vpack.c.bf16 %v2618, %v2616
        %v2649 = vpack.c.bf16 %v2619, %v2617
        %v2650 = vpack.c.bf16 %v2622, %v2620
        %v2651 = vpack.c.bf16 %v2623, %v2621
        %v2652 = vpack.c.bf16 %v2626, %v2624
        %v2653 = vpack.c.bf16 %v2627, %v2625
        %v2654 = vpack.c.bf16 %v2630, %v2628
        %v2655 = vpack.c.bf16 %v2631, %v2629
        %v2656 = vpack.c.bf16 %v2634, %v2632
        %v2657 = vpack.c.bf16 %v2635, %v2633
        %v2658 = vpack.c.bf16 %v2638, %v2636
        %v2659 = vpack.c.bf16 %v2639, %v2637
        %v2660 = vpack.c.bf16 %v2642, %v2640
        %v2661 = vpack.c.bf16 %v2643, %v2641
        %v2662 = vpack.c.bf16 %v2646, %v2644
        %v2663 = vpack.c.bf16 %v2647, %v2645
        %v2664 = vld [vmem:[#allocation2] sm:$0xff]
        %v2665 = vld [vmem:[#allocation2 + $0x8] sm:$0xff]
        %v2666 = vld [vmem:[#allocation2 + $0x10] sm:$0xff]
        %v2667 = vld [vmem:[#allocation2 + $0x18] sm:$0xff]
        %v2668 = vld [vmem:[%s301 + $0x1c] sm:$0xf]
        %v2669 = vld [vmem:[%s301 + $0x3c] sm:$0xf]
        %v2672 = vunpack.c.l.b16 %v2668
        %v2673 = vunpack.c.l.b16 %v2669
        %v2674 = vpack.c.b16 %v2673, %v2672
        %2676 = vmatprep.subr.bf16.mxu0 %v2649
        %2677 = vmatpush1.bf16.msra.mxu0 %v2648
        %2678 = vmatprep.subr.bf16.mxu0 %v2651
        %2679 = vmatpush1.bf16.msra.mxu0 %v2650
        %2680 = vmatprep.subr.bf16.mxu0 %v2653
        %2681 = vmatpush1.bf16.msra.mxu0 %v2652
        %2682 = vmatprep.subr.bf16.mxu0 %v2655
        %2683 = vmatpush1.bf16.msra.mxu0 %v2654
        %2684 = vmatprep.subr.bf16.mxu0 %v2657
        %2685 = vmatpush1.bf16.msra.mxu0 %v2656
        %2686 = vmatprep.subr.bf16.mxu0 %v2659
        %2687 = vmatpush1.bf16.msra.mxu0 %v2658
        %2688 = vmatprep.subr.bf16.mxu0 %v2661
        %2689 = vmatpush1.bf16.msra.mxu0 %v2660
        %2690 = vmatprep.subr.bf16.mxu0 %v2663
        %2691 = vmatpush1.bf16.msra.mxu0 %v2662
        %2692 = vmatprep.subr.bf16.mxu0 0
        %2693 = vmatpush1.bf16.msra.mxu0 0
        %2694 = vmatprep.subr.bf16.mxu0 0
        %2695 = vmatpush1.bf16.msra.mxu0 0
        %2696 = vmatprep.subr.bf16.mxu0 0
        %2697 = vmatpush1.bf16.msra.mxu0 0
        %2698 = vmatprep.subr.bf16.mxu0 0
        %2699 = vmatpush1.bf16.msra.mxu0 0
        %2700 = vmatprep.subr.bf16.mxu0 0
        %2701 = vmatpush1.bf16.msra.mxu0 0
        %2702 = vmatprep.subr.bf16.mxu0 0
        %2703 = vmatpush1.bf16.msra.mxu0 0
        %2704 = vmatprep.subr.bf16.mxu0 0
        %2705 = vmatpush1.bf16.msra.mxu0 0
        %2706 = vmatprep.subr.bf16.mxu0 0
        %2707 = vmatpush1.bf16.msra.mxu0 0
        %2708 = vmatprep.mubr.bf16.mxu0 0
        %2709 = vmatmul.mubr.bf16.gmra.mrb[0].mxu0 %v2674
        %v2710 = vpop.f32.mrb[0].mxu0
        %v2711 = vadd.f32 0.0, %v2710
        %v2712 = vpop.f32.mrb[0].mxu0
        %v2713 = vadd.f32 0.0, %v2712
        %v2714 = vpop.f32.mrb[0].mxu0
        %v2715 = vadd.f32 0.0, %v2714
        %v2716 = vpop.f32.mrb[0].mxu0
        %v2717 = vadd.f32 0.0, %v2716
        %2718 = vdwg.mxu0
        %v2719 = vadd.f32 %v2664, %v2711
        %v2720 = vadd.f32 %v2665, %v2713
        %v2721 = vadd.f32 %v2666, %v2715
        %v2722 = vadd.f32 %v2667, %v2717
        %2723 = vst [vmem:[#allocation2] sm:$0xff] %v2719
        %2724 = vst [vmem:[#allocation2 + $0x8] sm:$0xff] %v2720
        %2725 = vst [vmem:[#allocation2 + $0x10] sm:$0xff] %v2721
        %2726 = vst [vmem:[#allocation2 + $0x18] sm:$0xff] %v2722
        %p2727 = scmp.eq.s32.totalorder %s34, 1
        // Predicated region
        $region57: #{tpu_custom_call.1} parent=35 // pred_check
          %p2728 = pneg %p2727
        $region58: #{tpu_custom_call.1} parent=35 // pred_check_branch
          %2730 = sbr.rel (%p2728) target = $region60
        $region59: #{tpu_custom_call.1} parent=35 // pred_region
          %v2731 = vld [vmem:[#allocation2] sm:$0xff]
          %v2732 = vld [vmem:[#allocation2 + $0x8] sm:$0xff]
          %v2733 = vld [vmem:[#allocation2 + $0x10] sm:$0xff]
          %v2734 = vld [vmem:[#allocation2 + $0x18] sm:$0xff]
          %v2735 = vpack.c.bf16 %v2733, %v2731
          %v2736 = vpack.c.bf16 %v2734, %v2732
          %v2739 = vunpack.c.l.b16 %v2735
          %v2740 = vunpack.c.l.b16 %v2736
          %v2741 = vunpack.c.h.b16 %v2735
          %v2742 = vunpack.c.h.b16 %v2736
          %v2743 = vpack.c.b16 %v2740, %v2739
          %v2744 = vpack.c.b16 %v2742, %v2741
          %2747 = vst [vmem:[%s367] sm:$0xff] %v2743
          %2748 = vst [vmem:[%s367 + $0x8] sm:$0xff] %v2744
        $region60: #{tpu_custom_call.1} parent=35 // pred_fallthru
          _
        %s2749 = sand.u32 %s168, 1
        %s2750 = scalar_lea.sflag [#allocation5], %s2749
        %s2751 = sand.u32 %s168, 1
        %s2752 = smul.addr %s2751, 16
        %s2753 = scalar_lea.vmem [#allocation11], %s2752
        // Predicated region
        $region61: #{tpu_custom_call.1} parent=35 // pred_check
          %p2754 = pneg %p178
        $region62: #{tpu_custom_call.1} parent=35 // pred_check_branch
          %2756 = sbr.rel (%p2754) target = $region64
        $region63: #{tpu_custom_call.1} parent=35 // pred_region
          %s2757 = smul.u32 2, %s32
          %s2758 = smul.u32 2, %s33
          %s2760 = ssub.s32 256, 256
          %2761 = vsyncadd %s2750, %s2760
          %s2762 = smul.addr %s2757, 6
          %s2763 = sadd.s32 %s2758, %s2762
          %s2764 = smul.addr %s2763, 64
          %s2765 = scalar_lea.hbm %s4, %s2764
          %s2766 = sshll.u32 %s2753, 4
          %s2767 = int_to_ptr.vmem [resolvable:$true] %s2766
          %2772 = dma.vmem_to_hbm [thread:$0]  %s2767, 256, %s2765, %s2750, 128, 384, 8
        $region64: #{tpu_custom_call.1} parent=35 // pred_fallthru
          _
      $region36: #{tpu_custom_call.1} parent=5 // pred_fallthru
        _
      %p2773 = scmp.le.s32.totalorder 2, %s22
      // Predicated region
      $region65: #{tpu_custom_call.1} parent=5 // pred_check
        %p2774 = pneg %p2773
      $region66: #{tpu_custom_call.1} parent=5 // pred_check_branch
        %2776 = sbr.rel (%p2774) target = $region68
      $region67: #{tpu_custom_call.1} parent=5 // pred_region
        %s2777 = ssub.s32 %s22, 2
        // Predicated region
        $region69: #{tpu_custom_call.1} parent=67 // pred_check
          %p2778 = pneg %p184
        $region70: #{tpu_custom_call.1} parent=67 // pred_check_branch
          %2780 = sbr.rel (%p2778) target = $region72
        $region71: #{tpu_custom_call.1} parent=67 // pred_region
          %s2781 = sand.u32 %s169, 1
          %s2782 = scalar_lea.sflag [#allocation5], %s2781
          %s2783 = sand.u32 %s169, 1
          %s2784 = smul.addr %s2783, 16
          %s2785 = scalar_lea.vmem [#allocation11], %s2784
          %2786 = dma.done %s2782, 256
        $region72: #{tpu_custom_call.1} parent=67 // pred_fallthru
          _
      $region68: #{tpu_custom_call.1} parent=5 // pred_fallthru
        _
    $region6: #{tpu_custom_call.1} parent=1 // loop_footer
      %s26 = sadd.s32 1, %s22
    $region7: #{tpu_custom_call.1} parent=1 // loop_footer_branch
      %21 = sbr.rel target = $region3
    $region8: #{tpu_custom_call.1} parent=1 // loop_exit
      _
    %2787 = vsyncpa [#allocation4], 1
    %s2788 = scalar_lea.sflag [#allocation4], 1
    %2789 = vsyncpa %s2788, 1
    %2790 = vsyncpa [#allocation7], 1
    %s2791 = scalar_lea.sflag [#allocation7], 1
    %2792 = vsyncpa %s2791, 1
    %2793 = vsyncpa [#allocation10], 1
    %s2794 = scalar_lea.sflag [#allocation10], 1
    %2795 = vsyncpa %s2794, 1
    %2796 = vsyncpa [#allocation5], 1
    %s2797 = scalar_lea.sflag [#allocation5], 1
    %2798 = vsyncpa %s2797, 1

</llo_original>
